<compile_context>
chip_gen: v5e
topology: v5e:2x2
jax: 0.10.0
libtpu: 0.0.40
codegen_flags: <defaults>
</compile_context>

<pallas_src>
import functools

import jax
import jax.numpy as jnp
from jax import lax
from jax.experimental import pallas as pl
from jax.experimental.pallas import tpu as pltpu


_TARGET_BYTES = 4 * 1024 * 1024      # ~4 MiB per (double-buffered) tile
_VMEM_LIMIT = 48 * 1024 * 1024       # safe on v5e/v6e (128 MiB) and v7x (64 MiB)


# ----------------------------------------------------------------------------
# Tiling helpers (cdiv-based: blocks need not divide the array).
# ----------------------------------------------------------------------------
def _round_up(x, m):
    return ((x + m - 1) // m) * m


def _pool_tiles(c, hw, itemsize, target_bytes=_TARGET_BYTES):
    """(c_tile, hw_tile) for the pooling pass, hw_tile lane-dense."""
    hw_pad = _round_up(hw, 128)
    c_tile = min(c, max(1, target_bytes // (128 * itemsize)))
    if c_tile < c:
        c_tile = max(8, (c_tile // 8) * 8)
    t = (target_bytes // max(1, c_tile * itemsize)) // 128 * 128
    t = max(128, min(t, hw_pad))
    if t >= hw:
        t = hw          # full-extent block is always legal
    return c_tile, t


def _scale_tiles(c, hw, itemsize, target_bytes=_TARGET_BYTES):
    """(c_tile, hw_tile) for the scale pass, hw_tile lane-dense."""
    hw_pad = _round_up(hw, 128)
    t = (target_bytes // max(1, c * itemsize)) // 128 * 128
    t = max(128, min(t, hw_pad))
    if t >= hw:
        t = hw
    c_tile = min(c, max(1, target_bytes // (t * itemsize)))
    if c_tile < c:
        c_tile = max(8, (c_tile // 8) * 8)
    return c_tile, t


# ----------------------------------------------------------------------------
# Pass 1: channel pooling (mean & max over C), lane-dense, accumulated over C.
# ----------------------------------------------------------------------------
def _pool_kernel(x_ref, p_ref, acc_ref, *, inv_c, c_total, c_tile, mask_c):
    # x_ref  : (1, Ct, T) channel tile of one image (lane-dense over flattened HW)
    # p_ref  : (1, 2, T)  pooled [mean, max] maps (f32), written on the last C step
    # acc_ref: (2, T)     f32 running [sum, max] accumulator
    ci = pl.program_id(2)
    T = acc_ref.shape[1]

    @pl.when(ci == 0)
    def _():
        acc_ref[...] = jnp.concatenate(
            [jnp.zeros((1, T), jnp.float32),
             jnp.full((1, T), -jnp.inf, jnp.float32)], axis=0)

    xt = x_ref[0].astype(jnp.float32)                       # (Ct, T)
    if mask_c:
        # cdiv grid over C: mask out-of-range channels in the edge tile.
        valid = c_total - ci * c_tile
        row = lax.broadcasted_iota(jnp.int32, xt.shape, 0)
        in_range = row < valid
        xs = jnp.where(in_range, xt, 0.0)
        xm = jnp.where(in_range, xt, -jnp.inf)
    else:
        xs = xt
        xm = xt

    acc = acc_ref[...]
    acc_ref[...] = jnp.concatenate(
        [acc[0:1] + jnp.sum(xs, axis=0, keepdims=True),
         jnp.maximum(acc[1:2], jnp.max(xm, axis=0, keepdims=True))], axis=0)

    @pl.when(ci == pl.num_programs(2) - 1)
    def _():
        accf = acc_ref[...]
        p_ref[...] = jnp.concatenate(
            [accf[0:1] * inv_c, accf[1:2]], axis=0).reshape(1, 2, T)


def _pool(x_flat, c_tile, hw_tile):
    N, C, HW = x_flat.shape
    kernel = functools.partial(
        _pool_kernel, inv_c=1.0 / C, c_total=C, c_tile=c_tile,
        mask_c=(C % c_tile != 0))
    return pl.pallas_call(
        kernel,
        out_shape=jax.ShapeDtypeStruct((N, 2, HW), jnp.float32),
        grid_spec=pltpu.PrefetchScalarGridSpec(
            num_scalar_prefetch=0,
            grid=(N, pl.cdiv(HW, hw_tile), pl.cdiv(C, c_tile)),
            in_specs=[pl.BlockSpec((1, c_tile, hw_tile),
                                   lambda n, t, c: (n, c, t))],
            out_specs=pl.BlockSpec((1, 2, hw_tile),
                                   lambda n, t, c: (n, 0, t)),
            scratch_shapes=[pltpu.VMEM((2, hw_tile), jnp.float32)],
        ),
        compiler_params=pltpu.CompilerParams(
            dimension_semantics=("parallel", "parallel", "arbitrary"),
            vmem_limit_bytes=_VMEM_LIMIT),
    )(x_flat)


# ----------------------------------------------------------------------------
# Pass 2: kxk conv (2 -> 1 channel, no bias) + sigmoid, padding done in VMEM.
# ----------------------------------------------------------------------------
def _conv_sigmoid_kernel(w_ref, p_ref, a_ref, pad_ref, *, K, H, W, P):
    # w_ref  : SMEM (2*K*K,) f32 conv weights, layout (in_ch, kh, kw) flattened
    # p_ref  : (1, 2, H, W) pooled maps (f32)
    # a_ref  : (1, H, W) attention map in x.dtype
    # pad_ref: (2, H+2P, W+2P) f32 zero-padded scratch
    pad_ref[...] = jnp.zeros(pad_ref.shape, jnp.float32)
    for c in range(2):
        pad_ref[c, pl.ds(P, H), pl.ds(P, W)] = p_ref[0, c]

    acc = jnp.zeros((H, W), jnp.float32)
    for c in range(2):
        for dj in range(K):
            # One lane-shifted load per (plane, dj): 2*K unaligned loads total.
            col = pad_ref[c, :, pl.ds(dj, W)]                # (H+2P, W)
            for dip in range(K):
                acc = acc + w_ref[c * K * K + dip * K + dj] * col[dip:dip + H, :]
    a_ref[0] = jax.nn.sigmoid(acc).astype(a_ref.dtype)


def _conv_sigmoid(pooled_nchw, w_flat, K, H, W, P, out_dtype):
    N = pooled_nchw.shape[0]
    Hp, Wp = H + 2 * P, W + 2 * P
    kernel = functools.partial(_conv_sigmoid_kernel, K=K, H=H, W=W, P=P)
    return pl.pallas_call(
        kernel,
        out_shape=jax.ShapeDtypeStruct((N, H, W), out_dtype),
        grid_spec=pltpu.PrefetchScalarGridSpec(
            num_scalar_prefetch=0,
            grid=(N,),
            in_specs=[
                pl.BlockSpec(memory_space=pltpu.MemorySpace.SMEM),      # weights
                pl.BlockSpec((1, 2, H, W), lambda n: (n, 0, 0, 0)),     # pooled maps
            ],
            out_specs=pl.BlockSpec((1, H, W), lambda n: (n, 0, 0)),
            scratch_shapes=[pltpu.VMEM((2, Hp, Wp), jnp.float32)],
        ),
        compiler_params=pltpu.CompilerParams(
            dimension_semantics=("parallel",),
            vmem_limit_bytes=_VMEM_LIMIT),
    )(w_flat, pooled_nchw)


# ----------------------------------------------------------------------------
# Pass 3: lane-dense, cdiv-tiled elementwise scale (bandwidth-critical pass).
# ----------------------------------------------------------------------------
def _scale_kernel(x_ref, a_ref, o_ref):
    # x_ref/o_ref: (1, Ct, T); a_ref: (1, 1, T) attention (x.dtype), broadcast over C
    o_ref[...] = x_ref[...] * a_ref[...]


def _scale(x_flat, attn_flat, c_tile, hw_tile):
    N, C, HW = x_flat.shape
    return pl.pallas_call(
        _scale_kernel,
        out_shape=jax.ShapeDtypeStruct((N, C, HW), x_flat.dtype),
        grid_spec=pltpu.PrefetchScalarGridSpec(
            num_scalar_prefetch=0,
            grid=(N, pl.cdiv(C, c_tile), pl.cdiv(HW, hw_tile)),
            in_specs=[
                pl.BlockSpec((1, c_tile, hw_tile), lambda n, c, t: (n, c, t)),
                pl.BlockSpec((1, 1, hw_tile), lambda n, c, t: (n, 0, t)),
            ],
            out_specs=pl.BlockSpec((1, c_tile, hw_tile), lambda n, c, t: (n, c, t)),
        ),
        compiler_params=pltpu.CompilerParams(
            dimension_semantics=("parallel", "parallel", "parallel"),
            vmem_limit_bytes=_VMEM_LIMIT),
    )(x_flat, attn_flat)


# ----------------------------------------------------------------------------
# Full forward pass
# ----------------------------------------------------------------------------
def spatial_attention(x, weight, *, kernel_size=7):
    """x: (N, C, H, W); weight: (1, 2, k, k) conv weight (no bias). Returns (N, C, H, W)."""
    N, C, H, W = x.shape
    K = int(kernel_size)
    assert K in (3, 7), "kernel size must be 3 or 7"
    P = K // 2
    assert weight.shape == (1, 2, K, K)
    HW = H * W
    itemsize = jnp.dtype(x.dtype).itemsize

    x_flat = x.reshape(N, C, HW)

    # Pass 1: channel mean/max pooling, lane-dense + C-accumulated.
    c_tile_p, hw_tile_p = _pool_tiles(C, HW, itemsize)
    pooled = _pool(x_flat, c_tile_p, hw_tile_p)                 # (N, 2, HW) f32

    # Pass 2: k x k conv + sigmoid -> spatial attention map (in x.dtype).
    w_flat = weight.reshape(2 * K * K).astype(jnp.float32)
    attn = _conv_sigmoid(pooled.reshape(N, 2, H, W), w_flat, K, H, W, P, x.dtype)

    # Pass 3: out = x * attn, streamed with lane-dense tiles.
    c_tile_s, hw_tile_s = _scale_tiles(C, HW, itemsize)
    out_flat = _scale(x_flat, attn.reshape(N, 1, HW), c_tile_s, hw_tile_s)
    return out_flat.reshape(N, C, H, W)


if __name__ == "__main__":
    key = jax.random.PRNGKey(0)
    kx, kw = jax.random.split(key)

    N, C, H, W = 2, 4, 16, 16
    K = 7
    x = jax.random.normal(kx, (N, C, H, W), dtype=jnp.float32)
    weight = jax.random.normal(kw, (1, 2, K, K), dtype=jnp.float32) * 0.1

    fwd = jax.jit(functools.partial(spatial_attention, kernel_size=K))
    out = fwd(x, weight)
    jax.block_until_ready(out)

    # Pure-JAX reference with the same semantics as the PyTorch module.
    pooled_ref = jnp.concatenate(
        [jnp.mean(x, axis=1, keepdims=True), jnp.max(x, axis=1, keepdims=True)],
        axis=1)                                                   # (N, 2, H, W)
    conv_ref = lax.conv_general_dilated(
        pooled_ref, weight, window_strides=(1, 1),
        padding=((K // 2, K // 2), (K // 2, K // 2)),
        dimension_numbers=("NCHW", "OIHW", "NCHW"))               # (N, 1, H, W)
    ref = x * jax.nn.sigmoid(conv_ref)

    assert jnp.allclose(out, ref, atol=1e-5, rtol=1e-5), "mismatch vs reference"
    print("KERNEL_OK")
</pallas_src>

<mosaic_0001>
module attributes {stable_mosaic.version = 11 : i64} {
  func.func @_pool_kernel(%arg0: i32, %arg1: i32, %arg2: i32, %arg3: memref<1x4x256xf32, #tpu.memory_space<vmem>>, %arg4: memref<1x2x256xf32, #tpu.memory_space<vmem>>, %arg5: memref<2x256xf32, #tpu.memory_space<vmem>>) attributes {dimension_semantics = [#tpu.dimension_semantics<parallel>, #tpu.dimension_semantics<parallel>, #tpu.dimension_semantics<arbitrary>], iteration_bounds = array<i64: 2, 1, 1>, scalar_prefetch = 0 : i64, scratch_operands = 1 : i64, tpu.core_type = #tpu.core_type<tc>, window_params = [{transform_indices = @transform_0, window_bounds = array<i64: 1, 4, 256>}, {transform_indices = @transform_1, window_bounds = array<i64: 1, 2, 256>}]} {
    %c0_i32 = arith.constant 0 : i32
    %0 = arith.cmpi eq, %arg2, %c0_i32 : i32
    %1 = arith.extui %0 : i1 to i32
    %c0_i32_0 = arith.constant 0 : i32
    %2 = arith.cmpi ne, %1, %c0_i32_0 : i32
    scf.if %2 {
      %cst_10 = arith.constant 0.000000e+00 : f32
      %19 = vector.broadcast %cst_10 : f32 to vector<1x256xf32>
      %cst_11 = arith.constant 0xFF800000 : f32
      %20 = vector.broadcast %cst_11 : f32 to vector<1x256xf32>
      %21 = tpu.concatenate %19, %20 in 0 : vector<1x256xf32>, vector<1x256xf32> -> vector<2x256xf32>
      %c0_12 = arith.constant 0 : index
      %c0_13 = arith.constant 0 : index
      %22 = vector.load %arg5[%c0_12, %c0_13] : memref<2x256xf32, #tpu.memory_space<vmem>>, vector<2x256xf32>
      tpu.vector_store %arg5[%c0_12, %c0_13], %21 {strides = array<i32>} : memref<2x256xf32, #tpu.memory_space<vmem>>, vector<2x256xf32>,
    } else {
    }
    %c0 = arith.constant 0 : index
    %c0_1 = arith.constant 0 : index
    %c0_2 = arith.constant 0 : index
    %3 = vector.load %arg3[%c0, %c0_1, %c0_2] : memref<1x4x256xf32, #tpu.memory_space<vmem>>, vector<1x4x256xf32>
    %4 = vector.shape_cast %3 : vector<1x4x256xf32> to vector<4x256xf32>
    %c0_3 = arith.constant 0 : index
    %c0_4 = arith.constant 0 : index
    %5 = vector.load %arg5[%c0_3, %c0_4] : memref<2x256xf32, #tpu.memory_space<vmem>>, vector<2x256xf32>
    %6 = vector.extract_strided_slice %5 {offsets = [0, 0], sizes = [1, 256], strides = [1, 1]} : vector<2x256xf32> to vector<1x256xf32>
    %cst = arith.constant dense<0.000000e+00> : vector<256xf32>
    %7 = vector.multi_reduction <add>, %4, %cst [0] : vector<4x256xf32> to vector<256xf32>
    %8 = vector.shape_cast %7 : vector<256xf32> to vector<1x256xf32>
    %9 = arith.addf %6, %8 : vector<1x256xf32>
    %10 = vector.extract_strided_slice %5 {offsets = [1, 0], sizes = [1, 256], strides = [1, 1]} : vector<2x256xf32> to vector<1x256xf32>
    %cst_5 = arith.constant dense<0xFF800000> : vector<256xf32>
    %11 = vector.multi_reduction <maximumf>, %4, %cst_5 [0] : vector<4x256xf32> to vector<256xf32>
    %12 = vector.shape_cast %11 : vector<256xf32> to vector<1x256xf32>
    %13 = arith.maximumf %10, %12 : vector<1x256xf32>
    %14 = tpu.concatenate %9, %13 in 0 : vector<1x256xf32>, vector<1x256xf32> -> vector<2x256xf32>
    %c0_6 = arith.constant 0 : index
    %c0_7 = arith.constant 0 : index
    %15 = vector.load %arg5[%c0_6, %c0_7] : memref<2x256xf32, #tpu.memory_space<vmem>>, vector<2x256xf32>
    tpu.vector_store %arg5[%c0_6, %c0_7], %14 {strides = array<i32>} : memref<2x256xf32, #tpu.memory_space<vmem>>, vector<2x256xf32>,
    %c0_i32_8 = arith.constant 0 : i32
    %16 = arith.cmpi eq, %arg2, %c0_i32_8 : i32
    %17 = arith.extui %16 : i1 to i32
    %c0_i32_9 = arith.constant 0 : i32
    %18 = arith.cmpi ne, %17, %c0_i32_9 : i32
    scf.if %18 {
      %c0_10 = arith.constant 0 : index
      %c0_11 = arith.constant 0 : index
      %19 = vector.load %arg5[%c0_10, %c0_11] : memref<2x256xf32, #tpu.memory_space<vmem>>, vector<2x256xf32>
      %20 = vector.extract_strided_slice %19 {offsets = [0, 0], sizes = [1, 256], strides = [1, 1]} : vector<2x256xf32> to vector<1x256xf32>
      %cst_12 = arith.constant 2.500000e-01 : f32
      %21 = vector.broadcast %cst_12 : f32 to vector<1x256xf32>
      %22 = arith.mulf %20, %21 : vector<1x256xf32>
      %23 = vector.extract_strided_slice %19 {offsets = [1, 0], sizes = [1, 256], strides = [1, 1]} : vector<2x256xf32> to vector<1x256xf32>
      %24 = tpu.concatenate %22, %23 in 0 : vector<1x256xf32>, vector<1x256xf32> -> vector<2x256xf32>
      %25 = vector.shape_cast %24 : vector<2x256xf32> to vector<1x2x256xf32>
      %c0_13 = arith.constant 0 : index
      %c0_14 = arith.constant 0 : index
      %c0_15 = arith.constant 0 : index
      %26 = vector.load %arg4[%c0_13, %c0_14, %c0_15] : memref<1x2x256xf32, #tpu.memory_space<vmem>>, vector<1x2x256xf32>
      tpu.vector_store %arg4[%c0_13, %c0_14, %c0_15], %25 {strides = array<i32>} : memref<1x2x256xf32, #tpu.memory_space<vmem>>, vector<1x2x256xf32>,
    } else {
    }
    return
  }
  func.func @transform_0(%arg0: i32, %arg1: i32, %arg2: i32) -> (i32, i32, i32) {
    %c0_i32 = arith.constant 0 : i32
    return %arg0, %arg2, %arg1 : i32, i32, i32
  }
  func.func @transform_1(%arg0: i32, %arg1: i32, %arg2: i32) -> (i32, i32, i32) {
    %c0_i32 = arith.constant 0 : i32
    %c0_i32_0 = arith.constant 0 : i32
    return %arg0, %c0_i32, %arg1 : i32, i32, i32
  }
}

module attributes {stable_mosaic.version = 11 : i64} {
  func.func @_conv_sigmoid_kernel(%arg0: i32, %arg1: memref<98xf32, #tpu.memory_space<smem>>, %arg2: memref<1x2x16x16xf32, #tpu.memory_space<vmem>>, %arg3: memref<1x16x16xf32, #tpu.memory_space<vmem>>, %arg4: memref<2x22x22xf32, #tpu.memory_space<vmem>>) attributes {dimension_semantics = [#tpu.dimension_semantics<parallel>], iteration_bounds = array<i64: 2>, scalar_prefetch = 0 : i64, scratch_operands = 1 : i64, tpu.core_type = #tpu.core_type<tc>, window_params = [{transform_indices = @transform_0, window_bounds = array<i64: 98>}, {transform_indices = @transform_1, window_bounds = array<i64: 1, 2, 16, 16>}, {transform_indices = @transform_2, window_bounds = array<i64: 1, 16, 16>}]} {
    %cst = arith.constant 0.000000e+00 : f32
    %0 = vector.broadcast %cst : f32 to vector<2x22x22xf32>
    %c0 = arith.constant 0 : index
    %c0_0 = arith.constant 0 : index
    %c0_1 = arith.constant 0 : index
    %1 = vector.load %arg4[%c0, %c0_0, %c0_1] : memref<2x22x22xf32, #tpu.memory_space<vmem>>, vector<2x22x22xf32>
    tpu.vector_store %arg4[%c0, %c0_0, %c0_1], %0 {strides = array<i32>} : memref<2x22x22xf32, #tpu.memory_space<vmem>>, vector<2x22x22xf32>,
    %c0_2 = arith.constant 0 : index
    %c0_3 = arith.constant 0 : index
    %c0_4 = arith.constant 0 : index
    %c0_5 = arith.constant 0 : index
    %2 = vector.load %arg2[%c0_2, %c0_3, %c0_4, %c0_5] : memref<1x2x16x16xf32, #tpu.memory_space<vmem>>, vector<1x1x16x16xf32>
    %3 = vector.shape_cast %2 : vector<1x1x16x16xf32> to vector<16x16xf32>
    %c0_6 = arith.constant 0 : index
    %c3 = arith.constant 3 : index
    %c3_7 = arith.constant 3 : index
    %4 = vector.load %arg4[%c0_6, %c3, %c3_7] : memref<2x22x22xf32, #tpu.memory_space<vmem>>, vector<1x16x16xf32>
    %5 = vector.shape_cast %4 : vector<1x16x16xf32> to vector<16x16xf32>
    %6 = vector.shape_cast %3 : vector<16x16xf32> to vector<1x16x16xf32>
    tpu.vector_store %arg4[%c0_6, %c3, %c3_7], %6 {strides = array<i32>} : memref<2x22x22xf32, #tpu.memory_space<vmem>>, vector<1x16x16xf32>,
    %c0_8 = arith.constant 0 : index
    %c1 = arith.constant 1 : index
    %c0_9 = arith.constant 0 : index
    %c0_10 = arith.constant 0 : index
    %7 = vector.load %arg2[%c0_8, %c1, %c0_9, %c0_10] : memref<1x2x16x16xf32, #tpu.memory_space<vmem>>, vector<1x1x16x16xf32>
    %8 = vector.shape_cast %7 : vector<1x1x16x16xf32> to vector<16x16xf32>
    %c1_11 = arith.constant 1 : index
    %c3_12 = arith.constant 3 : index
    %c3_13 = arith.constant 3 : index
    %9 = vector.load %arg4[%c1_11, %c3_12, %c3_13] : memref<2x22x22xf32, #tpu.memory_space<vmem>>, vector<1x16x16xf32>
    %10 = vector.shape_cast %9 : vector<1x16x16xf32> to vector<16x16xf32>
    %11 = vector.shape_cast %8 : vector<16x16xf32> to vector<1x16x16xf32>
    tpu.vector_store %arg4[%c1_11, %c3_12, %c3_13], %11 {strides = array<i32>} : memref<2x22x22xf32, #tpu.memory_space<vmem>>, vector<1x16x16xf32>,
    %cst_14 = arith.constant 0.000000e+00 : f32
    %12 = vector.broadcast %cst_14 : f32 to vector<16x16xf32>
    %c0_15 = arith.constant 0 : index
    %c0_16 = arith.constant 0 : index
    %c0_17 = arith.constant 0 : index
    %13 = vector.load %arg4[%c0_15, %c0_16, %c0_17] : memref<2x22x22xf32, #tpu.memory_space<vmem>>, vector<1x22x16xf32>
    %14 = vector.shape_cast %13 : vector<1x22x16xf32> to vector<22x16xf32>
    %c0_18 = arith.constant 0 : index
    %15 = memref.load %arg1[%c0_18] : memref<98xf32, #tpu.memory_space<smem>>
    %16 = vector.extract_strided_slice %14 {offsets = [0, 0], sizes = [16, 16], strides = [1, 1]} : vector<22x16xf32> to vector<16x16xf32>
    %17 = vector.broadcast %15 : f32 to vector<16x16xf32>
    %18 = arith.mulf %17, %16 : vector<16x16xf32>
    %19 = arith.addf %12, %18 : vector<16x16xf32>
    %c7 = arith.constant 7 : index
    %20 = memref.load %arg1[%c7] : memref<98xf32, #tpu.memory_space<smem>>
    %21 = vector.extract_strided_slice %14 {offsets = [1, 0], sizes = [16, 16], strides = [1, 1]} : vector<22x16xf32> to vector<16x16xf32>
    %22 = vector.broadcast %20 : f32 to vector<16x16xf32>
    %23 = arith.mulf %22, %21 : vector<16x16xf32>
    %24 = arith.addf %19, %23 : vector<16x16xf32>
    %c14 = arith.constant 14 : index
    %25 = memref.load %arg1[%c14] : memref<98xf32, #tpu.memory_space<smem>>
    %26 = vector.extract_strided_slice %14 {offsets = [2, 0], sizes = [16, 16], strides = [1, 1]} : vector<22x16xf32> to vector<16x16xf32>
    %27 = vector.broadcast %25 : f32 to vector<16x16xf32>
    %28 = arith.mulf %27, %26 : vector<16x16xf32>
    %29 = arith.addf %24, %28 : vector<16x16xf32>
    %c21 = arith.constant 21 : index
    %30 = memref.load %arg1[%c21] : memref<98xf32, #tpu.memory_space<smem>>
    %31 = vector.extract_strided_slice %14 {offsets = [3, 0], sizes = [16, 16], strides = [1, 1]} : vector<22x16xf32> to vector<16x16xf32>
    %32 = vector.broadcast %30 : f32 to vector<16x16xf32>
    %33 = arith.mulf %32, %31 : vector<16x16xf32>
    %34 = arith.addf %29, %33 : vector<16x16xf32>
    %c28 = arith.constant 28 : index
    %35 = memref.load %arg1[%c28] : memref<98xf32, #tpu.memory_space<smem>>
    %36 = vector.extract_strided_slice %14 {offsets = [4, 0], sizes = [16, 16], strides = [1, 1]} : vector<22x16xf32> to vector<16x16xf32>
    %37 = vector.broadcast %35 : f32 to vector<16x16xf32>
    %38 = arith.mulf %37, %36 : vector<16x16xf32>
    %39 = arith.addf %34, %38 : vector<16x16xf32>
    %c35 = arith.constant 35 : index
    %40 = memref.load %arg1[%c35] : memref<98xf32, #tpu.memory_space<smem>>
    %41 = vector.extract_strided_slice %14 {offsets = [5, 0], sizes = [16, 16], strides = [1, 1]} : vector<22x16xf32> to vector<16x16xf32>
    %42 = vector.broadcast %40 : f32 to vector<16x16xf32>
    %43 = arith.mulf %42, %41 : vector<16x16xf32>
    %44 = arith.addf %39, %43 : vector<16x16xf32>
    %c42 = arith.constant 42 : index
    %45 = memref.load %arg1[%c42] : memref<98xf32, #tpu.memory_space<smem>>
    %46 = vector.extract_strided_slice %14 {offsets = [6, 0], sizes = [16, 16], strides = [1, 1]} : vector<22x16xf32> to vector<16x16xf32>
    %47 = vector.broadcast %45 : f32 to vector<16x16xf32>
    %48 = arith.mulf %47, %46 : vector<16x16xf32>
    %49 = arith.addf %44, %48 : vector<16x16xf32>
    %c0_19 = arith.constant 0 : index
    %c0_20 = arith.constant 0 : index
    %c1_21 = arith.constant 1 : index
    %50 = vector.load %arg4[%c0_19, %c0_20, %c1_21] : memref<2x22x22xf32, #tpu.memory_space<vmem>>, vector<1x22x16xf32>
    %51 = vector.shape_cast %50 : vector<1x22x16xf32> to vector<22x16xf32>
    %c1_22 = arith.constant 1 : index
    %52 = memref.load %arg1[%c1_22] : memref<98xf32, #tpu.memory_space<smem>>
    %53 = vector.extract_strided_slice %51 {offsets = [0, 0], sizes = [16, 16], strides = [1, 1]} : vector<22x16xf32> to vector<16x16xf32>
    %54 = vector.broadcast %52 : f32 to vector<16x16xf32>
    %55 = arith.mulf %54, %53 : vector<16x16xf32>
    %56 = arith.addf %49, %55 : vector<16x16xf32>
    %c8 = arith.constant 8 : index
    %57 = memref.load %arg1[%c8] : memref<98xf32, #tpu.memory_space<smem>>
    %58 = vector.extract_strided_slice %51 {offsets = [1, 0], sizes = [16, 16], strides = [1, 1]} : vector<22x16xf32> to vector<16x16xf32>
    %59 = vector.broadcast %57 : f32 to vector<16x16xf32>
    %60 = arith.mulf %59, %58 : vector<16x16xf32>
    %61 = arith.addf %56, %60 : vector<16x16xf32>
    %c15 = arith.constant 15 : index
    %62 = memref.load %arg1[%c15] : memref<98xf32, #tpu.memory_space<smem>>
    %63 = vector.extract_strided_slice %51 {offsets = [2, 0], sizes = [16, 16], strides = [1, 1]} : vector<22x16xf32> to vector<16x16xf32>
    %64 = vector.broadcast %62 : f32 to vector<16x16xf32>
    %65 = arith.mulf %64, %63 : vector<16x16xf32>
    %66 = arith.addf %61, %65 : vector<16x16xf32>
    %c22 = arith.constant 22 : index
    %67 = memref.load %arg1[%c22] : memref<98xf32, #tpu.memory_space<smem>>
    %68 = vector.extract_strided_slice %51 {offsets = [3, 0], sizes = [16, 16], strides = [1, 1]} : vector<22x16xf32> to vector<16x16xf32>
    %69 = vector.broadcast %67 : f32 to vector<16x16xf32>
    %70 = arith.mulf %69, %68 : vector<16x16xf32>
    %71 = arith.addf %66, %70 : vector<16x16xf32>
    %c29 = arith.constant 29 : index
    %72 = memref.load %arg1[%c29] : memref<98xf32, #tpu.memory_space<smem>>
    %73 = vector.extract_strided_slice %51 {offsets = [4, 0], sizes = [16, 16], strides = [1, 1]} : vector<22x16xf32> to vector<16x16xf32>
    %74 = vector.broadcast %72 : f32 to vector<16x16xf32>
    %75 = arith.mulf %74, %73 : vector<16x16xf32>
    %76 = arith.addf %71, %75 : vector<16x16xf32>
    %c36 = arith.constant 36 : index
    %77 = memref.load %arg1[%c36] : memref<98xf32, #tpu.memory_space<smem>>
    %78 = vector.extract_strided_slice %51 {offsets = [5, 0], sizes = [16, 16], strides = [1, 1]} : vector<22x16xf32> to vector<16x16xf32>
    %79 = vector.broadcast %77 : f32 to vector<16x16xf32>
    %80 = arith.mulf %79, %78 : vector<16x16xf32>
    %81 = arith.addf %76, %80 : vector<16x16xf32>
    %c43 = arith.constant 43 : index
    %82 = memref.load %arg1[%c43] : memref<98xf32, #tpu.memory_space<smem>>
    %83 = vector.extract_strided_slice %51 {offsets = [6, 0], sizes = [16, 16], strides = [1, 1]} : vector<22x16xf32> to vector<16x16xf32>
    %84 = vector.broadcast %82 : f32 to vector<16x16xf32>
    %85 = arith.mulf %84, %83 : vector<16x16xf32>
    %86 = arith.addf %81, %85 : vector<16x16xf32>
    %c0_23 = arith.constant 0 : index
    %c0_24 = arith.constant 0 : index
    %c2 = arith.constant 2 : index
    %87 = vector.load %arg4[%c0_23, %c0_24, %c2] : memref<2x22x22xf32, #tpu.memory_space<vmem>>, vector<1x22x16xf32>
    %88 = vector.shape_cast %87 : vector<1x22x16xf32> to vector<22x16xf32>
    %c2_25 = arith.constant 2 : index
    %89 = memref.load %arg1[%c2_25] : memref<98xf32, #tpu.memory_space<smem>>
    %90 = vector.extract_strided_slice %88 {offsets = [0, 0], sizes = [16, 16], strides = [1, 1]} : vector<22x16xf32> to vector<16x16xf32>
    %91 = vector.broadcast %89 : f32 to vector<16x16xf32>
    %92 = arith.mulf %91, %90 : vector<16x16xf32>
    %93 = arith.addf %86, %92 : vector<16x16xf32>
    %c9 = arith.constant 9 : index
    %94 = memref.load %arg1[%c9] : memref<98xf32, #tpu.memory_space<smem>>
    %95 = vector.extract_strided_slice %88 {offsets = [1, 0], sizes = [16, 16], strides = [1, 1]} : vector<22x16xf32> to vector<16x16xf32>
    %96 = vector.broadcast %94 : f32 to vector<16x16xf32>
    %97 = arith.mulf %96, %95 : vector<16x16xf32>
    %98 = arith.addf %93, %97 : vector<16x16xf32>
    %c16 = arith.constant 16 : index
    %99 = memref.load %arg1[%c16] : memref<98xf32, #tpu.memory_space<smem>>
    %100 = vector.extract_strided_slice %88 {offsets = [2, 0], sizes = [16, 16], strides = [1, 1]} : vector<22x16xf32> to vector<16x16xf32>
    %101 = vector.broadcast %99 : f32 to vector<16x16xf32>
    %102 = arith.mulf %101, %100 : vector<16x16xf32>
    %103 = arith.addf %98, %102 : vector<16x16xf32>
    %c23 = arith.constant 23 : index
    %104 = memref.load %arg1[%c23] : memref<98xf32, #tpu.memory_space<smem>>
    %105 = vector.extract_strided_slice %88 {offsets = [3, 0], sizes = [16, 16], strides = [1, 1]} : vector<22x16xf32> to vector<16x16xf32>
    %106 = vector.broadcast %104 : f32 to vector<16x16xf32>
    %107 = arith.mulf %106, %105 : vector<16x16xf32>
    %108 = arith.addf %103, %107 : vector<16x16xf32>
    %c30 = arith.constant 30 : index
    %109 = memref.load %arg1[%c30] : memref<98xf32, #tpu.memory_space<smem>>
    %110 = vector.extract_strided_slice %88 {offsets = [4, 0], sizes = [16, 16], strides = [1, 1]} : vector<22x16xf32> to vector<16x16xf32>
    %111 = vector.broadcast %109 : f32 to vector<16x16xf32>
    %112 = arith.mulf %111, %110 : vector<16x16xf32>
    %113 = arith.addf %108, %112 : vector<16x16xf32>
    %c37 = arith.constant 37 : index
    %114 = memref.load %arg1[%c37] : memref<98xf32, #tpu.memory_space<smem>>
    %115 = vector.extract_strided_slice %88 {offsets = [5, 0], sizes = [16, 16], strides = [1, 1]} : vector<22x16xf32> to vector<16x16xf32>
    %116 = vector.broadcast %114 : f32 to vector<16x16xf32>
    %117 = arith.mulf %116, %115 : vector<16x16xf32>
    %118 = arith.addf %113, %117 : vector<16x16xf32>
    %c44 = arith.constant 44 : index
    %119 = memref.load %arg1[%c44] : memref<98xf32, #tpu.memory_space<smem>>
    %120 = vector.extract_strided_slice %88 {offsets = [6, 0], sizes = [16, 16], strides = [1, 1]} : vector<22x16xf32> to vector<16x16xf32>
    %121 = vector.broadcast %119 : f32 to vector<16x16xf32>
    %122 = arith.mulf %121, %120 : vector<16x16xf32>
    %123 = arith.addf %118, %122 : vector<16x16xf32>
    %c0_26 = arith.constant 0 : index
    %c0_27 = arith.constant 0 : index
    %c3_28 = arith.constant 3 : index
    %124 = vector.load %arg4[%c0_26, %c0_27, %c3_28] : memref<2x22x22xf32, #tpu.memory_space<vmem>>, vector<1x22x16xf32>
    %125 = vector.shape_cast %124 : vector<1x22x16xf32> to vector<22x16xf32>
    %c3_29 = arith.constant 3 : index
    %126 = memref.load %arg1[%c3_29] : memref<98xf32, #tpu.memory_space<smem>>
    %127 = vector.extract_strided_slice %125 {offsets = [0, 0], sizes = [16, 16], strides = [1, 1]} : vector<22x16xf32> to vector<16x16xf32>
    %128 = vector.broadcast %126 : f32 to vector<16x16xf32>
    %129 = arith.mulf %128, %127 : vector<16x16xf32>
    %130 = arith.addf %123, %129 : vector<16x16xf32>
    %c10 = arith.constant 10 : index
    %131 = memref.load %arg1[%c10] : memref<98xf32, #tpu.memory_space<smem>>
    %132 = vector.extract_strided_slice %125 {offsets = [1, 0], sizes = [16, 16], strides = [1, 1]} : vector<22x16xf32> to vector<16x16xf32>
    %133 = vector.broadcast %131 : f32 to vector<16x16xf32>
    %134 = arith.mulf %133, %132 : vector<16x16xf32>
    %135 = arith.addf %130, %134 : vector<16x16xf32>
    %c17 = arith.constant 17 : index
    %136 = memref.load %arg1[%c17] : memref<98xf32, #tpu.memory_space<smem>>
    %137 = vector.extract_strided_slice %125 {offsets = [2, 0], sizes = [16, 16], strides = [1, 1]} : vector<22x16xf32> to vector<16x16xf32>
    %138 = vector.broadcast %136 : f32 to vector<16x16xf32>
    %139 = arith.mulf %138, %137 : vector<16x16xf32>
    %140 = arith.addf %135, %139 : vector<16x16xf32>
    %c24 = arith.constant 24 : index
    %141 = memref.load %arg1[%c24] : memref<98xf32, #tpu.memory_space<smem>>
    %142 = vector.extract_strided_slice %125 {offsets = [3, 0], sizes = [16, 16], strides = [1, 1]} : vector<22x16xf32> to vector<16x16xf32>
    %143 = vector.broadcast %141 : f32 to vector<16x16xf32>
    %144 = arith.mulf %143, %142 : vector<16x16xf32>
    %145 = arith.addf %140, %144 : vector<16x16xf32>
    %c31 = arith.constant 31 : index
    %146 = memref.load %arg1[%c31] : memref<98xf32, #tpu.memory_space<smem>>
    %147 = vector.extract_strided_slice %125 {offsets = [4, 0], sizes = [16, 16], strides = [1, 1]} : vector<22x16xf32> to vector<16x16xf32>
    %148 = vector.broadcast %146 : f32 to vector<16x16xf32>
    %149 = arith.mulf %148, %147 : vector<16x16xf32>
    %150 = arith.addf %145, %149 : vector<16x16xf32>
    %c38 = arith.constant 38 : index
    %151 = memref.load %arg1[%c38] : memref<98xf32, #tpu.memory_space<smem>>
    %152 = vector.extract_strided_slice %125 {offsets = [5, 0], sizes = [16, 16], strides = [1, 1]} : vector<22x16xf32> to vector<16x16xf32>
    %153 = vector.broadcast %151 : f32 to vector<16x16xf32>
    %154 = arith.mulf %153, %152 : vector<16x16xf32>
    %155 = arith.addf %150, %154 : vector<16x16xf32>
    %c45 = arith.constant 45 : index
    %156 = memref.load %arg1[%c45] : memref<98xf32, #tpu.memory_space<smem>>
    %157 = vector.extract_strided_slice %125 {offsets = [6, 0], sizes = [16, 16], strides = [1, 1]} : vector<22x16xf32> to vector<16x16xf32>
    %158 = vector.broadcast %156 : f32 to vector<16x16xf32>
    %159 = arith.mulf %158, %157 : vector<16x16xf32>
    %160 = arith.addf %155, %159 : vector<16x16xf32>
    %c0_30 = arith.constant 0 : index
    %c0_31 = arith.constant 0 : index
    %c4 = arith.constant 4 : index
    %161 = vector.load %arg4[%c0_30, %c0_31, %c4] : memref<2x22x22xf32, #tpu.memory_space<vmem>>, vector<1x22x16xf32>
    %162 = vector.shape_cast %161 : vector<1x22x16xf32> to vector<22x16xf32>
    %c4_32 = arith.constant 4 : index
    %163 = memref.load %arg1[%c4_32] : memref<98xf32, #tpu.memory_space<smem>>
    %164 = vector.extract_strided_slice %162 {offsets = [0, 0], sizes = [16, 16], strides = [1, 1]} : vector<22x16xf32> to vector<16x16xf32>
    %165 = vector.broadcast %163 : f32 to vector<16x16xf32>
    %166 = arith.mulf %165, %164 : vector<16x16xf32>
    %167 = arith.addf %160, %166 : vector<16x16xf32>
    %c11 = arith.constant 11 : index
    %168 = memref.load %arg1[%c11] : memref<98xf32, #tpu.memory_space<smem>>
    %169 = vector.extract_strided_slice %162 {offsets = [1, 0], sizes = [16, 16], strides = [1, 1]} : vector<22x16xf32> to vector<16x16xf32>
    %170 = vector.broadcast %168 : f32 to vector<16x16xf32>
    %171 = arith.mulf %170, %169 : vector<16x16xf32>
    %172 = arith.addf %167, %171 : vector<16x16xf32>
    %c18 = arith.constant 18 : index
    %173 = memref.load %arg1[%c18] : memref<98xf32, #tpu.memory_space<smem>>
    %174 = vector.extract_strided_slice %162 {offsets = [2, 0], sizes = [16, 16], strides = [1, 1]} : vector<22x16xf32> to vector<16x16xf32>
    %175 = vector.broadcast %173 : f32 to vector<16x16xf32>
    %176 = arith.mulf %175, %174 : vector<16x16xf32>
    %177 = arith.addf %172, %176 : vector<16x16xf32>
    %c25 = arith.constant 25 : index
    %178 = memref.load %arg1[%c25] : memref<98xf32, #tpu.memory_space<smem>>
    %179 = vector.extract_strided_slice %162 {offsets = [3, 0], sizes = [16, 16], strides = [1, 1]} : vector<22x16xf32> to vector<16x16xf32>
    %180 = vector.broadcast %178 : f32 to vector<16x16xf32>
    %181 = arith.mulf %180, %179 : vector<16x16xf32>
    %182 = arith.addf %177, %181 : vector<16x16xf32>
    %c32 = arith.constant 32 : index
    %183 = memref.load %arg1[%c32] : memref<98xf32, #tpu.memory_space<smem>>
    %184 = vector.extract_strided_slice %162 {offsets = [4, 0], sizes = [16, 16], strides = [1, 1]} : vector<22x16xf32> to vector<16x16xf32>
    %185 = vector.broadcast %183 : f32 to vector<16x16xf32>
    %186 = arith.mulf %185, %184 : vector<16x16xf32>
    %187 = arith.addf %182, %186 : vector<16x16xf32>
    %c39 = arith.constant 39 : index
    %188 = memref.load %arg1[%c39] : memref<98xf32, #tpu.memory_space<smem>>
    %189 = vector.extract_strided_slice %162 {offsets = [5, 0], sizes = [16, 16], strides = [1, 1]} : vector<22x16xf32> to vector<16x16xf32>
    %190 = vector.broadcast %188 : f32 to vector<16x16xf32>
    %191 = arith.mulf %190, %189 : vector<16x16xf32>
    %192 = arith.addf %187, %191 : vector<16x16xf32>
    %c46 = arith.constant 46 : index
    %193 = memref.load %arg1[%c46] : memref<98xf32, #tpu.memory_space<smem>>
    %194 = vector.extract_strided_slice %162 {offsets = [6, 0], sizes = [16, 16], strides = [1, 1]} : vector<22x16xf32> to vector<16x16xf32>
    %195 = vector.broadcast %193 : f32 to vector<16x16xf32>
    %196 = arith.mulf %195, %194 : vector<16x16xf32>
    %197 = arith.addf %192, %196 : vector<16x16xf32>
    %c0_33 = arith.constant 0 : index
    %c0_34 = arith.constant 0 : index
    %c5 = arith.constant 5 : index
    %198 = vector.load %arg4[%c0_33, %c0_34, %c5] : memref<2x22x22xf32, #tpu.memory_space<vmem>>, vector<1x22x16xf32>
    %199 = vector.shape_cast %198 : vector<1x22x16xf32> to vector<22x16xf32>
    %c5_35 = arith.constant 5 : index
    %200 = memref.load %arg1[%c5_35] : memref<98xf32, #tpu.memory_space<smem>>
    %201 = vector.extract_strided_slice %199 {offsets = [0, 0], sizes = [16, 16], strides = [1, 1]} : vector<22x16xf32> to vector<16x16xf32>
    %202 = vector.broadcast %200 : f32 to vector<16x16xf32>
    %203 = arith.mulf %202, %201 : vector<16x16xf32>
    %204 = arith.addf %197, %203 : vector<16x16xf32>
    %c12 = arith.constant 12 : index
    %205 = memref.load %arg1[%c12] : memref<98xf32, #tpu.memory_space<smem>>
    %206 = vector.extract_strided_slice %199 {offsets = [1, 0], sizes = [16, 16], strides = [1, 1]} : vector<22x16xf32> to vector<16x16xf32>
    %207 = vector.broadcast %205 : f32 to vector<16x16xf32>
    %208 = arith.mulf %207, %206 : vector<16x16xf32>
    %209 = arith.addf %204, %208 : vector<16x16xf32>
    %c19 = arith.constant 19 : index
    %210 = memref.load %arg1[%c19] : memref<98xf32, #tpu.memory_space<smem>>
    %211 = vector.extract_strided_slice %199 {offsets = [2, 0], sizes = [16, 16], strides = [1, 1]} : vector<22x16xf32> to vector<16x16xf32>
    %212 = vector.broadcast %210 : f32 to vector<16x16xf32>
    %213 = arith.mulf %212, %211 : vector<16x16xf32>
    %214 = arith.addf %209, %213 : vector<16x16xf32>
    %c26 = arith.constant 26 : index
    %215 = memref.load %arg1[%c26] : memref<98xf32, #tpu.memory_space<smem>>
    %216 = vector.extract_strided_slice %199 {offsets = [3, 0], sizes = [16, 16], strides = [1, 1]} : vector<22x16xf32> to vector<16x16xf32>
    %217 = vector.broadcast %215 : f32 to vector<16x16xf32>
    %218 = arith.mulf %217, %216 : vector<16x16xf32>
    %219 = arith.addf %214, %218 : vector<16x16xf32>
    %c33 = arith.constant 33 : index
    %220 = memref.load %arg1[%c33] : memref<98xf32, #tpu.memory_space<smem>>
    %221 = vector.extract_strided_slice %199 {offsets = [4, 0], sizes = [16, 16], strides = [1, 1]} : vector<22x16xf32> to vector<16x16xf32>
    %222 = vector.broadcast %220 : f32 to vector<16x16xf32>
    %223 = arith.mulf %222, %221 : vector<16x16xf32>
    %224 = arith.addf %219, %223 : vector<16x16xf32>
    %c40 = arith.constant 40 : index
    %225 = memref.load %arg1[%c40] : memref<98xf32, #tpu.memory_space<smem>>
    %226 = vector.extract_strided_slice %199 {offsets = [5, 0], sizes = [16, 16], strides = [1, 1]} : vector<22x16xf32> to vector<16x16xf32>
    %227 = vector.broadcast %225 : f32 to vector<16x16xf32>
    %228 = arith.mulf %227, %226 : vector<16x16xf32>
    %229 = arith.addf %224, %228 : vector<16x16xf32>
    %c47 = arith.constant 47 : index
    %230 = memref.load %arg1[%c47] : memref<98xf32, #tpu.memory_space<smem>>
    %231 = vector.extract_strided_slice %199 {offsets = [6, 0], sizes = [16, 16], strides = [1, 1]} : vector<22x16xf32> to vector<16x16xf32>
    %232 = vector.broadcast %230 : f32 to vector<16x16xf32>
    %233 = arith.mulf %232, %231 : vector<16x16xf32>
    %234 = arith.addf %229, %233 : vector<16x16xf32>
    %c0_36 = arith.constant 0 : index
    %c0_37 = arith.constant 0 : index
    %c6 = arith.constant 6 : index
    %235 = vector.load %arg4[%c0_36, %c0_37, %c6] : memref<2x22x22xf32, #tpu.memory_space<vmem>>, vector<1x22x16xf32>
    %236 = vector.shape_cast %235 : vector<1x22x16xf32> to vector<22x16xf32>
    %c6_38 = arith.constant 6 : index
    %237 = memref.load %arg1[%c6_38] : memref<98xf32, #tpu.memory_space<smem>>
    %238 = vector.extract_strided_slice %236 {offsets = [0, 0], sizes = [16, 16], strides = [1, 1]} : vector<22x16xf32> to vector<16x16xf32>
    %239 = vector.broadcast %237 : f32 to vector<16x16xf32>
    %240 = arith.mulf %239, %238 : vector<16x16xf32>
    %241 = arith.addf %234, %240 : vector<16x16xf32>
    %c13 = arith.constant 13 : index
    %242 = memref.load %arg1[%c13] : memref<98xf32, #tpu.memory_space<smem>>
    %243 = vector.extract_strided_slice %236 {offsets = [1, 0], sizes = [16, 16], strides = [1, 1]} : vector<22x16xf32> to vector<16x16xf32>
    %244 = vector.broadcast %242 : f32 to vector<16x16xf32>
    %245 = arith.mulf %244, %243 : vector<16x16xf32>
    %246 = arith.addf %241, %245 : vector<16x16xf32>
    %c20 = arith.constant 20 : index
    %247 = memref.load %arg1[%c20] : memref<98xf32, #tpu.memory_space<smem>>
    %248 = vector.extract_strided_slice %236 {offsets = [2, 0], sizes = [16, 16], strides = [1, 1]} : vector<22x16xf32> to vector<16x16xf32>
    %249 = vector.broadcast %247 : f32 to vector<16x16xf32>
    %250 = arith.mulf %249, %248 : vector<16x16xf32>
    %251 = arith.addf %246, %250 : vector<16x16xf32>
    %c27 = arith.constant 27 : index
    %252 = memref.load %arg1[%c27] : memref<98xf32, #tpu.memory_space<smem>>
    %253 = vector.extract_strided_slice %236 {offsets = [3, 0], sizes = [16, 16], strides = [1, 1]} : vector<22x16xf32> to vector<16x16xf32>
    %254 = vector.broadcast %252 : f32 to vector<16x16xf32>
    %255 = arith.mulf %254, %253 : vector<16x16xf32>
    %256 = arith.addf %251, %255 : vector<16x16xf32>
    %c34 = arith.constant 34 : index
    %257 = memref.load %arg1[%c34] : memref<98xf32, #tpu.memory_space<smem>>
    %258 = vector.extract_strided_slice %236 {offsets = [4, 0], sizes = [16, 16], strides = [1, 1]} : vector<22x16xf32> to vector<16x16xf32>
    %259 = vector.broadcast %257 : f32 to vector<16x16xf32>
    %260 = arith.mulf %259, %258 : vector<16x16xf32>
    %261 = arith.addf %256, %260 : vector<16x16xf32>
    %c41 = arith.constant 41 : index
    %262 = memref.load %arg1[%c41] : memref<98xf32, #tpu.memory_space<smem>>
    %263 = vector.extract_strided_slice %236 {offsets = [5, 0], sizes = [16, 16], strides = [1, 1]} : vector<22x16xf32> to vector<16x16xf32>
    %264 = vector.broadcast %262 : f32 to vector<16x16xf32>
    %265 = arith.mulf %264, %263 : vector<16x16xf32>
    %266 = arith.addf %261, %265 : vector<16x16xf32>
    %c48 = arith.constant 48 : index
    %267 = memref.load %arg1[%c48] : memref<98xf32, #tpu.memory_space<smem>>
    %268 = vector.extract_strided_slice %236 {offsets = [6, 0], sizes = [16, 16], strides = [1, 1]} : vector<22x16xf32> to vector<16x16xf32>
    %269 = vector.broadcast %267 : f32 to vector<16x16xf32>
    %270 = arith.mulf %269, %268 : vector<16x16xf32>
    %271 = arith.addf %266, %270 : vector<16x16xf32>
    %c1_39 = arith.constant 1 : index
    %c0_40 = arith.constant 0 : index
    %c0_41 = arith.constant 0 : index
    %272 = vector.load %arg4[%c1_39, %c0_40, %c0_41] : memref<2x22x22xf32, #tpu.memory_space<vmem>>, vector<1x22x16xf32>
    %273 = vector.shape_cast %272 : vector<1x22x16xf32> to vector<22x16xf32>
    %c49 = arith.constant 49 : index
    %274 = memref.load %arg1[%c49] : memref<98xf32, #tpu.memory_space<smem>>
    %275 = vector.extract_strided_slice %273 {offsets = [0, 0], sizes = [16, 16], strides = [1, 1]} : vector<22x16xf32> to vector<16x16xf32>
    %276 = vector.broadcast %274 : f32 to vector<16x16xf32>
    %277 = arith.mulf %276, %275 : vector<16x16xf32>
    %278 = arith.addf %271, %277 : vector<16x16xf32>
    %c56 = arith.constant 56 : index
    %279 = memref.load %arg1[%c56] : memref<98xf32, #tpu.memory_space<smem>>
    %280 = vector.extract_strided_slice %273 {offsets = [1, 0], sizes = [16, 16], strides = [1, 1]} : vector<22x16xf32> to vector<16x16xf32>
    %281 = vector.broadcast %279 : f32 to vector<16x16xf32>
    %282 = arith.mulf %281, %280 : vector<16x16xf32>
    %283 = arith.addf %278, %282 : vector<16x16xf32>
    %c63 = arith.constant 63 : index
    %284 = memref.load %arg1[%c63] : memref<98xf32, #tpu.memory_space<smem>>
    %285 = vector.extract_strided_slice %273 {offsets = [2, 0], sizes = [16, 16], strides = [1, 1]} : vector<22x16xf32> to vector<16x16xf32>
    %286 = vector.broadcast %284 : f32 to vector<16x16xf32>
    %287 = arith.mulf %286, %285 : vector<16x16xf32>
    %288 = arith.addf %283, %287 : vector<16x16xf32>
    %c70 = arith.constant 70 : index
    %289 = memref.load %arg1[%c70] : memref<98xf32, #tpu.memory_space<smem>>
    %290 = vector.extract_strided_slice %273 {offsets = [3, 0], sizes = [16, 16], strides = [1, 1]} : vector<22x16xf32> to vector<16x16xf32>
    %291 = vector.broadcast %289 : f32 to vector<16x16xf32>
    %292 = arith.mulf %291, %290 : vector<16x16xf32>
    %293 = arith.addf %288, %292 : vector<16x16xf32>
    %c77 = arith.constant 77 : index
    %294 = memref.load %arg1[%c77] : memref<98xf32, #tpu.memory_space<smem>>
    %295 = vector.extract_strided_slice %273 {offsets = [4, 0], sizes = [16, 16], strides = [1, 1]} : vector<22x16xf32> to vector<16x16xf32>
    %296 = vector.broadcast %294 : f32 to vector<16x16xf32>
    %297 = arith.mulf %296, %295 : vector<16x16xf32>
    %298 = arith.addf %293, %297 : vector<16x16xf32>
    %c84 = arith.constant 84 : index
    %299 = memref.load %arg1[%c84] : memref<98xf32, #tpu.memory_space<smem>>
    %300 = vector.extract_strided_slice %273 {offsets = [5, 0], sizes = [16, 16], strides = [1, 1]} : vector<22x16xf32> to vector<16x16xf32>
    %301 = vector.broadcast %299 : f32 to vector<16x16xf32>
    %302 = arith.mulf %301, %300 : vector<16x16xf32>
    %303 = arith.addf %298, %302 : vector<16x16xf32>
    %c91 = arith.constant 91 : index
    %304 = memref.load %arg1[%c91] : memref<98xf32, #tpu.memory_space<smem>>
    %305 = vector.extract_strided_slice %273 {offsets = [6, 0], sizes = [16, 16], strides = [1, 1]} : vector<22x16xf32> to vector<16x16xf32>
    %306 = vector.broadcast %304 : f32 to vector<16x16xf32>
    %307 = arith.mulf %306, %305 : vector<16x16xf32>
    %308 = arith.addf %303, %307 : vector<16x16xf32>
    %c1_42 = arith.constant 1 : index
    %c0_43 = arith.constant 0 : index
    %c1_44 = arith.constant 1 : index
    %309 = vector.load %arg4[%c1_42, %c0_43, %c1_44] : memref<2x22x22xf32, #tpu.memory_space<vmem>>, vector<1x22x16xf32>
    %310 = vector.shape_cast %309 : vector<1x22x16xf32> to vector<22x16xf32>
    %c50 = arith.constant 50 : index
    %311 = memref.load %arg1[%c50] : memref<98xf32, #tpu.memory_space<smem>>
    %312 = vector.extract_strided_slice %310 {offsets = [0, 0], sizes = [16, 16], strides = [1, 1]} : vector<22x16xf32> to vector<16x16xf32>
    %313 = vector.broadcast %311 : f32 to vector<16x16xf32>
    %314 = arith.mulf %313, %312 : vector<16x16xf32>
    %315 = arith.addf %308, %314 : vector<16x16xf32>
    %c57 = arith.constant 57 : index
    %316 = memref.load %arg1[%c57] : memref<98xf32, #tpu.memory_space<smem>>
    %317 = vector.extract_strided_slice %310 {offsets = [1, 0], sizes = [16, 16], strides = [1, 1]} : vector<22x16xf32> to vector<16x16xf32>
    %318 = vector.broadcast %316 : f32 to vector<16x16xf32>
    %319 = arith.mulf %318, %317 : vector<16x16xf32>
    %320 = arith.addf %315, %319 : vector<16x16xf32>
    %c64 = arith.constant 64 : index
    %321 = memref.load %arg1[%c64] : memref<98xf32, #tpu.memory_space<smem>>
    %322 = vector.extract_strided_slice %310 {offsets = [2, 0], sizes = [16, 16], strides = [1, 1]} : vector<22x16xf32> to vector<16x16xf32>
    %323 = vector.broadcast %321 : f32 to vector<16x16xf32>
    %324 = arith.mulf %323, %322 : vector<16x16xf32>
    %325 = arith.addf %320, %324 : vector<16x16xf32>
    %c71 = arith.constant 71 : index
    %326 = memref.load %arg1[%c71] : memref<98xf32, #tpu.memory_space<smem>>
    %327 = vector.extract_strided_slice %310 {offsets = [3, 0], sizes = [16, 16], strides = [1, 1]} : vector<22x16xf32> to vector<16x16xf32>
    %328 = vector.broadcast %326 : f32 to vector<16x16xf32>
    %329 = arith.mulf %328, %327 : vector<16x16xf32>
    %330 = arith.addf %325, %329 : vector<16x16xf32>
    %c78 = arith.constant 78 : index
    %331 = memref.load %arg1[%c78] : memref<98xf32, #tpu.memory_space<smem>>
    %332 = vector.extract_strided_slice %310 {offsets = [4, 0], sizes = [16, 16], strides = [1, 1]} : vector<22x16xf32> to vector<16x16xf32>
    %333 = vector.broadcast %331 : f32 to vector<16x16xf32>
    %334 = arith.mulf %333, %332 : vector<16x16xf32>
    %335 = arith.addf %330, %334 : vector<16x16xf32>
    %c85 = arith.constant 85 : index
    %336 = memref.load %arg1[%c85] : memref<98xf32, #tpu.memory_space<smem>>
    %337 = vector.extract_strided_slice %310 {offsets = [5, 0], sizes = [16, 16], strides = [1, 1]} : vector<22x16xf32> to vector<16x16xf32>
    %338 = vector.broadcast %336 : f32 to vector<16x16xf32>
    %339 = arith.mulf %338, %337 : vector<16x16xf32>
    %340 = arith.addf %335, %339 : vector<16x16xf32>
    %c92 = arith.constant 92 : index
    %341 = memref.load %arg1[%c92] : memref<98xf32, #tpu.memory_space<smem>>
    %342 = vector.extract_strided_slice %310 {offsets = [6, 0], sizes = [16, 16], strides = [1, 1]} : vector<22x16xf32> to vector<16x16xf32>
    %343 = vector.broadcast %341 : f32 to vector<16x16xf32>
    %344 = arith.mulf %343, %342 : vector<16x16xf32>
    %345 = arith.addf %340, %344 : vector<16x16xf32>
    %c1_45 = arith.constant 1 : index
    %c0_46 = arith.constant 0 : index
    %c2_47 = arith.constant 2 : index
    %346 = vector.load %arg4[%c1_45, %c0_46, %c2_47] : memref<2x22x22xf32, #tpu.memory_space<vmem>>, vector<1x22x16xf32>
    %347 = vector.shape_cast %346 : vector<1x22x16xf32> to vector<22x16xf32>
    %c51 = arith.constant 51 : index
    %348 = memref.load %arg1[%c51] : memref<98xf32, #tpu.memory_space<smem>>
    %349 = vector.extract_strided_slice %347 {offsets = [0, 0], sizes = [16, 16], strides = [1, 1]} : vector<22x16xf32> to vector<16x16xf32>
    %350 = vector.broadcast %348 : f32 to vector<16x16xf32>
    %351 = arith.mulf %350, %349 : vector<16x16xf32>
    %352 = arith.addf %345, %351 : vector<16x16xf32>
    %c58 = arith.constant 58 : index
    %353 = memref.load %arg1[%c58] : memref<98xf32, #tpu.memory_space<smem>>
    %354 = vector.extract_strided_slice %347 {offsets = [1, 0], sizes = [16, 16], strides = [1, 1]} : vector<22x16xf32> to vector<16x16xf32>
    %355 = vector.broadcast %353 : f32 to vector<16x16xf32>
    %356 = arith.mulf %355, %354 : vector<16x16xf32>
    %357 = arith.addf %352, %356 : vector<16x16xf32>
    %c65 = arith.constant 65 : index
    %358 = memref.load %arg1[%c65] : memref<98xf32, #tpu.memory_space<smem>>
    %359 = vector.extract_strided_slice %347 {offsets = [2, 0], sizes = [16, 16], strides = [1, 1]} : vector<22x16xf32> to vector<16x16xf32>
    %360 = vector.broadcast %358 : f32 to vector<16x16xf32>
    %361 = arith.mulf %360, %359 : vector<16x16xf32>
    %362 = arith.addf %357, %361 : vector<16x16xf32>
    %c72 = arith.constant 72 : index
    %363 = memref.load %arg1[%c72] : memref<98xf32, #tpu.memory_space<smem>>
    %364 = vector.extract_strided_slice %347 {offsets = [3, 0], sizes = [16, 16], strides = [1, 1]} : vector<22x16xf32> to vector<16x16xf32>
    %365 = vector.broadcast %363 : f32 to vector<16x16xf32>
    %366 = arith.mulf %365, %364 : vector<16x16xf32>
    %367 = arith.addf %362, %366 : vector<16x16xf32>
    %c79 = arith.constant 79 : index
    %368 = memref.load %arg1[%c79] : memref<98xf32, #tpu.memory_space<smem>>
    %369 = vector.extract_strided_slice %347 {offsets = [4, 0], sizes = [16, 16], strides = [1, 1]} : vector<22x16xf32> to vector<16x16xf32>
    %370 = vector.broadcast %368 : f32 to vector<16x16xf32>
    %371 = arith.mulf %370, %369 : vector<16x16xf32>
    %372 = arith.addf %367, %371 : vector<16x16xf32>
    %c86 = arith.constant 86 : index
    %373 = memref.load %arg1[%c86] : memref<98xf32, #tpu.memory_space<smem>>
    %374 = vector.extract_strided_slice %347 {offsets = [5, 0], sizes = [16, 16], strides = [1, 1]} : vector<22x16xf32> to vector<16x16xf32>
    %375 = vector.broadcast %373 : f32 to vector<16x16xf32>
    %376 = arith.mulf %375, %374 : vector<16x16xf32>
    %377 = arith.addf %372, %376 : vector<16x16xf32>
    %c93 = arith.constant 93 : index
    %378 = memref.load %arg1[%c93] : memref<98xf32, #tpu.memory_space<smem>>
    %379 = vector.extract_strided_slice %347 {offsets = [6, 0], sizes = [16, 16], strides = [1, 1]} : vector<22x16xf32> to vector<16x16xf32>
    %380 = vector.broadcast %378 : f32 to vector<16x16xf32>
    %381 = arith.mulf %380, %379 : vector<16x16xf32>
    %382 = arith.addf %377, %381 : vector<16x16xf32>
    %c1_48 = arith.constant 1 : index
    %c0_49 = arith.constant 0 : index
    %c3_50 = arith.constant 3 : index
    %383 = vector.load %arg4[%c1_48, %c0_49, %c3_50] : memref<2x22x22xf32, #tpu.memory_space<vmem>>, vector<1x22x16xf32>
    %384 = vector.shape_cast %383 : vector<1x22x16xf32> to vector<22x16xf32>
    %c52 = arith.constant 52 : index
    %385 = memref.load %arg1[%c52] : memref<98xf32, #tpu.memory_space<smem>>
    %386 = vector.extract_strided_slice %384 {offsets = [0, 0], sizes = [16, 16], strides = [1, 1]} : vector<22x16xf32> to vector<16x16xf32>
    %387 = vector.broadcast %385 : f32 to vector<16x16xf32>
    %388 = arith.mulf %387, %386 : vector<16x16xf32>
    %389 = arith.addf %382, %388 : vector<16x16xf32>
    %c59 = arith.constant 59 : index
    %390 = memref.load %arg1[%c59] : memref<98xf32, #tpu.memory_space<smem>>
    %391 = vector.extract_strided_slice %384 {offsets = [1, 0], sizes = [16, 16], strides = [1, 1]} : vector<22x16xf32> to vector<16x16xf32>
    %392 = vector.broadcast %390 : f32 to vector<16x16xf32>
    %393 = arith.mulf %392, %391 : vector<16x16xf32>
    %394 = arith.addf %389, %393 : vector<16x16xf32>
    %c66 = arith.constant 66 : index
    %395 = memref.load %arg1[%c66] : memref<98xf32, #tpu.memory_space<smem>>
    %396 = vector.extract_strided_slice %384 {offsets = [2, 0], sizes = [16, 16], strides = [1, 1]} : vector<22x16xf32> to vector<16x16xf32>
    %397 = vector.broadcast %395 : f32 to vector<16x16xf32>
    %398 = arith.mulf %397, %396 : vector<16x16xf32>
    %399 = arith.addf %394, %398 : vector<16x16xf32>
    %c73 = arith.constant 73 : index
    %400 = memref.load %arg1[%c73] : memref<98xf32, #tpu.memory_space<smem>>
    %401 = vector.extract_strided_slice %384 {offsets = [3, 0], sizes = [16, 16], strides = [1, 1]} : vector<22x16xf32> to vector<16x16xf32>
    %402 = vector.broadcast %400 : f32 to vector<16x16xf32>
    %403 = arith.mulf %402, %401 : vector<16x16xf32>
    %404 = arith.addf %399, %403 : vector<16x16xf32>
    %c80 = arith.constant 80 : index
    %405 = memref.load %arg1[%c80] : memref<98xf32, #tpu.memory_space<smem>>
    %406 = vector.extract_strided_slice %384 {offsets = [4, 0], sizes = [16, 16], strides = [1, 1]} : vector<22x16xf32> to vector<16x16xf32>
    %407 = vector.broadcast %405 : f32 to vector<16x16xf32>
    %408 = arith.mulf %407, %406 : vector<16x16xf32>
    %409 = arith.addf %404, %408 : vector<16x16xf32>
    %c87 = arith.constant 87 : index
    %410 = memref.load %arg1[%c87] : memref<98xf32, #tpu.memory_space<smem>>
    %411 = vector.extract_strided_slice %384 {offsets = [5, 0], sizes = [16, 16], strides = [1, 1]} : vector<22x16xf32> to vector<16x16xf32>
    %412 = vector.broadcast %410 : f32 to vector<16x16xf32>
    %413 = arith.mulf %412, %411 : vector<16x16xf32>
    %414 = arith.addf %409, %413 : vector<16x16xf32>
    %c94 = arith.constant 94 : index
    %415 = memref.load %arg1[%c94] : memref<98xf32, #tpu.memory_space<smem>>
    %416 = vector.extract_strided_slice %384 {offsets = [6, 0], sizes = [16, 16], strides = [1, 1]} : vector<22x16xf32> to vector<16x16xf32>
    %417 = vector.broadcast %415 : f32 to vector<16x16xf32>
    %418 = arith.mulf %417, %416 : vector<16x16xf32>
    %419 = arith.addf %414, %418 : vector<16x16xf32>
    %c1_51 = arith.constant 1 : index
    %c0_52 = arith.constant 0 : index
    %c4_53 = arith.constant 4 : index
    %420 = vector.load %arg4[%c1_51, %c0_52, %c4_53] : memref<2x22x22xf32, #tpu.memory_space<vmem>>, vector<1x22x16xf32>
    %421 = vector.shape_cast %420 : vector<1x22x16xf32> to vector<22x16xf32>
    %c53 = arith.constant 53 : index
    %422 = memref.load %arg1[%c53] : memref<98xf32, #tpu.memory_space<smem>>
    %423 = vector.extract_strided_slice %421 {offsets = [0, 0], sizes = [16, 16], strides = [1, 1]} : vector<22x16xf32> to vector<16x16xf32>
    %424 = vector.broadcast %422 : f32 to vector<16x16xf32>
    %425 = arith.mulf %424, %423 : vector<16x16xf32>
    %426 = arith.addf %419, %425 : vector<16x16xf32>
    %c60 = arith.constant 60 : index
    %427 = memref.load %arg1[%c60] : memref<98xf32, #tpu.memory_space<smem>>
    %428 = vector.extract_strided_slice %421 {offsets = [1, 0], sizes = [16, 16], strides = [1, 1]} : vector<22x16xf32> to vector<16x16xf32>
    %429 = vector.broadcast %427 : f32 to vector<16x16xf32>
    %430 = arith.mulf %429, %428 : vector<16x16xf32>
    %431 = arith.addf %426, %430 : vector<16x16xf32>
    %c67 = arith.constant 67 : index
    %432 = memref.load %arg1[%c67] : memref<98xf32, #tpu.memory_space<smem>>
    %433 = vector.extract_strided_slice %421 {offsets = [2, 0], sizes = [16, 16], strides = [1, 1]} : vector<22x16xf32> to vector<16x16xf32>
    %434 = vector.broadcast %432 : f32 to vector<16x16xf32>
    %435 = arith.mulf %434, %433 : vector<16x16xf32>
    %436 = arith.addf %431, %435 : vector<16x16xf32>
    %c74 = arith.constant 74 : index
    %437 = memref.load %arg1[%c74] : memref<98xf32, #tpu.memory_space<smem>>
    %438 = vector.extract_strided_slice %421 {offsets = [3, 0], sizes = [16, 16], strides = [1, 1]} : vector<22x16xf32> to vector<16x16xf32>
    %439 = vector.broadcast %437 : f32 to vector<16x16xf32>
    %440 = arith.mulf %439, %438 : vector<16x16xf32>
    %441 = arith.addf %436, %440 : vector<16x16xf32>
    %c81 = arith.constant 81 : index
    %442 = memref.load %arg1[%c81] : memref<98xf32, #tpu.memory_space<smem>>
    %443 = vector.extract_strided_slice %421 {offsets = [4, 0], sizes = [16, 16], strides = [1, 1]} : vector<22x16xf32> to vector<16x16xf32>
    %444 = vector.broadcast %442 : f32 to vector<16x16xf32>
    %445 = arith.mulf %444, %443 : vector<16x16xf32>
    %446 = arith.addf %441, %445 : vector<16x16xf32>
    %c88 = arith.constant 88 : index
    %447 = memref.load %arg1[%c88] : memref<98xf32, #tpu.memory_space<smem>>
    %448 = vector.extract_strided_slice %421 {offsets = [5, 0], sizes = [16, 16], strides = [1, 1]} : vector<22x16xf32> to vector<16x16xf32>
    %449 = vector.broadcast %447 : f32 to vector<16x16xf32>
    %450 = arith.mulf %449, %448 : vector<16x16xf32>
    %451 = arith.addf %446, %450 : vector<16x16xf32>
    %c95 = arith.constant 95 : index
    %452 = memref.load %arg1[%c95] : memref<98xf32, #tpu.memory_space<smem>>
    %453 = vector.extract_strided_slice %421 {offsets = [6, 0], sizes = [16, 16], strides = [1, 1]} : vector<22x16xf32> to vector<16x16xf32>
    %454 = vector.broadcast %452 : f32 to vector<16x16xf32>
    %455 = arith.mulf %454, %453 : vector<16x16xf32>
    %456 = arith.addf %451, %455 : vector<16x16xf32>
    %c1_54 = arith.constant 1 : index
    %c0_55 = arith.constant 0 : index
    %c5_56 = arith.constant 5 : index
    %457 = vector.load %arg4[%c1_54, %c0_55, %c5_56] : memref<2x22x22xf32, #tpu.memory_space<vmem>>, vector<1x22x16xf32>
    %458 = vector.shape_cast %457 : vector<1x22x16xf32> to vector<22x16xf32>
    %c54 = arith.constant 54 : index
    %459 = memref.load %arg1[%c54] : memref<98xf32, #tpu.memory_space<smem>>
    %460 = vector.extract_strided_slice %458 {offsets = [0, 0], sizes = [16, 16], strides = [1, 1]} : vector<22x16xf32> to vector<16x16xf32>
    %461 = vector.broadcast %459 : f32 to vector<16x16xf32>
    %462 = arith.mulf %461, %460 : vector<16x16xf32>
    %463 = arith.addf %456, %462 : vector<16x16xf32>
    %c61 = arith.constant 61 : index
    %464 = memref.load %arg1[%c61] : memref<98xf32, #tpu.memory_space<smem>>
    %465 = vector.extract_strided_slice %458 {offsets = [1, 0], sizes = [16, 16], strides = [1, 1]} : vector<22x16xf32> to vector<16x16xf32>
    %466 = vector.broadcast %464 : f32 to vector<16x16xf32>
    %467 = arith.mulf %466, %465 : vector<16x16xf32>
    %468 = arith.addf %463, %467 : vector<16x16xf32>
    %c68 = arith.constant 68 : index
    %469 = memref.load %arg1[%c68] : memref<98xf32, #tpu.memory_space<smem>>
    %470 = vector.extract_strided_slice %458 {offsets = [2, 0], sizes = [16, 16], strides = [1, 1]} : vector<22x16xf32> to vector<16x16xf32>
    %471 = vector.broadcast %469 : f32 to vector<16x16xf32>
    %472 = arith.mulf %471, %470 : vector<16x16xf32>
    %473 = arith.addf %468, %472 : vector<16x16xf32>
    %c75 = arith.constant 75 : index
    %474 = memref.load %arg1[%c75] : memref<98xf32, #tpu.memory_space<smem>>
    %475 = vector.extract_strided_slice %458 {offsets = [3, 0], sizes = [16, 16], strides = [1, 1]} : vector<22x16xf32> to vector<16x16xf32>
    %476 = vector.broadcast %474 : f32 to vector<16x16xf32>
    %477 = arith.mulf %476, %475 : vector<16x16xf32>
    %478 = arith.addf %473, %477 : vector<16x16xf32>
    %c82 = arith.constant 82 : index
    %479 = memref.load %arg1[%c82] : memref<98xf32, #tpu.memory_space<smem>>
    %480 = vector.extract_strided_slice %458 {offsets = [4, 0], sizes = [16, 16], strides = [1, 1]} : vector<22x16xf32> to vector<16x16xf32>
    %481 = vector.broadcast %479 : f32 to vector<16x16xf32>
    %482 = arith.mulf %481, %480 : vector<16x16xf32>
    %483 = arith.addf %478, %482 : vector<16x16xf32>
    %c89 = arith.constant 89 : index
    %484 = memref.load %arg1[%c89] : memref<98xf32, #tpu.memory_space<smem>>
    %485 = vector.extract_strided_slice %458 {offsets = [5, 0], sizes = [16, 16], strides = [1, 1]} : vector<22x16xf32> to vector<16x16xf32>
    %486 = vector.broadcast %484 : f32 to vector<16x16xf32>
    %487 = arith.mulf %486, %485 : vector<16x16xf32>
    %488 = arith.addf %483, %487 : vector<16x16xf32>
    %c96 = arith.constant 96 : index
    %489 = memref.load %arg1[%c96] : memref<98xf32, #tpu.memory_space<smem>>
    %490 = vector.extract_strided_slice %458 {offsets = [6, 0], sizes = [16, 16], strides = [1, 1]} : vector<22x16xf32> to vector<16x16xf32>
    %491 = vector.broadcast %489 : f32 to vector<16x16xf32>
    %492 = arith.mulf %491, %490 : vector<16x16xf32>
    %493 = arith.addf %488, %492 : vector<16x16xf32>
    %c1_57 = arith.constant 1 : index
    %c0_58 = arith.constant 0 : index
    %c6_59 = arith.constant 6 : index
    %494 = vector.load %arg4[%c1_57, %c0_58, %c6_59] : memref<2x22x22xf32, #tpu.memory_space<vmem>>, vector<1x22x16xf32>
    %495 = vector.shape_cast %494 : vector<1x22x16xf32> to vector<22x16xf32>
    %c55 = arith.constant 55 : index
    %496 = memref.load %arg1[%c55] : memref<98xf32, #tpu.memory_space<smem>>
    %497 = vector.extract_strided_slice %495 {offsets = [0, 0], sizes = [16, 16], strides = [1, 1]} : vector<22x16xf32> to vector<16x16xf32>
    %498 = vector.broadcast %496 : f32 to vector<16x16xf32>
    %499 = arith.mulf %498, %497 : vector<16x16xf32>
    %500 = arith.addf %493, %499 : vector<16x16xf32>
    %c62 = arith.constant 62 : index
    %501 = memref.load %arg1[%c62] : memref<98xf32, #tpu.memory_space<smem>>
    %502 = vector.extract_strided_slice %495 {offsets = [1, 0], sizes = [16, 16], strides = [1, 1]} : vector<22x16xf32> to vector<16x16xf32>
    %503 = vector.broadcast %501 : f32 to vector<16x16xf32>
    %504 = arith.mulf %503, %502 : vector<16x16xf32>
    %505 = arith.addf %500, %504 : vector<16x16xf32>
    %c69 = arith.constant 69 : index
    %506 = memref.load %arg1[%c69] : memref<98xf32, #tpu.memory_space<smem>>
    %507 = vector.extract_strided_slice %495 {offsets = [2, 0], sizes = [16, 16], strides = [1, 1]} : vector<22x16xf32> to vector<16x16xf32>
    %508 = vector.broadcast %506 : f32 to vector<16x16xf32>
    %509 = arith.mulf %508, %507 : vector<16x16xf32>
    %510 = arith.addf %505, %509 : vector<16x16xf32>
    %c76 = arith.constant 76 : index
    %511 = memref.load %arg1[%c76] : memref<98xf32, #tpu.memory_space<smem>>
    %512 = vector.extract_strided_slice %495 {offsets = [3, 0], sizes = [16, 16], strides = [1, 1]} : vector<22x16xf32> to vector<16x16xf32>
    %513 = vector.broadcast %511 : f32 to vector<16x16xf32>
    %514 = arith.mulf %513, %512 : vector<16x16xf32>
    %515 = arith.addf %510, %514 : vector<16x16xf32>
    %c83 = arith.constant 83 : index
    %516 = memref.load %arg1[%c83] : memref<98xf32, #tpu.memory_space<smem>>
    %517 = vector.extract_strided_slice %495 {offsets = [4, 0], sizes = [16, 16], strides = [1, 1]} : vector<22x16xf32> to vector<16x16xf32>
    %518 = vector.broadcast %516 : f32 to vector<16x16xf32>
    %519 = arith.mulf %518, %517 : vector<16x16xf32>
    %520 = arith.addf %515, %519 : vector<16x16xf32>
    %c90 = arith.constant 90 : index
    %521 = memref.load %arg1[%c90] : memref<98xf32, #tpu.memory_space<smem>>
    %522 = vector.extract_strided_slice %495 {offsets = [5, 0], sizes = [16, 16], strides = [1, 1]} : vector<22x16xf32> to vector<16x16xf32>
    %523 = vector.broadcast %521 : f32 to vector<16x16xf32>
    %524 = arith.mulf %523, %522 : vector<16x16xf32>
    %525 = arith.addf %520, %524 : vector<16x16xf32>
    %c97 = arith.constant 97 : index
    %526 = memref.load %arg1[%c97] : memref<98xf32, #tpu.memory_space<smem>>
    %527 = vector.extract_strided_slice %495 {offsets = [6, 0], sizes = [16, 16], strides = [1, 1]} : vector<22x16xf32> to vector<16x16xf32>
    %528 = vector.broadcast %526 : f32 to vector<16x16xf32>
    %529 = arith.mulf %528, %527 : vector<16x16xf32>
    %530 = arith.addf %525, %529 : vector<16x16xf32>
    %531 = arith.negf %530 : vector<16x16xf32>
    %532 = math.exp %531 : vector<16x16xf32>
    %cst_60 = arith.constant 1.000000e+00 : f32
    %533 = vector.broadcast %cst_60 : f32 to vector<16x16xf32>
    %534 = arith.addf %533, %532 : vector<16x16xf32>
    %535 = arith.divf %533, %534 : vector<16x16xf32>
    %c0_61 = arith.constant 0 : index
    %c0_62 = arith.constant 0 : index
    %c0_63 = arith.constant 0 : index
    %536 = vector.load %arg3[%c0_61, %c0_62, %c0_63] : memref<1x16x16xf32, #tpu.memory_space<vmem>>, vector<1x16x16xf32>
    %537 = vector.shape_cast %536 : vector<1x16x16xf32> to vector<16x16xf32>
    %538 = vector.shape_cast %535 : vector<16x16xf32> to vector<1x16x16xf32>
    tpu.vector_store %arg3[%c0_61, %c0_62, %c0_63], %538 {strides = array<i32>} : memref<1x16x16xf32, #tpu.memory_space<vmem>>, vector<1x16x16xf32>,
    return
  }
  func.func @transform_0(%arg0: i32) -> i32 {
    %c0_i32 = arith.constant 0 : i32
    %c0_i32_0 = arith.constant 0 : i32
    return %c0_i32 : i32
  }
  func.func @transform_1(%arg0: i32) -> (i32, i32, i32, i32) {
    %c0_i32 = arith.constant 0 : i32
    %c0_i32_0 = arith.constant 0 : i32
    %c0_i32_1 = arith.constant 0 : i32
    %c0_i32_2 = arith.constant 0 : i32
    return %arg0, %c0_i32, %c0_i32_0, %c0_i32_1 : i32, i32, i32, i32
  }
  func.func @transform_2(%arg0: i32) -> (i32, i32, i32) {
    %c0_i32 = arith.constant 0 : i32
    %c0_i32_0 = arith.constant 0 : i32
    %c0_i32_1 = arith.constant 0 : i32
    return %arg0, %c0_i32, %c0_i32_0 : i32, i32, i32
  }
}

module attributes {stable_mosaic.version = 11 : i64} {
  func.func @_scale_kernel(%arg0: i32, %arg1: i32, %arg2: i32, %arg3: memref<1x4x256xf32, #tpu.memory_space<vmem>>, %arg4: memref<1x1x256xf32, #tpu.memory_space<vmem>>, %arg5: memref<1x4x256xf32, #tpu.memory_space<vmem>>) attributes {dimension_semantics = [#tpu.dimension_semantics<parallel>, #tpu.dimension_semantics<parallel>, #tpu.dimension_semantics<parallel>], iteration_bounds = array<i64: 2, 1, 1>, scalar_prefetch = 0 : i64, scratch_operands = 0 : i64, tpu.core_type = #tpu.core_type<tc>, window_params = [{transform_indices = @transform_0, window_bounds = array<i64: 1, 4, 256>}, {transform_indices = @transform_1, window_bounds = array<i64: 1, 1, 256>}, {transform_indices = @transform_2, window_bounds = array<i64: 1, 4, 256>}]} {
    %c0 = arith.constant 0 : index
    %c0_0 = arith.constant 0 : index
    %c0_1 = arith.constant 0 : index
    %0 = vector.load %arg3[%c0, %c0_0, %c0_1] : memref<1x4x256xf32, #tpu.memory_space<vmem>>, vector<1x4x256xf32>
    %c0_2 = arith.constant 0 : index
    %c0_3 = arith.constant 0 : index
    %c0_4 = arith.constant 0 : index
    %1 = vector.load %arg4[%c0_2, %c0_3, %c0_4] : memref<1x1x256xf32, #tpu.memory_space<vmem>>, vector<1x1x256xf32>
    %2 = vector.broadcast %1 : vector<1x1x256xf32> to vector<1x4x256xf32>
    %3 = arith.mulf %0, %2 : vector<1x4x256xf32>
    %c0_5 = arith.constant 0 : index
    %c0_6 = arith.constant 0 : index
    %c0_7 = arith.constant 0 : index
    %4 = vector.load %arg5[%c0_5, %c0_6, %c0_7] : memref<1x4x256xf32, #tpu.memory_space<vmem>>, vector<1x4x256xf32>
    tpu.vector_store %arg5[%c0_5, %c0_6, %c0_7], %3 {strides = array<i32>} : memref<1x4x256xf32, #tpu.memory_space<vmem>>, vector<1x4x256xf32>,
    return
  }
  func.func @transform_0(%arg0: i32, %arg1: i32, %arg2: i32) -> (i32, i32, i32) {
    %c0_i32 = arith.constant 0 : i32
    return %arg0, %arg1, %arg2 : i32, i32, i32
  }
  func.func @transform_1(%arg0: i32, %arg1: i32, %arg2: i32) -> (i32, i32, i32) {
    %c0_i32 = arith.constant 0 : i32
    %c0_i32_0 = arith.constant 0 : i32
    return %arg0, %c0_i32, %arg2 : i32, i32, i32
  }
  func.func @transform_2(%arg0: i32, %arg1: i32, %arg2: i32) -> (i32, i32, i32) {
    %c0_i32 = arith.constant 0 : i32
    return %arg0, %arg1, %arg2 : i32, i32, i32
  }
}

</mosaic_0001>

<llo_original>
// kernel: spatial_attention.3
$region0: #{spatial_attention.3}
  #allocation0 [shape = 'u32[]', space=smem, size = 0x4, offset = 0x4, fixed_abs, tag = 'smem constant byte address 0x4 - core index']
  #allocation1 [shape = 'u32[72,128]{1,0:T(1,128)}', space=vmem, size = 0x9000, scoped, tag = 'internal scratch']
  #allocation2 [shape = 'f32[2,256]{1,0:T(2,128)}', space=vmem, size = 0x800, scoped, tag = 'scratch operand']
  %s0 = inlined_call_operand.vmem [shape: f32[2,4,256], index: 0, kind: input, shape index: {}]
  %s1 = inlined_call_operand.vmem [shape: f32[2,2,256], index: 1, kind: output, shape index: {}]
  %s2 = sld [smem:[#allocation0]]
  $region45: #{spatial_attention.3} parent=0
    _
  %s4 = ssub.s32 1, %s2
  %s5 = scalar_select 0, %s4, %s2
  loop: start=0, step=1, limit=4
  $region2: #{spatial_attention.3} parent=0 // loop_pre_header
    _
  $region3: #{spatial_attention.3} parent=0 // loop_header
    %s7 = sphi 0, %s11
    %p8 = scmp.ge.s32.totalorder %s7, 4
    %s14 = sphi 0, %s33
    %s15 = sphi 0, %s29
    %s16 = sphi 0, %s25
    %s17 = sphi 0, %s14
    %s18 = sphi 0, %s15
    %s19 = sphi 0, %s16
    %s20 = sphi 0, %s17
    %s21 = sphi 0, %s18
    %s22 = sphi 0, %s19
    %s40 = sphi 0, %s42
    %s43 = sphi 0, %s40
    %s44 = sphi 0, %s43
    %s60 = sphi 0, %s44
    %s68 = sphi 0, %s70
    %s71 = sphi 0, %s68
    %s72 = sphi 0, %s71
    %s88 = sphi 0, %s72
  $region4: #{spatial_attention.3} parent=0 // loop_header_branch
    %10 = sbr.rel (%p8) target = $region8
  $region5: #{spatial_attention.3} parent=0 // loop_body
    %s12 = ssub.s32 %s7, 1
    %s13 = ssub.s32 %s7, 2
    %s23 = sadd.s32 1, %s16
    %p24 = scmp.ge.s32.totalorder %s23, 1
    %s25 = scalar_select %p24, 0, %s23
    %s26 = sadd.s32 1, %s15
    %s27 = scalar_select %p24, %s26, %s15
    %p28 = scmp.ge.s32.totalorder %s27, 1
    %s29 = scalar_select %p28, 0, %s27
    %s30 = sadd.s32 1, %s14
    %s31 = scalar_select %p28, %s30, %s14
    %p32 = scmp.ge.s32.totalorder %s31, 2
    %s33 = scalar_select %p32, 0, %s31
    %s34 = ssub.s32 %s14, %s33
    %s35 = ssub.s32 %s16, %s25
    %s36 = sor.u32 %s34, %s35
    %s37 = ssub.s32 %s15, %s29
    %s38 = sor.u32 %s36, %s37
    %p39 = scmp.eq.s32.totalorder %s38, 0
    %s41 = sadd.s32 %s40, 1
    %s42 = scalar_select %p39, %s40, %s41
    %p45 = pneg %p39
    %p46 = scmp.eq.s32.totalorder %s7, 1
    %p47 = por %p45, %p46
    %p48 = scmp.ne.s32.totalorder %s40, %s43
    %p49 = scmp.eq.s32.totalorder %s7, 0
    %p50 = por %p48, %p49
    %p51 = scmp.ne.s32.totalorder %s40, %s43
    %p52 = scmp.eq.s32.totalorder %s12, 1
    %p53 = por %p51, %p52
    %p54 = scmp.ne.s32.totalorder %s43, %s44
    %p55 = scmp.eq.s32.totalorder %s12, 0
    %p56 = por %p54, %p55
    %p57 = scmp.ne.s32.totalorder %s43, %s44
    %p58 = scmp.eq.s32.totalorder %s13, 1
    %p59 = por %p57, %p58
    %p61 = scmp.ne.s32.totalorder %s44, %s60
    %p62 = scmp.eq.s32.totalorder %s13, 0
    %p63 = por %p61, %p62
    %s64 = ssub.s32 %s14, %s33
    %s65 = ssub.s32 %s15, %s29
    %s66 = sor.u32 %s64, %s65
    %p67 = scmp.eq.s32.totalorder %s66, 0
    %s69 = sadd.s32 %s68, 1
    %s70 = scalar_select %p67, %s68, %s69
    %p73 = pneg %p67
    %p74 = scmp.eq.s32.totalorder %s7, 1
    %p75 = por %p73, %p74
    %p76 = scmp.ne.s32.totalorder %s68, %s71
    %p77 = scmp.eq.s32.totalorder %s7, 0
    %p78 = por %p76, %p77
    %p79 = scmp.ne.s32.totalorder %s68, %s71
    %p80 = scmp.eq.s32.totalorder %s12, 1
    %p81 = por %p79, %p80
    %p82 = scmp.ne.s32.totalorder %s71, %s72
    %p83 = scmp.eq.s32.totalorder %s12, 0
    %p84 = por %p82, %p83
    %p85 = scmp.ne.s32.totalorder %s71, %s72
    %p86 = scmp.eq.s32.totalorder %s13, 1
    %p87 = por %p85, %p86
    %p89 = scmp.ne.s32.totalorder %s72, %s88
    %p90 = scmp.eq.s32.totalorder %s13, 0
    %p91 = por %p89, %p90
    %p92 = scmp.le.s32.totalorder 1, %s7
    %p93 = scmp.lt.s32.totalorder %s7, 3
    %p94 = pnand %p92, %p93
    %p95 = pneg %p94
    // Predicated region
    $region9: #{spatial_attention.3} parent=5 // pred_check
      _
    $region10: #{spatial_attention.3} parent=5 // pred_check_branch
      %97 = sbr.rel (%p94) target = $region12
    $region11: #{spatial_attention.3} parent=5 // pred_region
      %s98 = ssub.s32 %s7, 1
    $region12: #{spatial_attention.3} parent=5 // pred_fallthru
      _
    %p99 = scmp.lt.s32.totalorder %s7, 2
    // Predicated region
    $region13: #{spatial_attention.3} parent=5 // pred_check
      %p100 = pneg %p99
    $region14: #{spatial_attention.3} parent=5 // pred_check_branch
      %102 = sbr.rel (%p100) target = $region16
    $region15: #{spatial_attention.3} parent=5 // pred_region
      // Predicated region
      $region17: #{spatial_attention.3} parent=15 // pred_check
        %p103 = pneg %p50
      $region18: #{spatial_attention.3} parent=15 // pred_check_branch
        %105 = sbr.rel (%p103) target = $region20
      $region19: #{spatial_attention.3} parent=15 // pred_region
        %s106 = smul.u32 2, %s15
        %p107 = scmp.lt.s32.totalorder %s14, 1
        %s108 = scalar_select %p107, %s14, 1
        %p109 = scmp.lt.s32.totalorder %s16, 0
        %s110 = scalar_select %p109, %s16, 0
        %p111 = scmp.lt.s32.totalorder %s106, 1
        %s112 = scalar_select %p111, %s106, 1
        %s113 = smul.addr %s110, 2
        %s114 = sadd.s32 %s112, %s113
        %s115 = smul.addr %s108, 2
        %s116 = sadd.s32 %s114, %s115
        %s117 = smul.addr %s116, 4
        %s118 = scalar_lea.vmem %s0, %s117
        %s119 = smul.u32 2, %s15
      $region20: #{spatial_attention.3} parent=15 // pred_fallthru
        _
    $region16: #{spatial_attention.3} parent=5 // pred_fallthru
      _
    %p120 = scmp.le.s32.totalorder 1, %s7
    %p121 = scmp.lt.s32.totalorder %s7, 3
    %p122 = pnand %p120, %p121
    %p123 = pneg %p122
    // Predicated region
    $region21: #{spatial_attention.3} parent=5 // pred_check
      _
    $region22: #{spatial_attention.3} parent=5 // pred_check_branch
      %125 = sbr.rel (%p122) target = $region24
    $region23: #{spatial_attention.3} parent=5 // pred_region
      %s126 = ssub.s32 %s7, 1
      %s127 = smul.u32 2, %s18
      %p128 = scmp.lt.s32.totalorder %s17, 1
      %s129 = scalar_select %p128, %s17, 1
      %p130 = scmp.lt.s32.totalorder %s19, 0
      %s131 = scalar_select %p130, %s19, 0
      %p132 = scmp.lt.s32.totalorder %s127, 1
      %s133 = scalar_select %p132, %s127, 1
      %s134 = smul.addr %s131, 2
      %s135 = sadd.s32 %s133, %s134
      %s136 = smul.addr %s129, 2
      %s137 = sadd.s32 %s135, %s136
      %s138 = smul.addr %s137, 4
      %s139 = scalar_lea.vmem %s0, %s138
      %p140 = pneg %p56
      %p141 = pneg %p53
      %p142 = pneg %p84
      %p143 = pneg %p81
      %s144 = smul.u32 2, %s18
      %p145 = scmp.lt.s32.totalorder %s17, 1
      %s146 = scalar_select %p145, %s17, 1
      %p147 = scmp.lt.s32.totalorder %s144, 1
      %s148 = scalar_select %p147, %s144, 1
      %s149 = smul.addr %s146, 2
      %s150 = sadd.s32 %s148, %s149
      %s151 = smul.addr %s150, 2
      %s152 = scalar_lea.vmem %s1, %s151
      %s153 = smul.u32 2, %s18
      %p154 = scmp.lt.s32.totalorder %s17, 1
      %s155 = scalar_select %p154, %s17, 1
      %p156 = scmp.lt.s32.totalorder %s19, 0
      %s157 = scalar_select %p156, %s19, 0
      %p158 = scmp.lt.s32.totalorder %s153, 1
      %s159 = scalar_select %p158, %s153, 1
      %s160 = smul.addr %s157, 2
      %s161 = sadd.s32 %s159, %s160
      %s162 = smul.addr %s155, 2
      %s163 = sadd.s32 %s161, %s162
      %s164 = smul.addr %s163, 4
      %s165 = scalar_lea.vmem %s0, %s164
      %s166 = smul.u32 2, %s18
      %s167 = smul.u32 2, %s18
      %p168 = scmp.lt.s32.totalorder %s17, 1
      %s169 = scalar_select %p168, %s17, 1
      %p170 = scmp.lt.s32.totalorder %s167, 1
      %s171 = scalar_select %p170, %s167, 1
      %s172 = smul.addr %s169, 2
      %s173 = sadd.s32 %s171, %s172
      %s174 = smul.addr %s173, 2
      %s175 = scalar_lea.vmem %s1, %s174
      %s176 = smul.u32 2, %s18
      %p177 = scmp.eq.s32.totalorder %s19, 0
      // Predicated region
      $region25: #{spatial_attention.3} parent=23 // pred_check
        %p178 = pneg %p177
      $region26: #{spatial_attention.3} parent=23 // pred_check_branch
        %180 = sbr.rel (%p178) target = $region28
      $region27: #{spatial_attention.3} parent=23 // pred_region
        %vm181 = vcmask 1040384
        %v182 = vsel %vm181, 0.0, -inf
        %v184 = vrot.slane %v182, 6
        %vm185 = vcmask 1041408
        %v186 = vsel %vm185, %v182, %v184
        %188 = vst [vmem:[#allocation2] sm:$0xf] %v186
      $region28: #{spatial_attention.3} parent=23 // pred_fallthru
        _
      %v189 = vld [vmem:[%s165] sm:$0xff]
      %v190 = vld [vmem:[#allocation2] sm:$0xf]
      %192 = vst [vmem:[#allocation1] ss:$2 sm:$0xff] %v189
      %v193 = vld.sshfl [vmem:[#allocation1] sm:$0xff pattern:$0x75316420]
      %v194 = vld.sshfl [vmem:[#allocation1 + $0x8] sm:$0xff pattern:$0x75316420]
      %vm197 = vcmask 1043456
      %v198 = vsel %vm197, %v193, 0.0
      %v199 = vrot.slane %v198, 4
      %v200 = vadd.f32 %v198, %v199
      %v201 = vrot.slane %v200, 2
      %v202 = vadd.f32 %v200, %v201
      %v203 = vrot.slane %v202, 1
      %v204 = vadd.f32 %v202, %v203
      %v205 = vsel %vm197, %v194, 0.0
      %v206 = vrot.slane %v205, 4
      %v207 = vadd.f32 %v205, %v206
      %v208 = vrot.slane %v207, 2
      %v209 = vadd.f32 %v207, %v208
      %v210 = vrot.slane %v209, 1
      %v211 = vadd.f32 %v209, %v210
      %v214 = vrot.slane %v211, 6
      %vm215 = vcmask 1041408
      %v216 = vsel %vm215, %v204, %v214
      %v218 = vadd.f32 %v190, %v216
      %219 = vst [vmem:[#allocation1] ss:$2 sm:$0xff] %v189
      %v220 = vld.sshfl [vmem:[#allocation1] sm:$0xff pattern:$0x75316420]
      %v221 = vld.sshfl [vmem:[#allocation1 + $0x8] sm:$0xff pattern:$0x75316420]
      %v224 = vsel %vm197, %v220, -inf
      %v225 = vrot.slane %v224, 4
      %v226 = vmax.f32 %v224, %v225
      %v227 = vrot.slane %v226, 2
      %v228 = vmax.f32 %v226, %v227
      %v229 = vrot.slane %v228, 1
      %v230 = vmax.f32 %v228, %v229
      %v231 = vsel %vm197, %v221, -inf
      %v232 = vrot.slane %v231, 4
      %v233 = vmax.f32 %v231, %v232
      %v234 = vrot.slane %v233, 2
      %v235 = vmax.f32 %v233, %v234
      %v236 = vrot.slane %v235, 1
      %v237 = vmax.f32 %v235, %v236
      %v240 = vrot.slane %v237, 6
      %v241 = vsel %vm215, %v230, %v240
      %v242 = vrot.slane %v241, 7
      %v244 = vmax.f32 %v190, %v242
      %v246 = vperm.slane %v218, 0
      %v247 = vperm.slane %v218, 2
      %v251 = vperm.slane %v244, 1
      %v252 = vperm.slane %v244, 3
      %vm255 = vcmask 1040384
      %v256 = vsel %vm255, %v246, %v251
      %v257 = vsel %vm255, %v247, %v252
      %v260 = vrot.slane %v257, 6
      %v261 = vsel %vm215, %v256, %v260
      %263 = vst [vmem:[#allocation2] sm:$0xf] %v261
      // Predicated region
      $region29: #{spatial_attention.3} parent=23 // pred_check
        %p264 = pneg %p177
      $region30: #{spatial_attention.3} parent=23 // pred_check_branch
        %266 = sbr.rel (%p264) target = $region32
      $region31: #{spatial_attention.3} parent=23 // pred_region
        %v267 = vld [vmem:[#allocation2] sm:$0xf]
        %v268 = vmul.f32 %v267, 0.25
        %v270 = vperm.slane %v268, 0
        %v271 = vperm.slane %v268, 2
        %v275 = vperm.slane %v267, 1
        %v276 = vperm.slane %v267, 3
        %v279 = vsel %vm255, %v270, %v275
        %v280 = vsel %vm255, %v271, %v276
        %v283 = vrot.slane %v280, 6
        %v284 = vsel %vm215, %v279, %v283
        %286 = vst [vmem:[%s175] sm:$0xf] %v284
      $region32: #{spatial_attention.3} parent=23 // pred_fallthru
        _
      %s287 = smul.u32 2, %s18
      %p288 = scmp.lt.s32.totalorder %s17, 1
      %s289 = scalar_select %p288, %s17, 1
      %p290 = scmp.lt.s32.totalorder %s287, 1
      %s291 = scalar_select %p290, %s287, 1
      %s292 = smul.addr %s289, 2
      %s293 = sadd.s32 %s291, %s292
      %s294 = smul.addr %s293, 2
      %s295 = scalar_lea.vmem %s1, %s294
      // Predicated region
      $region33: #{spatial_attention.3} parent=23 // pred_check
        %p296 = pneg %p81
      $region34: #{spatial_attention.3} parent=23 // pred_check_branch
        %298 = sbr.rel (%p296) target = $region36
      $region35: #{spatial_attention.3} parent=23 // pred_region
        %s299 = smul.u32 2, %s18
      $region36: #{spatial_attention.3} parent=23 // pred_fallthru
        _
    $region24: #{spatial_attention.3} parent=5 // pred_fallthru
      _
    %p300 = scmp.le.s32.totalorder 2, %s7
    // Predicated region
    $region37: #{spatial_attention.3} parent=5 // pred_check
      %p301 = pneg %p300
    $region38: #{spatial_attention.3} parent=5 // pred_check_branch
      %303 = sbr.rel (%p301) target = $region40
    $region39: #{spatial_attention.3} parent=5 // pred_region
      %s304 = ssub.s32 %s7, 2
      // Predicated region
      $region41: #{spatial_attention.3} parent=39 // pred_check
        %p305 = pneg %p87
      $region42: #{spatial_attention.3} parent=39 // pred_check_branch
        %307 = sbr.rel (%p305) target = $region44
      $region43: #{spatial_attention.3} parent=39 // pred_region
        %s308 = smul.u32 2, %s21
        %p309 = scmp.lt.s32.totalorder %s20, 1
        %s310 = scalar_select %p309, %s20, 1
        %p311 = scmp.lt.s32.totalorder %s308, 1
        %s312 = scalar_select %p311, %s308, 1
        %s313 = smul.addr %s310, 2
        %s314 = sadd.s32 %s312, %s313
        %s315 = smul.addr %s314, 2
        %s316 = scalar_lea.vmem %s1, %s315
      $region44: #{spatial_attention.3} parent=39 // pred_fallthru
        _
    $region40: #{spatial_attention.3} parent=5 // pred_fallthru
      _
  $region6: #{spatial_attention.3} parent=0 // loop_footer
    %s11 = sadd.s32 1, %s7
  $region7: #{spatial_attention.3} parent=0 // loop_footer_branch
    %6 = sbr.rel target = $region3
  $region8: #{spatial_attention.3} parent=0 // loop_exit
    _

// kernel: spatial_attention.5
$region0: #{spatial_attention.5}
  #allocation0 [shape = 'u32[]', space=smem, size = 0x4, offset = 0x4, fixed_abs, tag = 'smem constant byte address 0x4 - core index']
  #allocation1 [shape = 'u32[72,128]{1,0:T(1,128)}', space=vmem, size = 0x9000, scoped, tag = 'internal scratch']
  %s0 = inlined_call_operand.vmem [shape: f32[2,4,256], index: 0, kind: input, shape index: {}]
  %s1 = inlined_call_operand.vmem [shape: f32[2,1,256], index: 1, kind: input, shape index: {}]
  %s2 = inlined_call_operand.vmem [shape: f32[2,4,256], index: 2, kind: output, shape index: {}]
  %s3 = sld [smem:[#allocation0]]
  $region41: #{spatial_attention.5} parent=0
    _
  %s5 = ssub.s32 1, %s3
  %s6 = scalar_select 0, %s5, %s3
  loop: start=0, step=1, limit=4
  $region2: #{spatial_attention.5} parent=0 // loop_pre_header
    _
  $region3: #{spatial_attention.5} parent=0 // loop_header
    %s8 = sphi 0, %s12
    %p9 = scmp.ge.s32.totalorder %s8, 4
    %s15 = sphi 0, %s34
    %s16 = sphi 0, %s30
    %s17 = sphi 0, %s26
    %s18 = sphi 0, %s15
    %s19 = sphi 0, %s16
    %s20 = sphi 0, %s17
    %s21 = sphi 0, %s18
    %s22 = sphi 0, %s19
    %s23 = sphi 0, %s20
    %s41 = sphi 0, %s43
    %s44 = sphi 0, %s41
    %s45 = sphi 0, %s44
    %s61 = sphi 0, %s45
    %s69 = sphi 0, %s71
    %s72 = sphi 0, %s69
    %s73 = sphi 0, %s72
    %s89 = sphi 0, %s73
    %s99 = sphi 0, %s101
    %s102 = sphi 0, %s99
    %s103 = sphi 0, %s102
    %s119 = sphi 0, %s103
  $region4: #{spatial_attention.5} parent=0 // loop_header_branch
    %11 = sbr.rel (%p9) target = $region8
  $region5: #{spatial_attention.5} parent=0 // loop_body
    %s13 = ssub.s32 %s8, 1
    %s14 = ssub.s32 %s8, 2
    %s24 = sadd.s32 1, %s17
    %p25 = scmp.ge.s32.totalorder %s24, 1
    %s26 = scalar_select %p25, 0, %s24
    %s27 = sadd.s32 1, %s16
    %s28 = scalar_select %p25, %s27, %s16
    %p29 = scmp.ge.s32.totalorder %s28, 1
    %s30 = scalar_select %p29, 0, %s28
    %s31 = sadd.s32 1, %s15
    %s32 = scalar_select %p29, %s31, %s15
    %p33 = scmp.ge.s32.totalorder %s32, 2
    %s34 = scalar_select %p33, 0, %s32
    %s35 = ssub.s32 %s15, %s34
    %s36 = ssub.s32 %s16, %s30
    %s37 = sor.u32 %s35, %s36
    %s38 = ssub.s32 %s17, %s26
    %s39 = sor.u32 %s37, %s38
    %p40 = scmp.eq.s32.totalorder %s39, 0
    %s42 = sadd.s32 %s41, 1
    %s43 = scalar_select %p40, %s41, %s42
    %p46 = pneg %p40
    %p47 = scmp.eq.s32.totalorder %s8, 1
    %p48 = por %p46, %p47
    %p49 = scmp.ne.s32.totalorder %s41, %s44
    %p50 = scmp.eq.s32.totalorder %s8, 0
    %p51 = por %p49, %p50
    %p52 = scmp.ne.s32.totalorder %s41, %s44
    %p53 = scmp.eq.s32.totalorder %s13, 1
    %p54 = por %p52, %p53
    %p55 = scmp.ne.s32.totalorder %s44, %s45
    %p56 = scmp.eq.s32.totalorder %s13, 0
    %p57 = por %p55, %p56
    %p58 = scmp.ne.s32.totalorder %s44, %s45
    %p59 = scmp.eq.s32.totalorder %s14, 1
    %p60 = por %p58, %p59
    %p62 = scmp.ne.s32.totalorder %s45, %s61
    %p63 = scmp.eq.s32.totalorder %s14, 0
    %p64 = por %p62, %p63
    %s65 = ssub.s32 %s15, %s34
    %s66 = ssub.s32 %s17, %s26
    %s67 = sor.u32 %s65, %s66
    %p68 = scmp.eq.s32.totalorder %s67, 0
    %s70 = sadd.s32 %s69, 1
    %s71 = scalar_select %p68, %s69, %s70
    %p74 = pneg %p68
    %p75 = scmp.eq.s32.totalorder %s8, 1
    %p76 = por %p74, %p75
    %p77 = scmp.ne.s32.totalorder %s69, %s72
    %p78 = scmp.eq.s32.totalorder %s8, 0
    %p79 = por %p77, %p78
    %p80 = scmp.ne.s32.totalorder %s69, %s72
    %p81 = scmp.eq.s32.totalorder %s13, 1
    %p82 = por %p80, %p81
    %p83 = scmp.ne.s32.totalorder %s72, %s73
    %p84 = scmp.eq.s32.totalorder %s13, 0
    %p85 = por %p83, %p84
    %p86 = scmp.ne.s32.totalorder %s72, %s73
    %p87 = scmp.eq.s32.totalorder %s14, 1
    %p88 = por %p86, %p87
    %p90 = scmp.ne.s32.totalorder %s73, %s89
    %p91 = scmp.eq.s32.totalorder %s14, 0
    %p92 = por %p90, %p91
    %s93 = ssub.s32 %s15, %s34
    %s94 = ssub.s32 %s16, %s30
    %s95 = sor.u32 %s93, %s94
    %s96 = ssub.s32 %s17, %s26
    %s97 = sor.u32 %s95, %s96
    %p98 = scmp.eq.s32.totalorder %s97, 0
    %s100 = sadd.s32 %s99, 1
    %s101 = scalar_select %p98, %s99, %s100
    %p104 = pneg %p98
    %p105 = scmp.eq.s32.totalorder %s8, 1
    %p106 = por %p104, %p105
    %p107 = scmp.ne.s32.totalorder %s99, %s102
    %p108 = scmp.eq.s32.totalorder %s8, 0
    %p109 = por %p107, %p108
    %p110 = scmp.ne.s32.totalorder %s99, %s102
    %p111 = scmp.eq.s32.totalorder %s13, 1
    %p112 = por %p110, %p111
    %p113 = scmp.ne.s32.totalorder %s102, %s103
    %p114 = scmp.eq.s32.totalorder %s13, 0
    %p115 = por %p113, %p114
    %p116 = scmp.ne.s32.totalorder %s102, %s103
    %p117 = scmp.eq.s32.totalorder %s14, 1
    %p118 = por %p116, %p117
    %p120 = scmp.ne.s32.totalorder %s103, %s119
    %p121 = scmp.eq.s32.totalorder %s14, 0
    %p122 = por %p120, %p121
    %p123 = scmp.le.s32.totalorder 1, %s8
    %p124 = scmp.lt.s32.totalorder %s8, 3
    %p125 = pnand %p123, %p124
    %p126 = pneg %p125
    // Predicated region
    $region9: #{spatial_attention.5} parent=5 // pred_check
      _
    $region10: #{spatial_attention.5} parent=5 // pred_check_branch
      %128 = sbr.rel (%p125) target = $region12
    $region11: #{spatial_attention.5} parent=5 // pred_region
      %s129 = ssub.s32 %s8, 1
    $region12: #{spatial_attention.5} parent=5 // pred_fallthru
      _
    %p130 = scmp.lt.s32.totalorder %s8, 2
    // Predicated region
    $region13: #{spatial_attention.5} parent=5 // pred_check
      %p131 = pneg %p130
    $region14: #{spatial_attention.5} parent=5 // pred_check_branch
      %133 = sbr.rel (%p131) target = $region16
    $region15: #{spatial_attention.5} parent=5 // pred_region
      // Predicated region
      $region17: #{spatial_attention.5} parent=15 // pred_check
        %p134 = pneg %p51
      $region18: #{spatial_attention.5} parent=15 // pred_check_branch
        %136 = sbr.rel (%p134) target = $region20
      $region19: #{spatial_attention.5} parent=15 // pred_region
        %s137 = smul.u32 2, %s17
        %p138 = scmp.lt.s32.totalorder %s15, 1
        %s139 = scalar_select %p138, %s15, 1
        %p140 = scmp.lt.s32.totalorder %s16, 0
        %s141 = scalar_select %p140, %s16, 0
        %p142 = scmp.lt.s32.totalorder %s137, 1
        %s143 = scalar_select %p142, %s137, 1
        %s144 = smul.addr %s141, 2
        %s145 = sadd.s32 %s143, %s144
        %s146 = smul.addr %s139, 2
        %s147 = sadd.s32 %s145, %s146
        %s148 = smul.addr %s147, 4
        %s149 = scalar_lea.vmem %s0, %s148
        %s150 = smul.u32 2, %s17
      $region20: #{spatial_attention.5} parent=15 // pred_fallthru
        _
      // Predicated region
      $region21: #{spatial_attention.5} parent=15 // pred_check
        %p151 = pneg %p79
      $region22: #{spatial_attention.5} parent=15 // pred_check_branch
        %153 = sbr.rel (%p151) target = $region24
      $region23: #{spatial_attention.5} parent=15 // pred_region
        %s154 = smul.u32 2, %s17
        %p155 = scmp.lt.s32.totalorder %s15, 1
        %s156 = scalar_select %p155, %s15, 1
        %p157 = scmp.lt.s32.totalorder %s154, 1
        %s158 = scalar_select %p157, %s154, 1
        %s159 = smul.addr %s156, 2
        %s160 = sadd.s32 %s158, %s159
        %s161 = scalar_lea.vmem %s1, %s160
        %s162 = smul.u32 2, %s17
      $region24: #{spatial_attention.5} parent=15 // pred_fallthru
        _
    $region16: #{spatial_attention.5} parent=5 // pred_fallthru
      _
    %p163 = scmp.le.s32.totalorder 1, %s8
    %p164 = scmp.lt.s32.totalorder %s8, 3
    %p165 = pnand %p163, %p164
    %p166 = pneg %p165
    // Predicated region
    $region25: #{spatial_attention.5} parent=5 // pred_check
      _
    $region26: #{spatial_attention.5} parent=5 // pred_check_branch
      %168 = sbr.rel (%p165) target = $region28
    $region27: #{spatial_attention.5} parent=5 // pred_region
      %s169 = ssub.s32 %s8, 1
      %s170 = smul.u32 2, %s20
      %p171 = scmp.lt.s32.totalorder %s18, 1
      %s172 = scalar_select %p171, %s18, 1
      %p173 = scmp.lt.s32.totalorder %s19, 0
      %s174 = scalar_select %p173, %s19, 0
      %p175 = scmp.lt.s32.totalorder %s170, 1
      %s176 = scalar_select %p175, %s170, 1
      %s177 = smul.addr %s174, 2
      %s178 = sadd.s32 %s176, %s177
      %s179 = smul.addr %s172, 2
      %s180 = sadd.s32 %s178, %s179
      %s181 = smul.addr %s180, 4
      %s182 = scalar_lea.vmem %s0, %s181
      %p183 = pneg %p57
      %p184 = pneg %p54
      %s185 = smul.u32 2, %s20
      %p186 = scmp.lt.s32.totalorder %s18, 1
      %s187 = scalar_select %p186, %s18, 1
      %p188 = scmp.lt.s32.totalorder %s185, 1
      %s189 = scalar_select %p188, %s185, 1
      %s190 = smul.addr %s187, 2
      %s191 = sadd.s32 %s189, %s190
      %s192 = scalar_lea.vmem %s1, %s191
      %p193 = pneg %p85
      %p194 = pneg %p82
      %p195 = pneg %p115
      %p196 = pneg %p112
      %s197 = smul.u32 2, %s20
      %p198 = scmp.lt.s32.totalorder %s18, 1
      %s199 = scalar_select %p198, %s18, 1
      %p200 = scmp.lt.s32.totalorder %s19, 0
      %s201 = scalar_select %p200, %s19, 0
      %p202 = scmp.lt.s32.totalorder %s197, 1
      %s203 = scalar_select %p202, %s197, 1
      %s204 = smul.addr %s201, 2
      %s205 = sadd.s32 %s203, %s204
      %s206 = smul.addr %s199, 2
      %s207 = sadd.s32 %s205, %s206
      %s208 = smul.addr %s207, 4
      %s209 = scalar_lea.vmem %s2, %s208
      %s210 = smul.u32 2, %s20
      %p211 = scmp.lt.s32.totalorder %s18, 1
      %s212 = scalar_select %p211, %s18, 1
      %p213 = scmp.lt.s32.totalorder %s19, 0
      %s214 = scalar_select %p213, %s19, 0
      %p215 = scmp.lt.s32.totalorder %s210, 1
      %s216 = scalar_select %p215, %s210, 1
      %s217 = smul.addr %s214, 2
      %s218 = sadd.s32 %s216, %s217
      %s219 = smul.addr %s212, 2
      %s220 = sadd.s32 %s218, %s219
      %s221 = smul.addr %s220, 4
      %s222 = scalar_lea.vmem %s0, %s221
      %s223 = smul.u32 2, %s20
      %s224 = smul.u32 2, %s20
      %p225 = scmp.lt.s32.totalorder %s18, 1
      %s226 = scalar_select %p225, %s18, 1
      %p227 = scmp.lt.s32.totalorder %s224, 1
      %s228 = scalar_select %p227, %s224, 1
      %s229 = smul.addr %s226, 2
      %s230 = sadd.s32 %s228, %s229
      %s231 = scalar_lea.vmem %s1, %s230
      %s232 = smul.u32 2, %s20
      %s233 = smul.u32 2, %s20
      %p234 = scmp.lt.s32.totalorder %s18, 1
      %s235 = scalar_select %p234, %s18, 1
      %p236 = scmp.lt.s32.totalorder %s19, 0
      %s237 = scalar_select %p236, %s19, 0
      %p238 = scmp.lt.s32.totalorder %s233, 1
      %s239 = scalar_select %p238, %s233, 1
      %s240 = smul.addr %s237, 2
      %s241 = sadd.s32 %s239, %s240
      %s242 = smul.addr %s235, 2
      %s243 = sadd.s32 %s241, %s242
      %s244 = smul.addr %s243, 4
      %s245 = scalar_lea.vmem %s2, %s244
      %s246 = smul.u32 2, %s20
      %v247 = vld [vmem:[%s222] sm:$0xff]
      %v248 = vld [vmem:[%s231] sm:$0x3]
      %v250 = vperm.slane %v248, 0
      %v251 = vperm.slane %v248, 1
      %v252 = vrot.slane %v251, 4
      %vm253 = vcmask 1043456
      %v254 = vsel %vm253, %v250, %v252
      %v256 = vmul.f32 %v247, %v254
      %257 = vst [vmem:[%s245] sm:$0xff] %v256
      %s258 = smul.u32 2, %s20
      %p259 = scmp.lt.s32.totalorder %s18, 1
      %s260 = scalar_select %p259, %s18, 1
      %p261 = scmp.lt.s32.totalorder %s19, 0
      %s262 = scalar_select %p261, %s19, 0
      %p263 = scmp.lt.s32.totalorder %s258, 1
      %s264 = scalar_select %p263, %s258, 1
      %s265 = smul.addr %s262, 2
      %s266 = sadd.s32 %s264, %s265
      %s267 = smul.addr %s260, 2
      %s268 = sadd.s32 %s266, %s267
      %s269 = smul.addr %s268, 4
      %s270 = scalar_lea.vmem %s2, %s269
      // Predicated region
      $region29: #{spatial_attention.5} parent=27 // pred_check
        %p271 = pneg %p112
      $region30: #{spatial_attention.5} parent=27 // pred_check_branch
        %273 = sbr.rel (%p271) target = $region32
      $region31: #{spatial_attention.5} parent=27 // pred_region
        %s274 = smul.u32 2, %s20
      $region32: #{spatial_attention.5} parent=27 // pred_fallthru
        _
    $region28: #{spatial_attention.5} parent=5 // pred_fallthru
      _
    %p275 = scmp.le.s32.totalorder 2, %s8
    // Predicated region
    $region33: #{spatial_attention.5} parent=5 // pred_check
      %p276 = pneg %p275
    $region34: #{spatial_attention.5} parent=5 // pred_check_branch
      %278 = sbr.rel (%p276) target = $region36
    $region35: #{spatial_attention.5} parent=5 // pred_region
      %s279 = ssub.s32 %s8, 2
      // Predicated region
      $region37: #{spatial_attention.5} parent=35 // pred_check
        %p280 = pneg %p118
      $region38: #{spatial_attention.5} parent=35 // pred_check_branch
        %282 = sbr.rel (%p280) target = $region40
      $region39: #{spatial_attention.5} parent=35 // pred_region
        %s283 = smul.u32 2, %s23
        %p284 = scmp.lt.s32.totalorder %s21, 1
        %s285 = scalar_select %p284, %s21, 1
        %p286 = scmp.lt.s32.totalorder %s22, 0
        %s287 = scalar_select %p286, %s22, 0
        %p288 = scmp.lt.s32.totalorder %s283, 1
        %s289 = scalar_select %p288, %s283, 1
        %s290 = smul.addr %s287, 2
        %s291 = sadd.s32 %s289, %s290
        %s292 = smul.addr %s285, 2
        %s293 = sadd.s32 %s291, %s292
        %s294 = smul.addr %s293, 4
        %s295 = scalar_lea.vmem %s2, %s294
      $region40: #{spatial_attention.5} parent=35 // pred_fallthru
        _
    $region36: #{spatial_attention.5} parent=5 // pred_fallthru
      _
  $region6: #{spatial_attention.5} parent=0 // loop_footer
    %s12 = sadd.s32 1, %s8
  $region7: #{spatial_attention.5} parent=0 // loop_footer_branch
    %7 = sbr.rel target = $region3
  $region8: #{spatial_attention.5} parent=0 // loop_exit
    _

// kernel: spatial_attention.4
$region0: #{spatial_attention.4}
  #allocation0 [shape = 'u32[]', space=smem, size = 0x4, offset = 0x4, fixed_abs, tag = 'smem constant byte address 0x4 - core index']
  #allocation1 [shape = 'u32[72,128]{1,0:T(1,128)}', space=vmem, size = 0x9000, scoped, tag = 'internal scratch']
  #allocation2 [shape = 'f32[2,22,22]{2,1,0:T(8,128)}', space=vmem, size = 0x6000, scoped, tag = 'scratch operand']
  %s0 = inlined_call_operand.vmem [shape: f32[98], index: 0, kind: input, shape index: {}]
  %s1 = inlined_call_operand.vmem [shape: f32[2,2,16,16], index: 1, kind: input, shape index: {}]
  %s2 = inlined_call_operand.vmem [shape: f32[2,16,16], index: 2, kind: output, shape index: {}]
  %s3 = sld [smem:[#allocation0]]
  $region45: #{spatial_attention.4} parent=0
    _
  %s5 = ssub.s32 1, %s3
  %s6 = scalar_select 0, %s5, %s3
  $region1: #{spatial_attention.4} parent=0
    #allocation3 [shape = 'u8[512]{0}', space=smem, size = 0x200, scoped, tag = 'input window, operand 0, single buffered']
    #allocation4 [shape = 's32[2]{0}', space=sflag, size = 0x8, scoped, tag = 'scoped memory for spatial_attention.4']
    %7 = vsyncpa [#allocation4], 0
    loop: start=0, step=1, limit=4
    $region2: #{spatial_attention.4} parent=1 // loop_pre_header
      _
    $region3: #{spatial_attention.4} parent=1 // loop_header
      %s9 = sphi 0, %s13
      %p10 = scmp.ge.s32.totalorder %s9, 4
      %s17 = sphi 0, %s17
      %s19 = sphi 0, %s17
      %s20 = sphi 0, %s19
      %s34 = sphi 0, %s20
      %s40 = sphi 0, %s42
      %s43 = sphi 0, %s40
      %s44 = sphi 0, %s43
      %s60 = sphi 0, %s44
      %s66 = sphi 0, %s68
      %s69 = sphi 0, %s66
      %s70 = sphi 0, %s69
      %s86 = sphi 0, %s70
    $region4: #{spatial_attention.4} parent=1 // loop_header_branch
      %12 = sbr.rel (%p10) target = $region8
    $region5: #{spatial_attention.4} parent=1 // loop_body
      %s14 = ssub.s32 %s9, 1
      %s15 = ssub.s32 %s9, 2
      %s16 = sadd.s32 %s9, 1
      %s18 = sadd.s32 %s17, 1
      %p21 = scmp.eq.s32.totalorder %s9, 1
      %p22 = scmp.ne.s32.totalorder %s17, %s19
      %p23 = scmp.eq.s32.totalorder %s9, 0
      %p24 = por %p22, %p23
      %p25 = scmp.ne.s32.totalorder %s17, %s19
      %p26 = scmp.eq.s32.totalorder %s14, 1
      %p27 = por %p25, %p26
      %p28 = scmp.ne.s32.totalorder %s19, %s20
      %p29 = scmp.eq.s32.totalorder %s14, 0
      %p30 = por %p28, %p29
      %p31 = scmp.ne.s32.totalorder %s19, %s20
      %p32 = scmp.eq.s32.totalorder %s15, 1
      %p33 = por %p31, %p32
      %p35 = scmp.ne.s32.totalorder %s20, %s34
      %p36 = scmp.eq.s32.totalorder %s15, 0
      %p37 = por %p35, %p36
      %s38 = ssub.s32 %s9, %s16
      %p39 = scmp.eq.s32.totalorder %s38, 0
      %s41 = sadd.s32 %s40, 1
      %s42 = scalar_select %p39, %s40, %s41
      %p45 = pneg %p39
      %p46 = scmp.eq.s32.totalorder %s9, 1
      %p47 = por %p45, %p46
      %p48 = scmp.ne.s32.totalorder %s40, %s43
      %p49 = scmp.eq.s32.totalorder %s9, 0
      %p50 = por %p48, %p49
      %p51 = scmp.ne.s32.totalorder %s40, %s43
      %p52 = scmp.eq.s32.totalorder %s14, 1
      %p53 = por %p51, %p52
      %p54 = scmp.ne.s32.totalorder %s43, %s44
      %p55 = scmp.eq.s32.totalorder %s14, 0
      %p56 = por %p54, %p55
      %p57 = scmp.ne.s32.totalorder %s43, %s44
      %p58 = scmp.eq.s32.totalorder %s15, 1
      %p59 = por %p57, %p58
      %p61 = scmp.ne.s32.totalorder %s44, %s60
      %p62 = scmp.eq.s32.totalorder %s15, 0
      %p63 = por %p61, %p62
      %s64 = ssub.s32 %s9, %s16
      %p65 = scmp.eq.s32.totalorder %s64, 0
      %s67 = sadd.s32 %s66, 1
      %s68 = scalar_select %p65, %s66, %s67
      %p71 = pneg %p65
      %p72 = scmp.eq.s32.totalorder %s9, 1
      %p73 = por %p71, %p72
      %p74 = scmp.ne.s32.totalorder %s66, %s69
      %p75 = scmp.eq.s32.totalorder %s9, 0
      %p76 = por %p74, %p75
      %p77 = scmp.ne.s32.totalorder %s66, %s69
      %p78 = scmp.eq.s32.totalorder %s14, 1
      %p79 = por %p77, %p78
      %p80 = scmp.ne.s32.totalorder %s69, %s70
      %p81 = scmp.eq.s32.totalorder %s14, 0
      %p82 = por %p80, %p81
      %p83 = scmp.ne.s32.totalorder %s69, %s70
      %p84 = scmp.eq.s32.totalorder %s15, 1
      %p85 = por %p83, %p84
      %p87 = scmp.ne.s32.totalorder %s70, %s86
      %p88 = scmp.eq.s32.totalorder %s15, 0
      %p89 = por %p87, %p88
      %p90 = scmp.le.s32.totalorder 1, %s9
      %p91 = scmp.lt.s32.totalorder %s9, 3
      %p92 = pnand %p90, %p91
      %p93 = pneg %p92
      // Predicated region
      $region9: #{spatial_attention.4} parent=5 // pred_check
        _
      $region10: #{spatial_attention.4} parent=5 // pred_check_branch
        %95 = sbr.rel (%p92) target = $region12
      $region11: #{spatial_attention.4} parent=5 // pred_region
        %s96 = ssub.s32 %s9, 1
        // Predicated region
        $region13: #{spatial_attention.4} parent=11 // pred_check
          %p97 = pneg %p30
        $region14: #{spatial_attention.4} parent=11 // pred_check_branch
          %99 = sbr.rel (%p97) target = $region16
        $region15: #{spatial_attention.4} parent=11 // pred_region
          %101 = vsyncadd [#allocation4], 0
          %s103 = sshll.u32 %s0, 4
          %s104 = int_to_ptr.vmem [resolvable:$true] %s103
          %106 = dma.vmem_to_smem %s104, 16, [#allocation3], [#allocation4]
        $region16: #{spatial_attention.4} parent=11 // pred_fallthru
          _
      $region12: #{spatial_attention.4} parent=5 // pred_fallthru
        _
      %p107 = scmp.lt.s32.totalorder %s9, 2
      // Predicated region
      $region17: #{spatial_attention.4} parent=5 // pred_check
        %p108 = pneg %p107
      $region18: #{spatial_attention.4} parent=5 // pred_check_branch
        %110 = sbr.rel (%p108) target = $region20
      $region19: #{spatial_attention.4} parent=5 // pred_region
        // Predicated region
        $region21: #{spatial_attention.4} parent=19 // pred_check
          %p111 = pneg %p50
        $region22: #{spatial_attention.4} parent=19 // pred_check_branch
          %113 = sbr.rel (%p111) target = $region24
        $region23: #{spatial_attention.4} parent=19 // pred_region
          %p114 = scmp.lt.s32.totalorder %s9, 1
          %s115 = scalar_select %p114, %s9, 1
          %s116 = smul.addr %s115, 4
          %s117 = smul.addr %s116, 8
          %s118 = scalar_lea.vmem %s1, %s117
        $region24: #{spatial_attention.4} parent=19 // pred_fallthru
          _
      $region20: #{spatial_attention.4} parent=5 // pred_fallthru
        _
      %p119 = scmp.le.s32.totalorder 1, %s9
      %p120 = scmp.lt.s32.totalorder %s9, 3
      %p121 = pnand %p119, %p120
      %p122 = pneg %p121
      // Predicated region
      $region25: #{spatial_attention.4} parent=5 // pred_check
        _
      $region26: #{spatial_attention.4} parent=5 // pred_check_branch
        %124 = sbr.rel (%p121) target = $region28
      $region27: #{spatial_attention.4} parent=5 // pred_region
        %s125 = ssub.s32 %s9, 1
        // Predicated region
        $region29: #{spatial_attention.4} parent=27 // pred_check
          %p126 = pneg %p30
        $region30: #{spatial_attention.4} parent=27 // pred_check_branch
          %128 = sbr.rel (%p126) target = $region32
        $region31: #{spatial_attention.4} parent=27 // pred_region
          %130 = dma.done [#allocation4], 16
        $region32: #{spatial_attention.4} parent=27 // pred_fallthru
          _
        %131 = sfence
        %p132 = pneg %p30
        %p133 = pneg %p27
        %p134 = scmp.lt.s32.totalorder %s14, 1
        %s135 = scalar_select %p134, %s14, 1
        %s136 = smul.addr %s135, 4
        %s137 = smul.addr %s136, 8
        %s138 = scalar_lea.vmem %s1, %s137
        %p139 = pneg %p56
        %p140 = pneg %p53
        %p141 = pneg %p82
        %p142 = pneg %p79
        %p143 = scmp.lt.s32.totalorder %s14, 1
        %s144 = scalar_select %p143, %s14, 1
        %s145 = smul.addr %s144, 2
        %s146 = smul.addr %s145, 8
        %s147 = scalar_lea.vmem %s2, %s146
        %p148 = scmp.lt.s32.totalorder %s14, 1
        %s149 = scalar_select %p148, %s14, 1
        %s150 = smul.addr %s149, 4
        %s151 = smul.addr %s150, 8
        %s152 = scalar_lea.vmem %s1, %s151
        %p153 = scmp.lt.s32.totalorder %s14, 1
        %s154 = scalar_select %p153, %s14, 1
        %s155 = smul.addr %s154, 2
        %s156 = smul.addr %s155, 8
        %s157 = scalar_lea.vmem %s2, %s156
        %vm158 = vcmask 179200
        %159 = vst.msk [vmem:[#allocation2] sm:$0xff] %vm158, 0.0
        %160 = vst.msk [vmem:[#allocation2 + $0x8] sm:$0xff] %vm158, 0.0
        %vm161 = vcmask 177152
        %162 = vst.msk [vmem:[#allocation2 + $0x10] sm:$0x3f] %vm161, 0.0
        %163 = vst.msk [vmem:[#allocation2 + $0x18] sm:$0xff] %vm158, 0.0
        %164 = vst.msk [vmem:[#allocation2 + $0x20] sm:$0xff] %vm158, 0.0
        %165 = vst.msk [vmem:[#allocation2 + $0x28] sm:$0x3f] %vm161, 0.0
        %v166 = vld [vmem:[%s152] sm:$0xff]
        %v167 = vld [vmem:[%s152 + $0x8] sm:$0xff]
        %170 = vrot.lane.b32.xlu0 %v166, 3
        %v171 = vpop.permute.xlu0 %170
        %172 = vrot.lane.b32.xlu0 %v167, 3
        %v173 = vpop.permute.xlu0 %172
        %vm176 = vcmask 154648
        %177 = vst.msk [vmem:[#allocation2 + $0x3] sm:$0xff] %vm176, %v171
        %178 = vst.msk [vmem:[#allocation2 + $0xb] sm:$0xff] %vm176, %v173
        %s179 = scalar_lea.vmem %s152, 16
        %v180 = vld [vmem:[%s179] sm:$0xff]
        %v181 = vld [vmem:[%s179 + $0x8] sm:$0xff]
        %184 = vrot.lane.b32.xlu0 %v180, 3
        %v185 = vpop.permute.xlu0 %184
        %186 = vrot.lane.b32.xlu0 %v181, 3
        %v187 = vpop.permute.xlu0 %186
        %s190 = scalar_lea.vmem [#allocation2], 24
        %191 = vst.msk [vmem:[%s190 + $0x3] sm:$0xff] %vm176, %v185
        %192 = vst.msk [vmem:[%s190 + $0xb] sm:$0xff] %vm176, %v187
        %v193 = vld [vmem:[#allocation2] sm:$0xff]
        %v194 = vld [vmem:[#allocation2 + $0x8] sm:$0xff]
        %v195 = vld [vmem:[#allocation2 + $0x10] sm:$0x3f]
        %s196 = sld [smem:[#allocation3]]
        %v197 = vstv %s196
        %v198 = vmul.f32 %v197, %v193
        %v199 = vmul.f32 %v197, %v194
        %v200 = vadd.f32 %v198, 0.0
        %v201 = vadd.f32 %v199, 0.0
        %s202 = sld [smem:[#allocation3 + $0x7]]
        %v203 = vstv %s202
        %v204 = vmul.f32 %v203, %v193
        %v205 = vmul.f32 %v203, %v194
        %v206 = vmul.f32 %v203, %v195
        %vm210 = vcmask 1046528
        %v211 = vrot.slane %v204, 1
        %v212 = vrot.slane %v205, 1
        %v213 = vsel %vm210, %v211, %v212
        %v214 = vrot.slane %v206, 1
        %v215 = vsel %vm210, %v212, %v214
        %v218 = vadd.f32 %v200, %v213
        %v219 = vadd.f32 %v201, %v215
        %s220 = sld [smem:[#allocation3 + $0xe]]
        %v221 = vstv %s220
        %v222 = vmul.f32 %v221, %v193
        %v223 = vmul.f32 %v221, %v194
        %v224 = vmul.f32 %v221, %v195
        %vm228 = vcmask 1045504
        %v229 = vrot.slane %v222, 2
        %v230 = vrot.slane %v223, 2
        %v231 = vsel %vm228, %v229, %v230
        %v232 = vrot.slane %v224, 2
        %v233 = vsel %vm228, %v230, %v232
        %v236 = vadd.f32 %v218, %v231
        %v237 = vadd.f32 %v219, %v233
        %s238 = sld [smem:[#allocation3 + $0x15]]
        %v239 = vstv %s238
        %v240 = vmul.f32 %v239, %v193
        %v241 = vmul.f32 %v239, %v194
        %v242 = vmul.f32 %v239, %v195
        %vm246 = vcmask 1044480
        %v247 = vrot.slane %v240, 3
        %v248 = vrot.slane %v241, 3
        %v249 = vsel %vm246, %v247, %v248
        %v250 = vrot.slane %v242, 3
        %v251 = vsel %vm246, %v248, %v250
        %v254 = vadd.f32 %v236, %v249
        %v255 = vadd.f32 %v237, %v251
        %s256 = sld [smem:[#allocation3 + $0x1c]]
        %v257 = vstv %s256
        %v258 = vmul.f32 %v257, %v193
        %v259 = vmul.f32 %v257, %v194
        %v260 = vmul.f32 %v257, %v195
        %vm264 = vcmask 1043456
        %v265 = vrot.slane %v258, 4
        %v266 = vrot.slane %v259, 4
        %v267 = vsel %vm264, %v265, %v266
        %v268 = vrot.slane %v260, 4
        %v269 = vsel %vm264, %v266, %v268
        %v272 = vadd.f32 %v254, %v267
        %v273 = vadd.f32 %v255, %v269
        %s274 = sld [smem:[#allocation3 + $0x23]]
        %v275 = vstv %s274
        %v276 = vmul.f32 %v275, %v193
        %v277 = vmul.f32 %v275, %v194
        %v278 = vmul.f32 %v275, %v195
        %vm282 = vcmask 1042432
        %v283 = vrot.slane %v276, 5
        %v284 = vrot.slane %v277, 5
        %v285 = vsel %vm282, %v283, %v284
        %v286 = vrot.slane %v278, 5
        %v287 = vsel %vm282, %v284, %v286
        %v290 = vadd.f32 %v272, %v285
        %v291 = vadd.f32 %v273, %v287
        %s292 = sld [smem:[#allocation3 + $0x2a]]
        %v293 = vstv %s292
        %v294 = vmul.f32 %v293, %v193
        %v295 = vmul.f32 %v293, %v194
        %v296 = vmul.f32 %v293, %v195
        %vm300 = vcmask 1041408
        %v301 = vrot.slane %v294, 6
        %v302 = vrot.slane %v295, 6
        %v303 = vsel %vm300, %v301, %v302
        %v304 = vrot.slane %v296, 6
        %v305 = vsel %vm300, %v302, %v304
        %v308 = vadd.f32 %v290, %v303
        %v309 = vadd.f32 %v291, %v305
        %s310 = sld [smem:[#allocation3 + $0x1]]
        %v311 = vstv %s310
        %v312 = vmul.f32 %v311, %v193
        %v313 = vmul.f32 %v311, %v194
        %316 = vrot.lane.b32.xlu0 %v312, 127
        %v317 = vpop.permute.xlu0 %316
        %318 = vrot.lane.b32.xlu0 %v313, 127
        %v319 = vpop.permute.xlu0 %318
        %v322 = vadd.f32 %v308, %v317
        %v323 = vadd.f32 %v309, %v319
        %s324 = sld [smem:[#allocation3 + $0x8]]
        %v325 = vstv %s324
        %v326 = vmul.f32 %v325, %v193
        %v327 = vmul.f32 %v325, %v194
        %v328 = vmul.f32 %v325, %v195
        %v332 = vrot.slane %v326, 1
        %v333 = vrot.slane %v327, 1
        %v334 = vsel %vm210, %v332, %v333
        %v335 = vrot.slane %v328, 1
        %v336 = vsel %vm210, %v333, %v335
        %337 = vrot.lane.b32.xlu0 %v334, 127
        %v338 = vpop.permute.xlu0 %337
        %339 = vrot.lane.b32.xlu0 %v336, 127
        %v340 = vpop.permute.xlu0 %339
        %v343 = vadd.f32 %v322, %v338
        %v344 = vadd.f32 %v323, %v340
        %s345 = sld [smem:[#allocation3 + $0xf]]
        %v346 = vstv %s345
        %v347 = vmul.f32 %v346, %v193
        %v348 = vmul.f32 %v346, %v194
        %v349 = vmul.f32 %v346, %v195
        %v353 = vrot.slane %v347, 2
        %v354 = vrot.slane %v348, 2
        %v355 = vsel %vm228, %v353, %v354
        %v356 = vrot.slane %v349, 2
        %v357 = vsel %vm228, %v354, %v356
        %358 = vrot.lane.b32.xlu0 %v355, 127
        %v359 = vpop.permute.xlu0 %358
        %360 = vrot.lane.b32.xlu0 %v357, 127
        %v361 = vpop.permute.xlu0 %360
        %v364 = vadd.f32 %v343, %v359
        %v365 = vadd.f32 %v344, %v361
        %s366 = sld [smem:[#allocation3 + $0x16]]
        %v367 = vstv %s366
        %v368 = vmul.f32 %v367, %v193
        %v369 = vmul.f32 %v367, %v194
        %v370 = vmul.f32 %v367, %v195
        %v374 = vrot.slane %v368, 3
        %v375 = vrot.slane %v369, 3
        %v376 = vsel %vm246, %v374, %v375
        %v377 = vrot.slane %v370, 3
        %v378 = vsel %vm246, %v375, %v377
        %379 = vrot.lane.b32.xlu0 %v376, 127
        %v380 = vpop.permute.xlu0 %379
        %381 = vrot.lane.b32.xlu0 %v378, 127
        %v382 = vpop.permute.xlu0 %381
        %v385 = vadd.f32 %v364, %v380
        %v386 = vadd.f32 %v365, %v382
        %s387 = sld [smem:[#allocation3 + $0x1d]]
        %v388 = vstv %s387
        %v389 = vmul.f32 %v388, %v193
        %v390 = vmul.f32 %v388, %v194
        %v391 = vmul.f32 %v388, %v195
        %v395 = vrot.slane %v389, 4
        %v396 = vrot.slane %v390, 4
        %v397 = vsel %vm264, %v395, %v396
        %v398 = vrot.slane %v391, 4
        %v399 = vsel %vm264, %v396, %v398
        %400 = vrot.lane.b32.xlu0 %v397, 127
        %v401 = vpop.permute.xlu0 %400
        %402 = vrot.lane.b32.xlu0 %v399, 127
        %v403 = vpop.permute.xlu0 %402
        %v406 = vadd.f32 %v385, %v401
        %v407 = vadd.f32 %v386, %v403
        %s408 = sld [smem:[#allocation3 + $0x24]]
        %v409 = vstv %s408
        %v410 = vmul.f32 %v409, %v193
        %v411 = vmul.f32 %v409, %v194
        %v412 = vmul.f32 %v409, %v195
        %v416 = vrot.slane %v410, 5
        %v417 = vrot.slane %v411, 5
        %v418 = vsel %vm282, %v416, %v417
        %v419 = vrot.slane %v412, 5
        %v420 = vsel %vm282, %v417, %v419
        %421 = vrot.lane.b32.xlu0 %v418, 127
        %v422 = vpop.permute.xlu0 %421
        %423 = vrot.lane.b32.xlu0 %v420, 127
        %v424 = vpop.permute.xlu0 %423
        %v427 = vadd.f32 %v406, %v422
        %v428 = vadd.f32 %v407, %v424
        %s429 = sld [smem:[#allocation3 + $0x2b]]
        %v430 = vstv %s429
        %v431 = vmul.f32 %v430, %v193
        %v432 = vmul.f32 %v430, %v194
        %v433 = vmul.f32 %v430, %v195
        %v437 = vrot.slane %v431, 6
        %v438 = vrot.slane %v432, 6
        %v439 = vsel %vm300, %v437, %v438
        %v440 = vrot.slane %v433, 6
        %v441 = vsel %vm300, %v438, %v440
        %442 = vrot.lane.b32.xlu0 %v439, 127
        %v443 = vpop.permute.xlu0 %442
        %444 = vrot.lane.b32.xlu0 %v441, 127
        %v445 = vpop.permute.xlu0 %444
        %v448 = vadd.f32 %v427, %v443
        %v449 = vadd.f32 %v428, %v445
        %s450 = sld [smem:[#allocation3 + $0x2]]
        %v451 = vstv %s450
        %v452 = vmul.f32 %v451, %v193
        %v453 = vmul.f32 %v451, %v194
        %456 = vrot.lane.b32.xlu0 %v452, 126
        %v457 = vpop.permute.xlu0 %456
        %458 = vrot.lane.b32.xlu0 %v453, 126
        %v459 = vpop.permute.xlu0 %458
        %v462 = vadd.f32 %v448, %v457
        %v463 = vadd.f32 %v449, %v459
        %s464 = sld [smem:[#allocation3 + $0x9]]
        %v465 = vstv %s464
        %v466 = vmul.f32 %v465, %v193
        %v467 = vmul.f32 %v465, %v194
        %v468 = vmul.f32 %v465, %v195
        %v472 = vrot.slane %v466, 1
        %v473 = vrot.slane %v467, 1
        %v474 = vsel %vm210, %v472, %v473
        %v475 = vrot.slane %v468, 1
        %v476 = vsel %vm210, %v473, %v475
        %477 = vrot.lane.b32.xlu0 %v474, 126
        %v478 = vpop.permute.xlu0 %477
        %479 = vrot.lane.b32.xlu0 %v476, 126
        %v480 = vpop.permute.xlu0 %479
        %v483 = vadd.f32 %v462, %v478
        %v484 = vadd.f32 %v463, %v480
        %s485 = sld [smem:[#allocation3 + $0x10]]
        %v486 = vstv %s485
        %v487 = vmul.f32 %v486, %v193
        %v488 = vmul.f32 %v486, %v194
        %v489 = vmul.f32 %v486, %v195
        %v493 = vrot.slane %v487, 2
        %v494 = vrot.slane %v488, 2
        %v495 = vsel %vm228, %v493, %v494
        %v496 = vrot.slane %v489, 2
        %v497 = vsel %vm228, %v494, %v496
        %498 = vrot.lane.b32.xlu0 %v495, 126
        %v499 = vpop.permute.xlu0 %498
        %500 = vrot.lane.b32.xlu0 %v497, 126
        %v501 = vpop.permute.xlu0 %500
        %v504 = vadd.f32 %v483, %v499
        %v505 = vadd.f32 %v484, %v501
        %s506 = sld [smem:[#allocation3 + $0x17]]
        %v507 = vstv %s506
        %v508 = vmul.f32 %v507, %v193
        %v509 = vmul.f32 %v507, %v194
        %v510 = vmul.f32 %v507, %v195
        %v514 = vrot.slane %v508, 3
        %v515 = vrot.slane %v509, 3
        %v516 = vsel %vm246, %v514, %v515
        %v517 = vrot.slane %v510, 3
        %v518 = vsel %vm246, %v515, %v517
        %519 = vrot.lane.b32.xlu0 %v516, 126
        %v520 = vpop.permute.xlu0 %519
        %521 = vrot.lane.b32.xlu0 %v518, 126
        %v522 = vpop.permute.xlu0 %521
        %v525 = vadd.f32 %v504, %v520
        %v526 = vadd.f32 %v505, %v522
        %s527 = sld [smem:[#allocation3 + $0x1e]]
        %v528 = vstv %s527
        %v529 = vmul.f32 %v528, %v193
        %v530 = vmul.f32 %v528, %v194
        %v531 = vmul.f32 %v528, %v195
        %v535 = vrot.slane %v529, 4
        %v536 = vrot.slane %v530, 4
        %v537 = vsel %vm264, %v535, %v536
        %v538 = vrot.slane %v531, 4
        %v539 = vsel %vm264, %v536, %v538
        %540 = vrot.lane.b32.xlu0 %v537, 126
        %v541 = vpop.permute.xlu0 %540
        %542 = vrot.lane.b32.xlu0 %v539, 126
        %v543 = vpop.permute.xlu0 %542
        %v546 = vadd.f32 %v525, %v541
        %v547 = vadd.f32 %v526, %v543
        %s548 = sld [smem:[#allocation3 + $0x25]]
        %v549 = vstv %s548
        %v550 = vmul.f32 %v549, %v193
        %v551 = vmul.f32 %v549, %v194
        %v552 = vmul.f32 %v549, %v195
        %v556 = vrot.slane %v550, 5
        %v557 = vrot.slane %v551, 5
        %v558 = vsel %vm282, %v556, %v557
        %v559 = vrot.slane %v552, 5
        %v560 = vsel %vm282, %v557, %v559
        %561 = vrot.lane.b32.xlu0 %v558, 126
        %v562 = vpop.permute.xlu0 %561
        %563 = vrot.lane.b32.xlu0 %v560, 126
        %v564 = vpop.permute.xlu0 %563
        %v567 = vadd.f32 %v546, %v562
        %v568 = vadd.f32 %v547, %v564
        %s569 = sld [smem:[#allocation3 + $0x2c]]
        %v570 = vstv %s569
        %v571 = vmul.f32 %v570, %v193
        %v572 = vmul.f32 %v570, %v194
        %v573 = vmul.f32 %v570, %v195
        %v577 = vrot.slane %v571, 6
        %v578 = vrot.slane %v572, 6
        %v579 = vsel %vm300, %v577, %v578
        %v580 = vrot.slane %v573, 6
        %v581 = vsel %vm300, %v578, %v580
        %582 = vrot.lane.b32.xlu0 %v579, 126
        %v583 = vpop.permute.xlu0 %582
        %584 = vrot.lane.b32.xlu0 %v581, 126
        %v585 = vpop.permute.xlu0 %584
        %v588 = vadd.f32 %v567, %v583
        %v589 = vadd.f32 %v568, %v585
        %s590 = sld [smem:[#allocation3 + $0x3]]
        %v591 = vstv %s590
        %v592 = vmul.f32 %v591, %v193
        %v593 = vmul.f32 %v591, %v194
        %596 = vrot.lane.b32.xlu0 %v592, 125
        %v597 = vpop.permute.xlu0 %596
        %598 = vrot.lane.b32.xlu0 %v593, 125
        %v599 = vpop.permute.xlu0 %598
        %v602 = vadd.f32 %v588, %v597
        %v603 = vadd.f32 %v589, %v599
        %s604 = sld [smem:[#allocation3 + $0xa]]
        %v605 = vstv %s604
        %v606 = vmul.f32 %v605, %v193
        %v607 = vmul.f32 %v605, %v194
        %v608 = vmul.f32 %v605, %v195
        %v612 = vrot.slane %v606, 1
        %v613 = vrot.slane %v607, 1
        %v614 = vsel %vm210, %v612, %v613
        %v615 = vrot.slane %v608, 1
        %v616 = vsel %vm210, %v613, %v615
        %617 = vrot.lane.b32.xlu0 %v614, 125
        %v618 = vpop.permute.xlu0 %617
        %619 = vrot.lane.b32.xlu0 %v616, 125
        %v620 = vpop.permute.xlu0 %619
        %v623 = vadd.f32 %v602, %v618
        %v624 = vadd.f32 %v603, %v620
        %s625 = sld [smem:[#allocation3 + $0x11]]
        %v626 = vstv %s625
        %v627 = vmul.f32 %v626, %v193
        %v628 = vmul.f32 %v626, %v194
        %v629 = vmul.f32 %v626, %v195
        %v633 = vrot.slane %v627, 2
        %v634 = vrot.slane %v628, 2
        %v635 = vsel %vm228, %v633, %v634
        %v636 = vrot.slane %v629, 2
        %v637 = vsel %vm228, %v634, %v636
        %638 = vrot.lane.b32.xlu0 %v635, 125
        %v639 = vpop.permute.xlu0 %638
        %640 = vrot.lane.b32.xlu0 %v637, 125
        %v641 = vpop.permute.xlu0 %640
        %v644 = vadd.f32 %v623, %v639
        %v645 = vadd.f32 %v624, %v641
        %s646 = sld [smem:[#allocation3 + $0x18]]
        %v647 = vstv %s646
        %v648 = vmul.f32 %v647, %v193
        %v649 = vmul.f32 %v647, %v194
        %v650 = vmul.f32 %v647, %v195
        %v654 = vrot.slane %v648, 3
        %v655 = vrot.slane %v649, 3
        %v656 = vsel %vm246, %v654, %v655
        %v657 = vrot.slane %v650, 3
        %v658 = vsel %vm246, %v655, %v657
        %659 = vrot.lane.b32.xlu0 %v656, 125
        %v660 = vpop.permute.xlu0 %659
        %661 = vrot.lane.b32.xlu0 %v658, 125
        %v662 = vpop.permute.xlu0 %661
        %v665 = vadd.f32 %v644, %v660
        %v666 = vadd.f32 %v645, %v662
        %s667 = sld [smem:[#allocation3 + $0x1f]]
        %v668 = vstv %s667
        %v669 = vmul.f32 %v668, %v193
        %v670 = vmul.f32 %v668, %v194
        %v671 = vmul.f32 %v668, %v195
        %v675 = vrot.slane %v669, 4
        %v676 = vrot.slane %v670, 4
        %v677 = vsel %vm264, %v675, %v676
        %v678 = vrot.slane %v671, 4
        %v679 = vsel %vm264, %v676, %v678
        %680 = vrot.lane.b32.xlu0 %v677, 125
        %v681 = vpop.permute.xlu0 %680
        %682 = vrot.lane.b32.xlu0 %v679, 125
        %v683 = vpop.permute.xlu0 %682
        %v686 = vadd.f32 %v665, %v681
        %v687 = vadd.f32 %v666, %v683
        %s688 = sld [smem:[#allocation3 + $0x26]]
        %v689 = vstv %s688
        %v690 = vmul.f32 %v689, %v193
        %v691 = vmul.f32 %v689, %v194
        %v692 = vmul.f32 %v689, %v195
        %v696 = vrot.slane %v690, 5
        %v697 = vrot.slane %v691, 5
        %v698 = vsel %vm282, %v696, %v697
        %v699 = vrot.slane %v692, 5
        %v700 = vsel %vm282, %v697, %v699
        %701 = vrot.lane.b32.xlu0 %v698, 125
        %v702 = vpop.permute.xlu0 %701
        %703 = vrot.lane.b32.xlu0 %v700, 125
        %v704 = vpop.permute.xlu0 %703
        %v707 = vadd.f32 %v686, %v702
        %v708 = vadd.f32 %v687, %v704
        %s709 = sld [smem:[#allocation3 + $0x2d]]
        %v710 = vstv %s709
        %v711 = vmul.f32 %v710, %v193
        %v712 = vmul.f32 %v710, %v194
        %v713 = vmul.f32 %v710, %v195
        %v717 = vrot.slane %v711, 6
        %v718 = vrot.slane %v712, 6
        %v719 = vsel %vm300, %v717, %v718
        %v720 = vrot.slane %v713, 6
        %v721 = vsel %vm300, %v718, %v720
        %722 = vrot.lane.b32.xlu0 %v719, 125
        %v723 = vpop.permute.xlu0 %722
        %724 = vrot.lane.b32.xlu0 %v721, 125
        %v725 = vpop.permute.xlu0 %724
        %v728 = vadd.f32 %v707, %v723
        %v729 = vadd.f32 %v708, %v725
        %s730 = sld [smem:[#allocation3 + $0x4]]
        %v731 = vstv %s730
        %v732 = vmul.f32 %v731, %v193
        %v733 = vmul.f32 %v731, %v194
        %736 = vrot.lane.b32.xlu0 %v732, 124
        %v737 = vpop.permute.xlu0 %736
        %738 = vrot.lane.b32.xlu0 %v733, 124
        %v739 = vpop.permute.xlu0 %738
        %v742 = vadd.f32 %v728, %v737
        %v743 = vadd.f32 %v729, %v739
        %s744 = sld [smem:[#allocation3 + $0xb]]
        %v745 = vstv %s744
        %v746 = vmul.f32 %v745, %v193
        %v747 = vmul.f32 %v745, %v194
        %v748 = vmul.f32 %v745, %v195
        %v752 = vrot.slane %v746, 1
        %v753 = vrot.slane %v747, 1
        %v754 = vsel %vm210, %v752, %v753
        %v755 = vrot.slane %v748, 1
        %v756 = vsel %vm210, %v753, %v755
        %757 = vrot.lane.b32.xlu0 %v754, 124
        %v758 = vpop.permute.xlu0 %757
        %759 = vrot.lane.b32.xlu0 %v756, 124
        %v760 = vpop.permute.xlu0 %759
        %v763 = vadd.f32 %v742, %v758
        %v764 = vadd.f32 %v743, %v760
        %s765 = sld [smem:[#allocation3 + $0x12]]
        %v766 = vstv %s765
        %v767 = vmul.f32 %v766, %v193
        %v768 = vmul.f32 %v766, %v194
        %v769 = vmul.f32 %v766, %v195
        %v773 = vrot.slane %v767, 2
        %v774 = vrot.slane %v768, 2
        %v775 = vsel %vm228, %v773, %v774
        %v776 = vrot.slane %v769, 2
        %v777 = vsel %vm228, %v774, %v776
        %778 = vrot.lane.b32.xlu0 %v775, 124
        %v779 = vpop.permute.xlu0 %778
        %780 = vrot.lane.b32.xlu0 %v777, 124
        %v781 = vpop.permute.xlu0 %780
        %v784 = vadd.f32 %v763, %v779
        %v785 = vadd.f32 %v764, %v781
        %s786 = sld [smem:[#allocation3 + $0x19]]
        %v787 = vstv %s786
        %v788 = vmul.f32 %v787, %v193
        %v789 = vmul.f32 %v787, %v194
        %v790 = vmul.f32 %v787, %v195
        %v794 = vrot.slane %v788, 3
        %v795 = vrot.slane %v789, 3
        %v796 = vsel %vm246, %v794, %v795
        %v797 = vrot.slane %v790, 3
        %v798 = vsel %vm246, %v795, %v797
        %799 = vrot.lane.b32.xlu0 %v796, 124
        %v800 = vpop.permute.xlu0 %799
        %801 = vrot.lane.b32.xlu0 %v798, 124
        %v802 = vpop.permute.xlu0 %801
        %v805 = vadd.f32 %v784, %v800
        %v806 = vadd.f32 %v785, %v802
        %s807 = sld [smem:[#allocation3 + $0x20]]
        %v808 = vstv %s807
        %v809 = vmul.f32 %v808, %v193
        %v810 = vmul.f32 %v808, %v194
        %v811 = vmul.f32 %v808, %v195
        %v815 = vrot.slane %v809, 4
        %v816 = vrot.slane %v810, 4
        %v817 = vsel %vm264, %v815, %v816
        %v818 = vrot.slane %v811, 4
        %v819 = vsel %vm264, %v816, %v818
        %820 = vrot.lane.b32.xlu0 %v817, 124
        %v821 = vpop.permute.xlu0 %820
        %822 = vrot.lane.b32.xlu0 %v819, 124
        %v823 = vpop.permute.xlu0 %822
        %v826 = vadd.f32 %v805, %v821
        %v827 = vadd.f32 %v806, %v823
        %s828 = sld [smem:[#allocation3 + $0x27]]
        %v829 = vstv %s828
        %v830 = vmul.f32 %v829, %v193
        %v831 = vmul.f32 %v829, %v194
        %v832 = vmul.f32 %v829, %v195
        %v836 = vrot.slane %v830, 5
        %v837 = vrot.slane %v831, 5
        %v838 = vsel %vm282, %v836, %v837
        %v839 = vrot.slane %v832, 5
        %v840 = vsel %vm282, %v837, %v839
        %841 = vrot.lane.b32.xlu0 %v838, 124
        %v842 = vpop.permute.xlu0 %841
        %843 = vrot.lane.b32.xlu0 %v840, 124
        %v844 = vpop.permute.xlu0 %843
        %v847 = vadd.f32 %v826, %v842
        %v848 = vadd.f32 %v827, %v844
        %s849 = sld [smem:[#allocation3 + $0x2e]]
        %v850 = vstv %s849
        %v851 = vmul.f32 %v850, %v193
        %v852 = vmul.f32 %v850, %v194
        %v853 = vmul.f32 %v850, %v195
        %v857 = vrot.slane %v851, 6
        %v858 = vrot.slane %v852, 6
        %v859 = vsel %vm300, %v857, %v858
        %v860 = vrot.slane %v853, 6
        %v861 = vsel %vm300, %v858, %v860
        %862 = vrot.lane.b32.xlu0 %v859, 124
        %v863 = vpop.permute.xlu0 %862
        %864 = vrot.lane.b32.xlu0 %v861, 124
        %v865 = vpop.permute.xlu0 %864
        %v868 = vadd.f32 %v847, %v863
        %v869 = vadd.f32 %v848, %v865
        %s870 = sld [smem:[#allocation3 + $0x5]]
        %v871 = vstv %s870
        %v872 = vmul.f32 %v871, %v193
        %v873 = vmul.f32 %v871, %v194
        %876 = vrot.lane.b32.xlu0 %v872, 123
        %v877 = vpop.permute.xlu0 %876
        %878 = vrot.lane.b32.xlu0 %v873, 123
        %v879 = vpop.permute.xlu0 %878
        %v882 = vadd.f32 %v868, %v877
        %v883 = vadd.f32 %v869, %v879
        %s884 = sld [smem:[#allocation3 + $0xc]]
        %v885 = vstv %s884
        %v886 = vmul.f32 %v885, %v193
        %v887 = vmul.f32 %v885, %v194
        %v888 = vmul.f32 %v885, %v195
        %v892 = vrot.slane %v886, 1
        %v893 = vrot.slane %v887, 1
        %v894 = vsel %vm210, %v892, %v893
        %v895 = vrot.slane %v888, 1
        %v896 = vsel %vm210, %v893, %v895
        %897 = vrot.lane.b32.xlu0 %v894, 123
        %v898 = vpop.permute.xlu0 %897
        %899 = vrot.lane.b32.xlu0 %v896, 123
        %v900 = vpop.permute.xlu0 %899
        %v903 = vadd.f32 %v882, %v898
        %v904 = vadd.f32 %v883, %v900
        %s905 = sld [smem:[#allocation3 + $0x13]]
        %v906 = vstv %s905
        %v907 = vmul.f32 %v906, %v193
        %v908 = vmul.f32 %v906, %v194
        %v909 = vmul.f32 %v906, %v195
        %v913 = vrot.slane %v907, 2
        %v914 = vrot.slane %v908, 2
        %v915 = vsel %vm228, %v913, %v914
        %v916 = vrot.slane %v909, 2
        %v917 = vsel %vm228, %v914, %v916
        %918 = vrot.lane.b32.xlu0 %v915, 123
        %v919 = vpop.permute.xlu0 %918
        %920 = vrot.lane.b32.xlu0 %v917, 123
        %v921 = vpop.permute.xlu0 %920
        %v924 = vadd.f32 %v903, %v919
        %v925 = vadd.f32 %v904, %v921
        %s926 = sld [smem:[#allocation3 + $0x1a]]
        %v927 = vstv %s926
        %v928 = vmul.f32 %v927, %v193
        %v929 = vmul.f32 %v927, %v194
        %v930 = vmul.f32 %v927, %v195
        %v934 = vrot.slane %v928, 3
        %v935 = vrot.slane %v929, 3
        %v936 = vsel %vm246, %v934, %v935
        %v937 = vrot.slane %v930, 3
        %v938 = vsel %vm246, %v935, %v937
        %939 = vrot.lane.b32.xlu0 %v936, 123
        %v940 = vpop.permute.xlu0 %939
        %941 = vrot.lane.b32.xlu0 %v938, 123
        %v942 = vpop.permute.xlu0 %941
        %v945 = vadd.f32 %v924, %v940
        %v946 = vadd.f32 %v925, %v942
        %s947 = sld [smem:[#allocation3 + $0x21]]
        %v948 = vstv %s947
        %v949 = vmul.f32 %v948, %v193
        %v950 = vmul.f32 %v948, %v194
        %v951 = vmul.f32 %v948, %v195
        %v955 = vrot.slane %v949, 4
        %v956 = vrot.slane %v950, 4
        %v957 = vsel %vm264, %v955, %v956
        %v958 = vrot.slane %v951, 4
        %v959 = vsel %vm264, %v956, %v958
        %960 = vrot.lane.b32.xlu0 %v957, 123
        %v961 = vpop.permute.xlu0 %960
        %962 = vrot.lane.b32.xlu0 %v959, 123
        %v963 = vpop.permute.xlu0 %962
        %v966 = vadd.f32 %v945, %v961
        %v967 = vadd.f32 %v946, %v963
        %s968 = sld [smem:[#allocation3 + $0x28]]
        %v969 = vstv %s968
        %v970 = vmul.f32 %v969, %v193
        %v971 = vmul.f32 %v969, %v194
        %v972 = vmul.f32 %v969, %v195
        %v976 = vrot.slane %v970, 5
        %v977 = vrot.slane %v971, 5
        %v978 = vsel %vm282, %v976, %v977
        %v979 = vrot.slane %v972, 5
        %v980 = vsel %vm282, %v977, %v979
        %981 = vrot.lane.b32.xlu0 %v978, 123
        %v982 = vpop.permute.xlu0 %981
        %983 = vrot.lane.b32.xlu0 %v980, 123
        %v984 = vpop.permute.xlu0 %983
        %v987 = vadd.f32 %v966, %v982
        %v988 = vadd.f32 %v967, %v984
        %s989 = sld [smem:[#allocation3 + $0x2f]]
        %v990 = vstv %s989
        %v991 = vmul.f32 %v990, %v193
        %v992 = vmul.f32 %v990, %v194
        %v993 = vmul.f32 %v990, %v195
        %v997 = vrot.slane %v991, 6
        %v998 = vrot.slane %v992, 6
        %v999 = vsel %vm300, %v997, %v998
        %v1000 = vrot.slane %v993, 6
        %v1001 = vsel %vm300, %v998, %v1000
        %1002 = vrot.lane.b32.xlu0 %v999, 123
        %v1003 = vpop.permute.xlu0 %1002
        %1004 = vrot.lane.b32.xlu0 %v1001, 123
        %v1005 = vpop.permute.xlu0 %1004
        %v1008 = vadd.f32 %v987, %v1003
        %v1009 = vadd.f32 %v988, %v1005
        %s1010 = sld [smem:[#allocation3 + $0x6]]
        %v1011 = vstv %s1010
        %v1012 = vmul.f32 %v1011, %v193
        %v1013 = vmul.f32 %v1011, %v194
        %1016 = vrot.lane.b32.xlu0 %v1012, 122
        %v1017 = vpop.permute.xlu0 %1016
        %1018 = vrot.lane.b32.xlu0 %v1013, 122
        %v1019 = vpop.permute.xlu0 %1018
        %v1022 = vadd.f32 %v1008, %v1017
        %v1023 = vadd.f32 %v1009, %v1019
        %s1024 = sld [smem:[#allocation3 + $0xd]]
        %v1025 = vstv %s1024
        %v1026 = vmul.f32 %v1025, %v193
        %v1027 = vmul.f32 %v1025, %v194
        %v1028 = vmul.f32 %v1025, %v195
        %v1032 = vrot.slane %v1026, 1
        %v1033 = vrot.slane %v1027, 1
        %v1034 = vsel %vm210, %v1032, %v1033
        %v1035 = vrot.slane %v1028, 1
        %v1036 = vsel %vm210, %v1033, %v1035
        %1037 = vrot.lane.b32.xlu0 %v1034, 122
        %v1038 = vpop.permute.xlu0 %1037
        %1039 = vrot.lane.b32.xlu0 %v1036, 122
        %v1040 = vpop.permute.xlu0 %1039
        %v1043 = vadd.f32 %v1022, %v1038
        %v1044 = vadd.f32 %v1023, %v1040
        %s1045 = sld [smem:[#allocation3 + $0x14]]
        %v1046 = vstv %s1045
        %v1047 = vmul.f32 %v1046, %v193
        %v1048 = vmul.f32 %v1046, %v194
        %v1049 = vmul.f32 %v1046, %v195
        %v1053 = vrot.slane %v1047, 2
        %v1054 = vrot.slane %v1048, 2
        %v1055 = vsel %vm228, %v1053, %v1054
        %v1056 = vrot.slane %v1049, 2
        %v1057 = vsel %vm228, %v1054, %v1056
        %1058 = vrot.lane.b32.xlu0 %v1055, 122
        %v1059 = vpop.permute.xlu0 %1058
        %1060 = vrot.lane.b32.xlu0 %v1057, 122
        %v1061 = vpop.permute.xlu0 %1060
        %v1064 = vadd.f32 %v1043, %v1059
        %v1065 = vadd.f32 %v1044, %v1061
        %s1066 = sld [smem:[#allocation3 + $0x1b]]
        %v1067 = vstv %s1066
        %v1068 = vmul.f32 %v1067, %v193
        %v1069 = vmul.f32 %v1067, %v194
        %v1070 = vmul.f32 %v1067, %v195
        %v1074 = vrot.slane %v1068, 3
        %v1075 = vrot.slane %v1069, 3
        %v1076 = vsel %vm246, %v1074, %v1075
        %v1077 = vrot.slane %v1070, 3
        %v1078 = vsel %vm246, %v1075, %v1077
        %1079 = vrot.lane.b32.xlu0 %v1076, 122
        %v1080 = vpop.permute.xlu0 %1079
        %1081 = vrot.lane.b32.xlu0 %v1078, 122
        %v1082 = vpop.permute.xlu0 %1081
        %v1085 = vadd.f32 %v1064, %v1080
        %v1086 = vadd.f32 %v1065, %v1082
        %s1087 = sld [smem:[#allocation3 + $0x22]]
        %v1088 = vstv %s1087
        %v1089 = vmul.f32 %v1088, %v193
        %v1090 = vmul.f32 %v1088, %v194
        %v1091 = vmul.f32 %v1088, %v195
        %v1095 = vrot.slane %v1089, 4
        %v1096 = vrot.slane %v1090, 4
        %v1097 = vsel %vm264, %v1095, %v1096
        %v1098 = vrot.slane %v1091, 4
        %v1099 = vsel %vm264, %v1096, %v1098
        %1100 = vrot.lane.b32.xlu0 %v1097, 122
        %v1101 = vpop.permute.xlu0 %1100
        %1102 = vrot.lane.b32.xlu0 %v1099, 122
        %v1103 = vpop.permute.xlu0 %1102
        %v1106 = vadd.f32 %v1085, %v1101
        %v1107 = vadd.f32 %v1086, %v1103
        %s1108 = sld [smem:[#allocation3 + $0x29]]
        %v1109 = vstv %s1108
        %v1110 = vmul.f32 %v1109, %v193
        %v1111 = vmul.f32 %v1109, %v194
        %v1112 = vmul.f32 %v1109, %v195
        %v1116 = vrot.slane %v1110, 5
        %v1117 = vrot.slane %v1111, 5
        %v1118 = vsel %vm282, %v1116, %v1117
        %v1119 = vrot.slane %v1112, 5
        %v1120 = vsel %vm282, %v1117, %v1119
        %1121 = vrot.lane.b32.xlu0 %v1118, 122
        %v1122 = vpop.permute.xlu0 %1121
        %1123 = vrot.lane.b32.xlu0 %v1120, 122
        %v1124 = vpop.permute.xlu0 %1123
        %v1127 = vadd.f32 %v1106, %v1122
        %v1128 = vadd.f32 %v1107, %v1124
        %s1129 = sld [smem:[#allocation3 + $0x30]]
        %v1130 = vstv %s1129
        %v1131 = vmul.f32 %v1130, %v193
        %v1132 = vmul.f32 %v1130, %v194
        %v1133 = vmul.f32 %v1130, %v195
        %v1137 = vrot.slane %v1131, 6
        %v1138 = vrot.slane %v1132, 6
        %v1139 = vsel %vm300, %v1137, %v1138
        %v1140 = vrot.slane %v1133, 6
        %v1141 = vsel %vm300, %v1138, %v1140
        %1142 = vrot.lane.b32.xlu0 %v1139, 122
        %v1143 = vpop.permute.xlu0 %1142
        %1144 = vrot.lane.b32.xlu0 %v1141, 122
        %v1145 = vpop.permute.xlu0 %1144
        %v1148 = vadd.f32 %v1127, %v1143
        %v1149 = vadd.f32 %v1128, %v1145
        %v1150 = vld [vmem:[%s190] sm:$0xff]
        %v1151 = vld [vmem:[%s190 + $0x8] sm:$0xff]
        %v1152 = vld [vmem:[%s190 + $0x10] sm:$0x3f]
        %s1153 = sld [smem:[#allocation3 + $0x31]]
        %v1154 = vstv %s1153
        %v1155 = vmul.f32 %v1154, %v1150
        %v1156 = vmul.f32 %v1154, %v1151
        %v1157 = vadd.f32 %v1148, %v1155
        %v1158 = vadd.f32 %v1149, %v1156
        %s1159 = sld [smem:[#allocation3 + $0x38]]
        %v1160 = vstv %s1159
        %v1161 = vmul.f32 %v1160, %v1150
        %v1162 = vmul.f32 %v1160, %v1151
        %v1163 = vmul.f32 %v1160, %v1152
        %v1167 = vrot.slane %v1161, 1
        %v1168 = vrot.slane %v1162, 1
        %v1169 = vsel %vm210, %v1167, %v1168
        %v1170 = vrot.slane %v1163, 1
        %v1171 = vsel %vm210, %v1168, %v1170
        %v1174 = vadd.f32 %v1157, %v1169
        %v1175 = vadd.f32 %v1158, %v1171
        %s1176 = sld [smem:[#allocation3 + $0x3f]]
        %v1177 = vstv %s1176
        %v1178 = vmul.f32 %v1177, %v1150
        %v1179 = vmul.f32 %v1177, %v1151
        %v1180 = vmul.f32 %v1177, %v1152
        %v1184 = vrot.slane %v1178, 2
        %v1185 = vrot.slane %v1179, 2
        %v1186 = vsel %vm228, %v1184, %v1185
        %v1187 = vrot.slane %v1180, 2
        %v1188 = vsel %vm228, %v1185, %v1187
        %v1191 = vadd.f32 %v1174, %v1186
        %v1192 = vadd.f32 %v1175, %v1188
        %s1193 = sld [smem:[#allocation3 + $0x46]]
        %v1194 = vstv %s1193
        %v1195 = vmul.f32 %v1194, %v1150
        %v1196 = vmul.f32 %v1194, %v1151
        %v1197 = vmul.f32 %v1194, %v1152
        %v1201 = vrot.slane %v1195, 3
        %v1202 = vrot.slane %v1196, 3
        %v1203 = vsel %vm246, %v1201, %v1202
        %v1204 = vrot.slane %v1197, 3
        %v1205 = vsel %vm246, %v1202, %v1204
        %v1208 = vadd.f32 %v1191, %v1203
        %v1209 = vadd.f32 %v1192, %v1205
        %s1210 = sld [smem:[#allocation3 + $0x4d]]
        %v1211 = vstv %s1210
        %v1212 = vmul.f32 %v1211, %v1150
        %v1213 = vmul.f32 %v1211, %v1151
        %v1214 = vmul.f32 %v1211, %v1152
        %v1218 = vrot.slane %v1212, 4
        %v1219 = vrot.slane %v1213, 4
        %v1220 = vsel %vm264, %v1218, %v1219
        %v1221 = vrot.slane %v1214, 4
        %v1222 = vsel %vm264, %v1219, %v1221
        %v1225 = vadd.f32 %v1208, %v1220
        %v1226 = vadd.f32 %v1209, %v1222
        %s1227 = sld [smem:[#allocation3 + $0x54]]
        %v1228 = vstv %s1227
        %v1229 = vmul.f32 %v1228, %v1150
        %v1230 = vmul.f32 %v1228, %v1151
        %v1231 = vmul.f32 %v1228, %v1152
        %v1235 = vrot.slane %v1229, 5
        %v1236 = vrot.slane %v1230, 5
        %v1237 = vsel %vm282, %v1235, %v1236
        %v1238 = vrot.slane %v1231, 5
        %v1239 = vsel %vm282, %v1236, %v1238
        %v1242 = vadd.f32 %v1225, %v1237
        %v1243 = vadd.f32 %v1226, %v1239
        %s1244 = sld [smem:[#allocation3 + $0x5b]]
        %v1245 = vstv %s1244
        %v1246 = vmul.f32 %v1245, %v1150
        %v1247 = vmul.f32 %v1245, %v1151
        %v1248 = vmul.f32 %v1245, %v1152
        %v1252 = vrot.slane %v1246, 6
        %v1253 = vrot.slane %v1247, 6
        %v1254 = vsel %vm300, %v1252, %v1253
        %v1255 = vrot.slane %v1248, 6
        %v1256 = vsel %vm300, %v1253, %v1255
        %v1259 = vadd.f32 %v1242, %v1254
        %v1260 = vadd.f32 %v1243, %v1256
        %s1261 = sld [smem:[#allocation3 + $0x32]]
        %v1262 = vstv %s1261
        %v1263 = vmul.f32 %v1262, %v1150
        %v1264 = vmul.f32 %v1262, %v1151
        %1267 = vrot.lane.b32.xlu0 %v1263, 127
        %v1268 = vpop.permute.xlu0 %1267
        %1269 = vrot.lane.b32.xlu0 %v1264, 127
        %v1270 = vpop.permute.xlu0 %1269
        %v1273 = vadd.f32 %v1259, %v1268
        %v1274 = vadd.f32 %v1260, %v1270
        %s1275 = sld [smem:[#allocation3 + $0x39]]
        %v1276 = vstv %s1275
        %v1277 = vmul.f32 %v1276, %v1150
        %v1278 = vmul.f32 %v1276, %v1151
        %v1279 = vmul.f32 %v1276, %v1152
        %v1283 = vrot.slane %v1277, 1
        %v1284 = vrot.slane %v1278, 1
        %v1285 = vsel %vm210, %v1283, %v1284
        %v1286 = vrot.slane %v1279, 1
        %v1287 = vsel %vm210, %v1284, %v1286
        %1288 = vrot.lane.b32.xlu0 %v1285, 127
        %v1289 = vpop.permute.xlu0 %1288
        %1290 = vrot.lane.b32.xlu0 %v1287, 127
        %v1291 = vpop.permute.xlu0 %1290
        %v1294 = vadd.f32 %v1273, %v1289
        %v1295 = vadd.f32 %v1274, %v1291
        %s1296 = sld [smem:[#allocation3 + $0x40]]
        %v1297 = vstv %s1296
        %v1298 = vmul.f32 %v1297, %v1150
        %v1299 = vmul.f32 %v1297, %v1151
        %v1300 = vmul.f32 %v1297, %v1152
        %v1304 = vrot.slane %v1298, 2
        %v1305 = vrot.slane %v1299, 2
        %v1306 = vsel %vm228, %v1304, %v1305
        %v1307 = vrot.slane %v1300, 2
        %v1308 = vsel %vm228, %v1305, %v1307
        %1309 = vrot.lane.b32.xlu0 %v1306, 127
        %v1310 = vpop.permute.xlu0 %1309
        %1311 = vrot.lane.b32.xlu0 %v1308, 127
        %v1312 = vpop.permute.xlu0 %1311
        %v1315 = vadd.f32 %v1294, %v1310
        %v1316 = vadd.f32 %v1295, %v1312
        %s1317 = sld [smem:[#allocation3 + $0x47]]
        %v1318 = vstv %s1317
        %v1319 = vmul.f32 %v1318, %v1150
        %v1320 = vmul.f32 %v1318, %v1151
        %v1321 = vmul.f32 %v1318, %v1152
        %v1325 = vrot.slane %v1319, 3
        %v1326 = vrot.slane %v1320, 3
        %v1327 = vsel %vm246, %v1325, %v1326
        %v1328 = vrot.slane %v1321, 3
        %v1329 = vsel %vm246, %v1326, %v1328
        %1330 = vrot.lane.b32.xlu0 %v1327, 127
        %v1331 = vpop.permute.xlu0 %1330
        %1332 = vrot.lane.b32.xlu0 %v1329, 127
        %v1333 = vpop.permute.xlu0 %1332
        %v1336 = vadd.f32 %v1315, %v1331
        %v1337 = vadd.f32 %v1316, %v1333
        %s1338 = sld [smem:[#allocation3 + $0x4e]]
        %v1339 = vstv %s1338
        %v1340 = vmul.f32 %v1339, %v1150
        %v1341 = vmul.f32 %v1339, %v1151
        %v1342 = vmul.f32 %v1339, %v1152
        %v1346 = vrot.slane %v1340, 4
        %v1347 = vrot.slane %v1341, 4
        %v1348 = vsel %vm264, %v1346, %v1347
        %v1349 = vrot.slane %v1342, 4
        %v1350 = vsel %vm264, %v1347, %v1349
        %1351 = vrot.lane.b32.xlu0 %v1348, 127
        %v1352 = vpop.permute.xlu0 %1351
        %1353 = vrot.lane.b32.xlu0 %v1350, 127
        %v1354 = vpop.permute.xlu0 %1353
        %v1357 = vadd.f32 %v1336, %v1352
        %v1358 = vadd.f32 %v1337, %v1354
        %s1359 = sld [smem:[#allocation3 + $0x55]]
        %v1360 = vstv %s1359
        %v1361 = vmul.f32 %v1360, %v1150
        %v1362 = vmul.f32 %v1360, %v1151
        %v1363 = vmul.f32 %v1360, %v1152
        %v1367 = vrot.slane %v1361, 5
        %v1368 = vrot.slane %v1362, 5
        %v1369 = vsel %vm282, %v1367, %v1368
        %v1370 = vrot.slane %v1363, 5
        %v1371 = vsel %vm282, %v1368, %v1370
        %1372 = vrot.lane.b32.xlu0 %v1369, 127
        %v1373 = vpop.permute.xlu0 %1372
        %1374 = vrot.lane.b32.xlu0 %v1371, 127
        %v1375 = vpop.permute.xlu0 %1374
        %v1378 = vadd.f32 %v1357, %v1373
        %v1379 = vadd.f32 %v1358, %v1375
        %s1380 = sld [smem:[#allocation3 + $0x5c]]
        %v1381 = vstv %s1380
        %v1382 = vmul.f32 %v1381, %v1150
        %v1383 = vmul.f32 %v1381, %v1151
        %v1384 = vmul.f32 %v1381, %v1152
        %v1388 = vrot.slane %v1382, 6
        %v1389 = vrot.slane %v1383, 6
        %v1390 = vsel %vm300, %v1388, %v1389
        %v1391 = vrot.slane %v1384, 6
        %v1392 = vsel %vm300, %v1389, %v1391
        %1393 = vrot.lane.b32.xlu0 %v1390, 127
        %v1394 = vpop.permute.xlu0 %1393
        %1395 = vrot.lane.b32.xlu0 %v1392, 127
        %v1396 = vpop.permute.xlu0 %1395
        %v1399 = vadd.f32 %v1378, %v1394
        %v1400 = vadd.f32 %v1379, %v1396
        %s1401 = sld [smem:[#allocation3 + $0x33]]
        %v1402 = vstv %s1401
        %v1403 = vmul.f32 %v1402, %v1150
        %v1404 = vmul.f32 %v1402, %v1151
        %1407 = vrot.lane.b32.xlu0 %v1403, 126
        %v1408 = vpop.permute.xlu0 %1407
        %1409 = vrot.lane.b32.xlu0 %v1404, 126
        %v1410 = vpop.permute.xlu0 %1409
        %v1413 = vadd.f32 %v1399, %v1408
        %v1414 = vadd.f32 %v1400, %v1410
        %s1415 = sld [smem:[#allocation3 + $0x3a]]
        %v1416 = vstv %s1415
        %v1417 = vmul.f32 %v1416, %v1150
        %v1418 = vmul.f32 %v1416, %v1151
        %v1419 = vmul.f32 %v1416, %v1152
        %v1423 = vrot.slane %v1417, 1
        %v1424 = vrot.slane %v1418, 1
        %v1425 = vsel %vm210, %v1423, %v1424
        %v1426 = vrot.slane %v1419, 1
        %v1427 = vsel %vm210, %v1424, %v1426
        %1428 = vrot.lane.b32.xlu0 %v1425, 126
        %v1429 = vpop.permute.xlu0 %1428
        %1430 = vrot.lane.b32.xlu0 %v1427, 126
        %v1431 = vpop.permute.xlu0 %1430
        %v1434 = vadd.f32 %v1413, %v1429
        %v1435 = vadd.f32 %v1414, %v1431
        %s1436 = sld [smem:[#allocation3 + $0x41]]
        %v1437 = vstv %s1436
        %v1438 = vmul.f32 %v1437, %v1150
        %v1439 = vmul.f32 %v1437, %v1151
        %v1440 = vmul.f32 %v1437, %v1152
        %v1444 = vrot.slane %v1438, 2
        %v1445 = vrot.slane %v1439, 2
        %v1446 = vsel %vm228, %v1444, %v1445
        %v1447 = vrot.slane %v1440, 2
        %v1448 = vsel %vm228, %v1445, %v1447
        %1449 = vrot.lane.b32.xlu0 %v1446, 126
        %v1450 = vpop.permute.xlu0 %1449
        %1451 = vrot.lane.b32.xlu0 %v1448, 126
        %v1452 = vpop.permute.xlu0 %1451
        %v1455 = vadd.f32 %v1434, %v1450
        %v1456 = vadd.f32 %v1435, %v1452
        %s1457 = sld [smem:[#allocation3 + $0x48]]
        %v1458 = vstv %s1457
        %v1459 = vmul.f32 %v1458, %v1150
        %v1460 = vmul.f32 %v1458, %v1151
        %v1461 = vmul.f32 %v1458, %v1152
        %v1465 = vrot.slane %v1459, 3
        %v1466 = vrot.slane %v1460, 3
        %v1467 = vsel %vm246, %v1465, %v1466
        %v1468 = vrot.slane %v1461, 3
        %v1469 = vsel %vm246, %v1466, %v1468
        %1470 = vrot.lane.b32.xlu0 %v1467, 126
        %v1471 = vpop.permute.xlu0 %1470
        %1472 = vrot.lane.b32.xlu0 %v1469, 126
        %v1473 = vpop.permute.xlu0 %1472
        %v1476 = vadd.f32 %v1455, %v1471
        %v1477 = vadd.f32 %v1456, %v1473
        %s1478 = sld [smem:[#allocation3 + $0x4f]]
        %v1479 = vstv %s1478
        %v1480 = vmul.f32 %v1479, %v1150
        %v1481 = vmul.f32 %v1479, %v1151
        %v1482 = vmul.f32 %v1479, %v1152
        %v1486 = vrot.slane %v1480, 4
        %v1487 = vrot.slane %v1481, 4
        %v1488 = vsel %vm264, %v1486, %v1487
        %v1489 = vrot.slane %v1482, 4
        %v1490 = vsel %vm264, %v1487, %v1489
        %1491 = vrot.lane.b32.xlu0 %v1488, 126
        %v1492 = vpop.permute.xlu0 %1491
        %1493 = vrot.lane.b32.xlu0 %v1490, 126
        %v1494 = vpop.permute.xlu0 %1493
        %v1497 = vadd.f32 %v1476, %v1492
        %v1498 = vadd.f32 %v1477, %v1494
        %s1499 = sld [smem:[#allocation3 + $0x56]]
        %v1500 = vstv %s1499
        %v1501 = vmul.f32 %v1500, %v1150
        %v1502 = vmul.f32 %v1500, %v1151
        %v1503 = vmul.f32 %v1500, %v1152
        %v1507 = vrot.slane %v1501, 5
        %v1508 = vrot.slane %v1502, 5
        %v1509 = vsel %vm282, %v1507, %v1508
        %v1510 = vrot.slane %v1503, 5
        %v1511 = vsel %vm282, %v1508, %v1510
        %1512 = vrot.lane.b32.xlu0 %v1509, 126
        %v1513 = vpop.permute.xlu0 %1512
        %1514 = vrot.lane.b32.xlu0 %v1511, 126
        %v1515 = vpop.permute.xlu0 %1514
        %v1518 = vadd.f32 %v1497, %v1513
        %v1519 = vadd.f32 %v1498, %v1515
        %s1520 = sld [smem:[#allocation3 + $0x5d]]
        %v1521 = vstv %s1520
        %v1522 = vmul.f32 %v1521, %v1150
        %v1523 = vmul.f32 %v1521, %v1151
        %v1524 = vmul.f32 %v1521, %v1152
        %v1528 = vrot.slane %v1522, 6
        %v1529 = vrot.slane %v1523, 6
        %v1530 = vsel %vm300, %v1528, %v1529
        %v1531 = vrot.slane %v1524, 6
        %v1532 = vsel %vm300, %v1529, %v1531
        %1533 = vrot.lane.b32.xlu0 %v1530, 126
        %v1534 = vpop.permute.xlu0 %1533
        %1535 = vrot.lane.b32.xlu0 %v1532, 126
        %v1536 = vpop.permute.xlu0 %1535
        %v1539 = vadd.f32 %v1518, %v1534
        %v1540 = vadd.f32 %v1519, %v1536
        %s1541 = sld [smem:[#allocation3 + $0x34]]
        %v1542 = vstv %s1541
        %v1543 = vmul.f32 %v1542, %v1150
        %v1544 = vmul.f32 %v1542, %v1151
        %1547 = vrot.lane.b32.xlu0 %v1543, 125
        %v1548 = vpop.permute.xlu0 %1547
        %1549 = vrot.lane.b32.xlu0 %v1544, 125
        %v1550 = vpop.permute.xlu0 %1549
        %v1553 = vadd.f32 %v1539, %v1548
        %v1554 = vadd.f32 %v1540, %v1550
        %s1555 = sld [smem:[#allocation3 + $0x3b]]
        %v1556 = vstv %s1555
        %v1557 = vmul.f32 %v1556, %v1150
        %v1558 = vmul.f32 %v1556, %v1151
        %v1559 = vmul.f32 %v1556, %v1152
        %v1563 = vrot.slane %v1557, 1
        %v1564 = vrot.slane %v1558, 1
        %v1565 = vsel %vm210, %v1563, %v1564
        %v1566 = vrot.slane %v1559, 1
        %v1567 = vsel %vm210, %v1564, %v1566
        %1568 = vrot.lane.b32.xlu0 %v1565, 125
        %v1569 = vpop.permute.xlu0 %1568
        %1570 = vrot.lane.b32.xlu0 %v1567, 125
        %v1571 = vpop.permute.xlu0 %1570
        %v1574 = vadd.f32 %v1553, %v1569
        %v1575 = vadd.f32 %v1554, %v1571
        %s1576 = sld [smem:[#allocation3 + $0x42]]
        %v1577 = vstv %s1576
        %v1578 = vmul.f32 %v1577, %v1150
        %v1579 = vmul.f32 %v1577, %v1151
        %v1580 = vmul.f32 %v1577, %v1152
        %v1584 = vrot.slane %v1578, 2
        %v1585 = vrot.slane %v1579, 2
        %v1586 = vsel %vm228, %v1584, %v1585
        %v1587 = vrot.slane %v1580, 2
        %v1588 = vsel %vm228, %v1585, %v1587
        %1589 = vrot.lane.b32.xlu0 %v1586, 125
        %v1590 = vpop.permute.xlu0 %1589
        %1591 = vrot.lane.b32.xlu0 %v1588, 125
        %v1592 = vpop.permute.xlu0 %1591
        %v1595 = vadd.f32 %v1574, %v1590
        %v1596 = vadd.f32 %v1575, %v1592
        %s1597 = sld [smem:[#allocation3 + $0x49]]
        %v1598 = vstv %s1597
        %v1599 = vmul.f32 %v1598, %v1150
        %v1600 = vmul.f32 %v1598, %v1151
        %v1601 = vmul.f32 %v1598, %v1152
        %v1605 = vrot.slane %v1599, 3
        %v1606 = vrot.slane %v1600, 3
        %v1607 = vsel %vm246, %v1605, %v1606
        %v1608 = vrot.slane %v1601, 3
        %v1609 = vsel %vm246, %v1606, %v1608
        %1610 = vrot.lane.b32.xlu0 %v1607, 125
        %v1611 = vpop.permute.xlu0 %1610
        %1612 = vrot.lane.b32.xlu0 %v1609, 125
        %v1613 = vpop.permute.xlu0 %1612
        %v1616 = vadd.f32 %v1595, %v1611
        %v1617 = vadd.f32 %v1596, %v1613
        %s1618 = sld [smem:[#allocation3 + $0x50]]
        %v1619 = vstv %s1618
        %v1620 = vmul.f32 %v1619, %v1150
        %v1621 = vmul.f32 %v1619, %v1151
        %v1622 = vmul.f32 %v1619, %v1152
        %v1626 = vrot.slane %v1620, 4
        %v1627 = vrot.slane %v1621, 4
        %v1628 = vsel %vm264, %v1626, %v1627
        %v1629 = vrot.slane %v1622, 4
        %v1630 = vsel %vm264, %v1627, %v1629
        %1631 = vrot.lane.b32.xlu0 %v1628, 125
        %v1632 = vpop.permute.xlu0 %1631
        %1633 = vrot.lane.b32.xlu0 %v1630, 125
        %v1634 = vpop.permute.xlu0 %1633
        %v1637 = vadd.f32 %v1616, %v1632
        %v1638 = vadd.f32 %v1617, %v1634
        %s1639 = sld [smem:[#allocation3 + $0x57]]
        %v1640 = vstv %s1639
        %v1641 = vmul.f32 %v1640, %v1150
        %v1642 = vmul.f32 %v1640, %v1151
        %v1643 = vmul.f32 %v1640, %v1152
        %v1647 = vrot.slane %v1641, 5
        %v1648 = vrot.slane %v1642, 5
        %v1649 = vsel %vm282, %v1647, %v1648
        %v1650 = vrot.slane %v1643, 5
        %v1651 = vsel %vm282, %v1648, %v1650
        %1652 = vrot.lane.b32.xlu0 %v1649, 125
        %v1653 = vpop.permute.xlu0 %1652
        %1654 = vrot.lane.b32.xlu0 %v1651, 125
        %v1655 = vpop.permute.xlu0 %1654
        %v1658 = vadd.f32 %v1637, %v1653
        %v1659 = vadd.f32 %v1638, %v1655
        %s1660 = sld [smem:[#allocation3 + $0x5e]]
        %v1661 = vstv %s1660
        %v1662 = vmul.f32 %v1661, %v1150
        %v1663 = vmul.f32 %v1661, %v1151
        %v1664 = vmul.f32 %v1661, %v1152
        %v1668 = vrot.slane %v1662, 6
        %v1669 = vrot.slane %v1663, 6
        %v1670 = vsel %vm300, %v1668, %v1669
        %v1671 = vrot.slane %v1664, 6
        %v1672 = vsel %vm300, %v1669, %v1671
        %1673 = vrot.lane.b32.xlu0 %v1670, 125
        %v1674 = vpop.permute.xlu0 %1673
        %1675 = vrot.lane.b32.xlu0 %v1672, 125
        %v1676 = vpop.permute.xlu0 %1675
        %v1679 = vadd.f32 %v1658, %v1674
        %v1680 = vadd.f32 %v1659, %v1676
        %s1681 = sld [smem:[#allocation3 + $0x35]]
        %v1682 = vstv %s1681
        %v1683 = vmul.f32 %v1682, %v1150
        %v1684 = vmul.f32 %v1682, %v1151
        %1687 = vrot.lane.b32.xlu0 %v1683, 124
        %v1688 = vpop.permute.xlu0 %1687
        %1689 = vrot.lane.b32.xlu0 %v1684, 124
        %v1690 = vpop.permute.xlu0 %1689
        %v1693 = vadd.f32 %v1679, %v1688
        %v1694 = vadd.f32 %v1680, %v1690
        %s1695 = sld [smem:[#allocation3 + $0x3c]]
        %v1696 = vstv %s1695
        %v1697 = vmul.f32 %v1696, %v1150
        %v1698 = vmul.f32 %v1696, %v1151
        %v1699 = vmul.f32 %v1696, %v1152
        %v1703 = vrot.slane %v1697, 1
        %v1704 = vrot.slane %v1698, 1
        %v1705 = vsel %vm210, %v1703, %v1704
        %v1706 = vrot.slane %v1699, 1
        %v1707 = vsel %vm210, %v1704, %v1706
        %1708 = vrot.lane.b32.xlu0 %v1705, 124
        %v1709 = vpop.permute.xlu0 %1708
        %1710 = vrot.lane.b32.xlu0 %v1707, 124
        %v1711 = vpop.permute.xlu0 %1710
        %v1714 = vadd.f32 %v1693, %v1709
        %v1715 = vadd.f32 %v1694, %v1711
        %s1716 = sld [smem:[#allocation3 + $0x43]]
        %v1717 = vstv %s1716
        %v1718 = vmul.f32 %v1717, %v1150
        %v1719 = vmul.f32 %v1717, %v1151
        %v1720 = vmul.f32 %v1717, %v1152
        %v1724 = vrot.slane %v1718, 2
        %v1725 = vrot.slane %v1719, 2
        %v1726 = vsel %vm228, %v1724, %v1725
        %v1727 = vrot.slane %v1720, 2
        %v1728 = vsel %vm228, %v1725, %v1727
        %1729 = vrot.lane.b32.xlu0 %v1726, 124
        %v1730 = vpop.permute.xlu0 %1729
        %1731 = vrot.lane.b32.xlu0 %v1728, 124
        %v1732 = vpop.permute.xlu0 %1731
        %v1735 = vadd.f32 %v1714, %v1730
        %v1736 = vadd.f32 %v1715, %v1732
        %s1737 = sld [smem:[#allocation3 + $0x4a]]
        %v1738 = vstv %s1737
        %v1739 = vmul.f32 %v1738, %v1150
        %v1740 = vmul.f32 %v1738, %v1151
        %v1741 = vmul.f32 %v1738, %v1152
        %v1745 = vrot.slane %v1739, 3
        %v1746 = vrot.slane %v1740, 3
        %v1747 = vsel %vm246, %v1745, %v1746
        %v1748 = vrot.slane %v1741, 3
        %v1749 = vsel %vm246, %v1746, %v1748
        %1750 = vrot.lane.b32.xlu0 %v1747, 124
        %v1751 = vpop.permute.xlu0 %1750
        %1752 = vrot.lane.b32.xlu0 %v1749, 124
        %v1753 = vpop.permute.xlu0 %1752
        %v1756 = vadd.f32 %v1735, %v1751
        %v1757 = vadd.f32 %v1736, %v1753
        %s1758 = sld [smem:[#allocation3 + $0x51]]
        %v1759 = vstv %s1758
        %v1760 = vmul.f32 %v1759, %v1150
        %v1761 = vmul.f32 %v1759, %v1151
        %v1762 = vmul.f32 %v1759, %v1152
        %v1766 = vrot.slane %v1760, 4
        %v1767 = vrot.slane %v1761, 4
        %v1768 = vsel %vm264, %v1766, %v1767
        %v1769 = vrot.slane %v1762, 4
        %v1770 = vsel %vm264, %v1767, %v1769
        %1771 = vrot.lane.b32.xlu0 %v1768, 124
        %v1772 = vpop.permute.xlu0 %1771
        %1773 = vrot.lane.b32.xlu0 %v1770, 124
        %v1774 = vpop.permute.xlu0 %1773
        %v1777 = vadd.f32 %v1756, %v1772
        %v1778 = vadd.f32 %v1757, %v1774
        %s1779 = sld [smem:[#allocation3 + $0x58]]
        %v1780 = vstv %s1779
        %v1781 = vmul.f32 %v1780, %v1150
        %v1782 = vmul.f32 %v1780, %v1151
        %v1783 = vmul.f32 %v1780, %v1152
        %v1787 = vrot.slane %v1781, 5
        %v1788 = vrot.slane %v1782, 5
        %v1789 = vsel %vm282, %v1787, %v1788
        %v1790 = vrot.slane %v1783, 5
        %v1791 = vsel %vm282, %v1788, %v1790
        %1792 = vrot.lane.b32.xlu0 %v1789, 124
        %v1793 = vpop.permute.xlu0 %1792
        %1794 = vrot.lane.b32.xlu0 %v1791, 124
        %v1795 = vpop.permute.xlu0 %1794
        %v1798 = vadd.f32 %v1777, %v1793
        %v1799 = vadd.f32 %v1778, %v1795
        %s1800 = sld [smem:[#allocation3 + $0x5f]]
        %v1801 = vstv %s1800
        %v1802 = vmul.f32 %v1801, %v1150
        %v1803 = vmul.f32 %v1801, %v1151
        %v1804 = vmul.f32 %v1801, %v1152
        %v1808 = vrot.slane %v1802, 6
        %v1809 = vrot.slane %v1803, 6
        %v1810 = vsel %vm300, %v1808, %v1809
        %v1811 = vrot.slane %v1804, 6
        %v1812 = vsel %vm300, %v1809, %v1811
        %1813 = vrot.lane.b32.xlu0 %v1810, 124
        %v1814 = vpop.permute.xlu0 %1813
        %1815 = vrot.lane.b32.xlu0 %v1812, 124
        %v1816 = vpop.permute.xlu0 %1815
        %v1819 = vadd.f32 %v1798, %v1814
        %v1820 = vadd.f32 %v1799, %v1816
        %s1821 = sld [smem:[#allocation3 + $0x36]]
        %v1822 = vstv %s1821
        %v1823 = vmul.f32 %v1822, %v1150
        %v1824 = vmul.f32 %v1822, %v1151
        %1827 = vrot.lane.b32.xlu0 %v1823, 123
        %v1828 = vpop.permute.xlu0 %1827
        %1829 = vrot.lane.b32.xlu0 %v1824, 123
        %v1830 = vpop.permute.xlu0 %1829
        %v1833 = vadd.f32 %v1819, %v1828
        %v1834 = vadd.f32 %v1820, %v1830
        %s1835 = sld [smem:[#allocation3 + $0x3d]]
        %v1836 = vstv %s1835
        %v1837 = vmul.f32 %v1836, %v1150
        %v1838 = vmul.f32 %v1836, %v1151
        %v1839 = vmul.f32 %v1836, %v1152
        %v1843 = vrot.slane %v1837, 1
        %v1844 = vrot.slane %v1838, 1
        %v1845 = vsel %vm210, %v1843, %v1844
        %v1846 = vrot.slane %v1839, 1
        %v1847 = vsel %vm210, %v1844, %v1846
        %1848 = vrot.lane.b32.xlu0 %v1845, 123
        %v1849 = vpop.permute.xlu0 %1848
        %1850 = vrot.lane.b32.xlu0 %v1847, 123
        %v1851 = vpop.permute.xlu0 %1850
        %v1854 = vadd.f32 %v1833, %v1849
        %v1855 = vadd.f32 %v1834, %v1851
        %s1856 = sld [smem:[#allocation3 + $0x44]]
        %v1857 = vstv %s1856
        %v1858 = vmul.f32 %v1857, %v1150
        %v1859 = vmul.f32 %v1857, %v1151
        %v1860 = vmul.f32 %v1857, %v1152
        %v1864 = vrot.slane %v1858, 2
        %v1865 = vrot.slane %v1859, 2
        %v1866 = vsel %vm228, %v1864, %v1865
        %v1867 = vrot.slane %v1860, 2
        %v1868 = vsel %vm228, %v1865, %v1867
        %1869 = vrot.lane.b32.xlu0 %v1866, 123
        %v1870 = vpop.permute.xlu0 %1869
        %1871 = vrot.lane.b32.xlu0 %v1868, 123
        %v1872 = vpop.permute.xlu0 %1871
        %v1875 = vadd.f32 %v1854, %v1870
        %v1876 = vadd.f32 %v1855, %v1872
        %s1877 = sld [smem:[#allocation3 + $0x4b]]
        %v1878 = vstv %s1877
        %v1879 = vmul.f32 %v1878, %v1150
        %v1880 = vmul.f32 %v1878, %v1151
        %v1881 = vmul.f32 %v1878, %v1152
        %v1885 = vrot.slane %v1879, 3
        %v1886 = vrot.slane %v1880, 3
        %v1887 = vsel %vm246, %v1885, %v1886
        %v1888 = vrot.slane %v1881, 3
        %v1889 = vsel %vm246, %v1886, %v1888
        %1890 = vrot.lane.b32.xlu0 %v1887, 123
        %v1891 = vpop.permute.xlu0 %1890
        %1892 = vrot.lane.b32.xlu0 %v1889, 123
        %v1893 = vpop.permute.xlu0 %1892
        %v1896 = vadd.f32 %v1875, %v1891
        %v1897 = vadd.f32 %v1876, %v1893
        %s1898 = sld [smem:[#allocation3 + $0x52]]
        %v1899 = vstv %s1898
        %v1900 = vmul.f32 %v1899, %v1150
        %v1901 = vmul.f32 %v1899, %v1151
        %v1902 = vmul.f32 %v1899, %v1152
        %v1906 = vrot.slane %v1900, 4
        %v1907 = vrot.slane %v1901, 4
        %v1908 = vsel %vm264, %v1906, %v1907
        %v1909 = vrot.slane %v1902, 4
        %v1910 = vsel %vm264, %v1907, %v1909
        %1911 = vrot.lane.b32.xlu0 %v1908, 123
        %v1912 = vpop.permute.xlu0 %1911
        %1913 = vrot.lane.b32.xlu0 %v1910, 123
        %v1914 = vpop.permute.xlu0 %1913
        %v1917 = vadd.f32 %v1896, %v1912
        %v1918 = vadd.f32 %v1897, %v1914
        %s1919 = sld [smem:[#allocation3 + $0x59]]
        %v1920 = vstv %s1919
        %v1921 = vmul.f32 %v1920, %v1150
        %v1922 = vmul.f32 %v1920, %v1151
        %v1923 = vmul.f32 %v1920, %v1152
        %v1927 = vrot.slane %v1921, 5
        %v1928 = vrot.slane %v1922, 5
        %v1929 = vsel %vm282, %v1927, %v1928
        %v1930 = vrot.slane %v1923, 5
        %v1931 = vsel %vm282, %v1928, %v1930
        %1932 = vrot.lane.b32.xlu0 %v1929, 123
        %v1933 = vpop.permute.xlu0 %1932
        %1934 = vrot.lane.b32.xlu0 %v1931, 123
        %v1935 = vpop.permute.xlu0 %1934
        %v1938 = vadd.f32 %v1917, %v1933
        %v1939 = vadd.f32 %v1918, %v1935
        %s1940 = sld [smem:[#allocation3 + $0x60]]
        %v1941 = vstv %s1940
        %v1942 = vmul.f32 %v1941, %v1150
        %v1943 = vmul.f32 %v1941, %v1151
        %v1944 = vmul.f32 %v1941, %v1152
        %v1948 = vrot.slane %v1942, 6
        %v1949 = vrot.slane %v1943, 6
        %v1950 = vsel %vm300, %v1948, %v1949
        %v1951 = vrot.slane %v1944, 6
        %v1952 = vsel %vm300, %v1949, %v1951
        %1953 = vrot.lane.b32.xlu0 %v1950, 123
        %v1954 = vpop.permute.xlu0 %1953
        %1955 = vrot.lane.b32.xlu0 %v1952, 123
        %v1956 = vpop.permute.xlu0 %1955
        %v1959 = vadd.f32 %v1938, %v1954
        %v1960 = vadd.f32 %v1939, %v1956
        %s1961 = sld [smem:[#allocation3 + $0x37]]
        %v1962 = vstv %s1961
        %v1963 = vmul.f32 %v1962, %v1150
        %v1964 = vmul.f32 %v1962, %v1151
        %1967 = vrot.lane.b32.xlu0 %v1963, 122
        %v1968 = vpop.permute.xlu0 %1967
        %1969 = vrot.lane.b32.xlu0 %v1964, 122
        %v1970 = vpop.permute.xlu0 %1969
        %v1973 = vadd.f32 %v1959, %v1968
        %v1974 = vadd.f32 %v1960, %v1970
        %s1975 = sld [smem:[#allocation3 + $0x3e]]
        %v1976 = vstv %s1975
        %v1977 = vmul.f32 %v1976, %v1150
        %v1978 = vmul.f32 %v1976, %v1151
        %v1979 = vmul.f32 %v1976, %v1152
        %v1983 = vrot.slane %v1977, 1
        %v1984 = vrot.slane %v1978, 1
        %v1985 = vsel %vm210, %v1983, %v1984
        %v1986 = vrot.slane %v1979, 1
        %v1987 = vsel %vm210, %v1984, %v1986
        %1988 = vrot.lane.b32.xlu0 %v1985, 122
        %v1989 = vpop.permute.xlu0 %1988
        %1990 = vrot.lane.b32.xlu0 %v1987, 122
        %v1991 = vpop.permute.xlu0 %1990
        %v1994 = vadd.f32 %v1973, %v1989
        %v1995 = vadd.f32 %v1974, %v1991
        %s1996 = sld [smem:[#allocation3 + $0x45]]
        %v1997 = vstv %s1996
        %v1998 = vmul.f32 %v1997, %v1150
        %v1999 = vmul.f32 %v1997, %v1151
        %v2000 = vmul.f32 %v1997, %v1152
        %v2004 = vrot.slane %v1998, 2
        %v2005 = vrot.slane %v1999, 2
        %v2006 = vsel %vm228, %v2004, %v2005
        %v2007 = vrot.slane %v2000, 2
        %v2008 = vsel %vm228, %v2005, %v2007
        %2009 = vrot.lane.b32.xlu0 %v2006, 122
        %v2010 = vpop.permute.xlu0 %2009
        %2011 = vrot.lane.b32.xlu0 %v2008, 122
        %v2012 = vpop.permute.xlu0 %2011
        %v2015 = vadd.f32 %v1994, %v2010
        %v2016 = vadd.f32 %v1995, %v2012
        %s2017 = sld [smem:[#allocation3 + $0x4c]]
        %v2018 = vstv %s2017
        %v2019 = vmul.f32 %v2018, %v1150
        %v2020 = vmul.f32 %v2018, %v1151
        %v2021 = vmul.f32 %v2018, %v1152
        %v2025 = vrot.slane %v2019, 3
        %v2026 = vrot.slane %v2020, 3
        %v2027 = vsel %vm246, %v2025, %v2026
        %v2028 = vrot.slane %v2021, 3
        %v2029 = vsel %vm246, %v2026, %v2028
        %2030 = vrot.lane.b32.xlu0 %v2027, 122
        %v2031 = vpop.permute.xlu0 %2030
        %2032 = vrot.lane.b32.xlu0 %v2029, 122
        %v2033 = vpop.permute.xlu0 %2032
        %v2036 = vadd.f32 %v2015, %v2031
        %v2037 = vadd.f32 %v2016, %v2033
        %s2038 = sld [smem:[#allocation3 + $0x53]]
        %v2039 = vstv %s2038
        %v2040 = vmul.f32 %v2039, %v1150
        %v2041 = vmul.f32 %v2039, %v1151
        %v2042 = vmul.f32 %v2039, %v1152
        %v2046 = vrot.slane %v2040, 4
        %v2047 = vrot.slane %v2041, 4
        %v2048 = vsel %vm264, %v2046, %v2047
        %v2049 = vrot.slane %v2042, 4
        %v2050 = vsel %vm264, %v2047, %v2049
        %2051 = vrot.lane.b32.xlu0 %v2048, 122
        %v2052 = vpop.permute.xlu0 %2051
        %2053 = vrot.lane.b32.xlu0 %v2050, 122
        %v2054 = vpop.permute.xlu0 %2053
        %v2057 = vadd.f32 %v2036, %v2052
        %v2058 = vadd.f32 %v2037, %v2054
        %s2059 = sld [smem:[#allocation3 + $0x5a]]
        %v2060 = vstv %s2059
        %v2061 = vmul.f32 %v2060, %v1150
        %v2062 = vmul.f32 %v2060, %v1151
        %v2063 = vmul.f32 %v2060, %v1152
        %v2067 = vrot.slane %v2061, 5
        %v2068 = vrot.slane %v2062, 5
        %v2069 = vsel %vm282, %v2067, %v2068
        %v2070 = vrot.slane %v2063, 5
        %v2071 = vsel %vm282, %v2068, %v2070
        %2072 = vrot.lane.b32.xlu0 %v2069, 122
        %v2073 = vpop.permute.xlu0 %2072
        %2074 = vrot.lane.b32.xlu0 %v2071, 122
        %v2075 = vpop.permute.xlu0 %2074
        %v2078 = vadd.f32 %v2057, %v2073
        %v2079 = vadd.f32 %v2058, %v2075
        %s2080 = sld [smem:[#allocation3 + $0x61]]
        %v2081 = vstv %s2080
        %v2082 = vmul.f32 %v2081, %v1150
        %v2083 = vmul.f32 %v2081, %v1151
        %v2084 = vmul.f32 %v2081, %v1152
        %v2088 = vrot.slane %v2082, 6
        %v2089 = vrot.slane %v2083, 6
        %v2090 = vsel %vm300, %v2088, %v2089
        %v2091 = vrot.slane %v2084, 6
        %v2092 = vsel %vm300, %v2089, %v2091
        %2093 = vrot.lane.b32.xlu0 %v2090, 122
        %v2094 = vpop.permute.xlu0 %2093
        %2095 = vrot.lane.b32.xlu0 %v2092, 122
        %v2096 = vpop.permute.xlu0 %2095
        %v2099 = vadd.f32 %v2078, %v2094
        %v2100 = vadd.f32 %v2079, %v2096
        %v2101 = vxor.u32 %v2099, 2147483648
        %v2102 = vxor.u32 %v2100, 2147483648
        %v2103 = vmul.f32 %v2101, 1.442695
        %v2104 = vpow.pop %v2103
        %v2105 = vmul.f32 %v2102, 1.442695
        %v2106 = vpow.pop %v2105
        %v2107 = vadd.f32 %v2104, 1.0
        %v2108 = vadd.f32 %v2106, 1.0
        %v2109 = vrcp.pop %v2107
        %v2110 = vmul.f32 %v2107, %v2109
        %v2111 = vsub.f32 1.0, %v2110
        %v2112 = vmul.f32 %v2109, %v2111
        %v2113 = vadd.f32 %v2109, %v2112
        %vm2114 = vweird.f32 %v2107
        %vm2115 = vweird.f32 %v2109
        %vm2116 = vmor %vm2114, %vm2115
        %v2117 = vsel %vm2116, %v2109, %v2113
        %v2118 = vand.u32 2147483647, %v2107
        %vm2119 = vcmp.eq.f32.partialorder %v2118, 8.507059e+37
        %v2120 = vand.u32 %v2107, 2147483648
        %v2121 = vor.u32 1.1754944e-38, %v2120
        %v2122 = vsel %vm2119, %v2121, %v2117
        %v2123 = vmul.f32 1.0, %v2122
        %v2124 = vrcp.pop %v2108
        %v2125 = vmul.f32 %v2108, %v2124
        %v2126 = vsub.f32 1.0, %v2125
        %v2127 = vmul.f32 %v2124, %v2126
        %v2128 = vadd.f32 %v2124, %v2127
        %vm2129 = vweird.f32 %v2108
        %vm2130 = vweird.f32 %v2124
        %vm2131 = vmor %vm2129, %vm2130
        %v2132 = vsel %vm2131, %v2124, %v2128
        %v2133 = vand.u32 2147483647, %v2108
        %vm2134 = vcmp.eq.f32.partialorder %v2133, 8.507059e+37
        %v2135 = vand.u32 %v2108, 2147483648
        %v2136 = vor.u32 1.1754944e-38, %v2135
        %v2137 = vsel %vm2134, %v2136, %v2132
        %v2138 = vmul.f32 1.0, %v2137
        %vm2139 = vcmask 130048
        %2140 = vst.msk [vmem:[%s157] sm:$0xff] %vm2139, %v2123
        %2141 = vst.msk [vmem:[%s157 + $0x8] sm:$0xff] %vm2139, %v2138
        %p2142 = scmp.lt.s32.totalorder %s14, 1
        %s2143 = scalar_select %p2142, %s14, 1
        %s2144 = smul.addr %s2143, 2
        %s2145 = smul.addr %s2144, 8
        %s2146 = scalar_lea.vmem %s2, %s2145
        // Predicated region
        $region33: #{spatial_attention.4} parent=27 // pred_check
          %p2147 = pneg %p79
        $region34: #{spatial_attention.4} parent=27 // pred_check_branch
          %2149 = sbr.rel (%p2147) target = $region36
        $region35: #{spatial_attention.4} parent=27 // pred_region
          _
        $region36: #{spatial_attention.4} parent=27 // pred_fallthru
          _
      $region28: #{spatial_attention.4} parent=5 // pred_fallthru
        _
      %p2150 = scmp.le.s32.totalorder 2, %s9
      // Predicated region
      $region37: #{spatial_attention.4} parent=5 // pred_check
        %p2151 = pneg %p2150
      $region38: #{spatial_attention.4} parent=5 // pred_check_branch
        %2153 = sbr.rel (%p2151) target = $region40
      $region39: #{spatial_attention.4} parent=5 // pred_region
        %s2154 = ssub.s32 %s9, 2
        // Predicated region
        $region41: #{spatial_attention.4} parent=39 // pred_check
          %p2155 = pneg %p85
        $region42: #{spatial_attention.4} parent=39 // pred_check_branch
          %2157 = sbr.rel (%p2155) target = $region44
        $region43: #{spatial_attention.4} parent=39 // pred_region
          %p2158 = scmp.lt.s32.totalorder %s15, 1
          %s2159 = scalar_select %p2158, %s15, 1
          %s2160 = smul.addr %s2159, 2
          %s2161 = smul.addr %s2160, 8
          %s2162 = scalar_lea.vmem %s2, %s2161
        $region44: #{spatial_attention.4} parent=39 // pred_fallthru
          _
      $region40: #{spatial_attention.4} parent=5 // pred_fallthru
        _
    $region6: #{spatial_attention.4} parent=1 // loop_footer
      %s13 = sadd.s32 1, %s9
    $region7: #{spatial_attention.4} parent=1 // loop_footer_branch
      %8 = sbr.rel target = $region3
    $region8: #{spatial_attention.4} parent=1 // loop_exit
      _
    %2163 = vsyncpa [#allocation4], 1
    %s2164 = scalar_lea.sflag [#allocation4], 1
    %2165 = vsyncpa %s2164, 1

</llo_original>
